<compile_context>
chip_gen: v7x
topology: tpu7x:2x2x1
jax: 0.10.0
libtpu: 0.0.40
codegen_flags: <defaults>
</compile_context>

<pallas_src>
import functools

import jax
import jax.numpy as jnp
from jax import lax
from jax.experimental import pallas as pl
from jax.experimental.pallas import tpu as pltpu


# -----------------------------------------------------------------------------
# Fused Conv(k,k,stride) + folded-BN + SiLU kernel
# -----------------------------------------------------------------------------
def _conv_bn_silu_kernel(x_ref, w_ref, b_ref, o_ref, slab_ref, *,
                         ksize, stride, th, wo, cin, n_row_tiles):
    # x_ref   : (Hs, Ws, s*s*cin) bf16 -- whole padded (space-to-depth) image of
    #                                     one batch element, reused across tiles
    # w_ref   : (k*k*cin, tn)     bf16 -- BN scale already folded in
    # b_ref   : (1, tn)           f32  -- folded BN bias
    # o_ref   : (th*wo, tn)       bf16 -- one flattened-spatial output tile
    # slab_ref: (th, wo, k*k*cin) f32  -- per-tile im2col slab (VMEM only)
    if n_row_tiles == 1:
        row0 = 0                                           # fully static slicing
    else:
        row0 = pl.multiple_of(pl.program_id(2) * th, th)   # row axis innermost

    s = stride
    if ksize == 1:
        # Single tap: feed the MXU straight from the image block (no slab copy).
        a = x_ref[pl.ds(row0, th), pl.ds(0, wo), pl.ds(0, cin)]
        lhs = a.reshape(th * wo, cin)                       # bf16
    else:
        # Gather the k*k taps into one slab so a SINGLE dot with contraction
        # depth k*k*cin feeds the MXU (instead of k*k dots of depth cin).
        for dh in range(ksize):
            for dw in range(ksize):
                t = dh * ksize + dw
                ph = ((dh % s) * s + (dw % s)) * cin        # space-to-depth phase
                slab_ref[:, :, pl.ds(t * cin, cin)] = x_ref[
                    pl.ds(row0 + dh // s, th),
                    pl.ds(dw // s, wo),
                    pl.ds(ph, cin)].astype(jnp.float32)
        kkc = ksize * ksize * cin
        # f32 slab => the (th, wo, kkc) -> (th*wo, kkc) collapse is layout
        # trivial for wo % 8 == 0; cast to bf16 only for the MXU operand.
        # TODO(synk): bf16 slab (half the VMEM traffic) once wo%16 alignment is
        #             guaranteed by the caller.
        lhs = slab_ref[...].reshape(th * wo, kkc).astype(jnp.bfloat16)

    acc = jnp.dot(lhs, w_ref[...], preferred_element_type=jnp.float32)

    y = acc + b_ref[...]                  # folded BN bias (eval stats), f32
    # SiLU: y * sigmoid(y) = y / (1 + exp(-y)); exp + approx reciprocal keep the
    # single EUP slot from binding on thin-channel layers.
    y = y * pl.reciprocal(1.0 + jnp.exp(-y), approx=True)
    o_ref[...] = y.astype(o_ref.dtype)


def conv_bn_silu_nhwc(x, w2d, bias, *, ksize, stride):
    """x: (B,H,W,Cin) float; w2d: (k*k*Cin, Cout) bf16 (BN scale folded);
    bias: (Cout,) f32.  Returns (B, Ho, Wo, Cout) bf16 == SiLU(BN(Conv2d(x)))."""
    B, H, W, cin = x.shape
    cout = w2d.shape[1]
    k, s = ksize, stride
    pad = (k - 1) // 2
    ho = (H + 2 * pad - k) // s + 1
    wo = (W + 2 * pad - k) // s + 1

    # ---- output-channel tile (no zero padding of Cout) -----------------------
    if cout > 256 and cout % 256 == 0:
        tn = 256
    elif cout > 128 and cout % 128 == 0:
        tn = 128
    else:
        tn = cout
    n_col = cout // tn

    # ---- output-row tile: GEMM M = th*wo ~ 512 rows, th multiple of 8 --------
    th = min(ho, max(1, 512 // max(wo, 1)))
    if th < ho:
        th = (th // 8) * 8
        if th == 0:
            th = min(8, ho)
    n_row = pl.cdiv(ho, th)

    # ---- zero pad + (stride>1) space-to-depth so every tap read is contiguous
    hp_need = max(H + 2 * pad, (n_row * th - 1) * s + k)   # covers ragged tiles
    wp_need = max(W + 2 * pad, (wo - 1) * s + k)
    hp2 = pl.cdiv(hp_need, s) * s
    wp2 = pl.cdiv(wp_need, s) * s
    xp = jnp.pad(x.astype(jnp.bfloat16),
                 ((0, 0), (pad, hp2 - H - pad), (pad, wp2 - W - pad), (0, 0)))
    if s > 1:
        xp = xp.reshape(B, hp2 // s, s, wp2 // s, s, cin)
        xp = xp.transpose(0, 1, 3, 2, 4, 5).reshape(B, hp2 // s, wp2 // s,
                                                    s * s * cin)
    _, hs, ws, cin_eff = xp.shape

    kernel = functools.partial(_conv_bn_silu_kernel, ksize=k, stride=s, th=th,
                               wo=wo, cin=cin, n_row_tiles=n_row)

    # Rough VMEM budget (double-buffered blocks + slab) -> explicit scoped limit.
    est = 2 * (hs * ws * cin_eff * 2 + k * k * cin * tn * 2 + tn * 4
               + th * wo * tn * 2) + th * wo * k * k * cin * 4
    vmem_limit = int(min(100 * 2**20, max(32 * 2**20, est + (4 << 20))))

    flops = 2 * B * ho * wo * k * k * cin * cout
    bytes_accessed = (B * hs * ws * cin_eff * 2 + k * k * cin * cout * 2
                      + cout * 4 + B * ho * wo * cout * 2)

    out = pl.pallas_call(
        kernel,
        out_shape=jax.ShapeDtypeStruct((B, ho * wo, cout), jnp.bfloat16),
        grid_spec=pltpu.PrefetchScalarGridSpec(
            num_scalar_prefetch=0,
            grid=(B, n_col, n_row),          # row axis innermost: weight block
            in_specs=[                       # re-fetched only when j changes
                pl.BlockSpec((None, hs, ws, cin_eff),
                             lambda b, j, i: (b, 0, 0, 0)),
                pl.BlockSpec((k * k * cin, tn), lambda b, j, i: (0, j)),
                pl.BlockSpec((1, tn), lambda b, j, i: (0, j)),
            ],
            out_specs=pl.BlockSpec((None, th * wo, tn),
                                   lambda b, j, i: (b, i, j)),
            scratch_shapes=[pltpu.VMEM((th, wo, k * k * cin), jnp.float32)],
        ),
        compiler_params=pltpu.CompilerParams(
            dimension_semantics=("parallel", "parallel", "parallel"),
            vmem_limit_bytes=vmem_limit),
        cost_estimate=pl.CostEstimate(flops=flops,
                                      transcendentals=B * ho * wo * cout,
                                      bytes_accessed=bytes_accessed),
    )(xp, w2d, bias.reshape(1, cout))

    return out.reshape(B, ho, wo, cout)


# -----------------------------------------------------------------------------
# BaseConv parameters (PyTorch layout) with eval-mode BN folded at build time
# -----------------------------------------------------------------------------
def make_baseconv_params(key, in_channels, out_channels, ksize, stride=1):
    k1, k2, k3, k4, k5 = jax.random.split(key, 5)
    w = 0.1 * jax.random.normal(k1, (out_channels, in_channels, ksize, ksize),
                                jnp.float32)                       # OIHW
    gamma = 1.0 + 0.1 * jax.random.normal(k2, (out_channels,), jnp.float32)
    beta = 0.1 * jax.random.normal(k3, (out_channels,), jnp.float32)
    mean = 0.1 * jax.random.normal(k4, (out_channels,), jnp.float32)
    var = jax.random.uniform(k5, (out_channels,), jnp.float32, 0.5, 1.5)

    eps = 1e-3                                  # BatchNorm2d(eps=0.001)
    scale = gamma / jnp.sqrt(var + eps)         # eval-mode folding
    bias = beta - mean * scale

    # OIHW -> HWIO -> (k*k*Cin, Cout); fold BN scale; bf16 for the MXU.
    w2d = jnp.transpose(w, (2, 3, 1, 0)).reshape(ksize * ksize * in_channels,
                                                 out_channels)
    w2d = (w2d * scale[None, :]).astype(jnp.bfloat16)
    return {"w2d": w2d, "bias": bias, "ksize": ksize, "stride": stride,
            "in_channels": in_channels, "out_channels": out_channels}


def baseconv_forward(params, x_nchw):
    """Matches BaseConv.forward (Conv2d -> BN -> SiLU); NCHW in/out, bf16 out."""
    # TODO(synk): in a full network keep activations NHWC bf16 between layers so
    #             these transposes / casts (extra HBM passes) disappear.
    x = jnp.transpose(x_nchw, (0, 2, 3, 1))               # NCHW -> NHWC (glue)
    y = conv_bn_silu_nhwc(x, params["w2d"], params["bias"],
                          ksize=params["ksize"], stride=params["stride"])
    return jnp.transpose(y, (0, 3, 1, 2))                 # back to NCHW


# -----------------------------------------------------------------------------
# Pure-JAX reference (same bf16-quantized operands) for correctness checking
# -----------------------------------------------------------------------------
def baseconv_reference(params, x_nchw):
    k, s = params["ksize"], params["stride"]
    cin, cout = params["in_channels"], params["out_channels"]
    pad = (k - 1) // 2
    w_hwio = params["w2d"].astype(jnp.float32).reshape(k, k, cin, cout)
    xq = x_nchw.astype(jnp.bfloat16).astype(jnp.float32)
    x = jnp.transpose(xq, (0, 2, 3, 1))
    y = lax.conv_general_dilated(
        x, w_hwio, window_strides=(s, s), padding=[(pad, pad), (pad, pad)],
        dimension_numbers=("NHWC", "HWIO", "NHWC"),
        preferred_element_type=jnp.float32)
    y = y + params["bias"].reshape(1, 1, 1, cout)
    y = y * jax.nn.sigmoid(y)
    return jnp.transpose(y, (0, 3, 1, 2))


# -----------------------------------------------------------------------------
if __name__ == "__main__":
    root = jax.random.PRNGKey(0)
    kx, kp = jax.random.split(root)

    B, Cin, Cout, H, W = 2, 32, 64, 16, 16
    x = jax.random.normal(kx, (B, Cin, H, W), jnp.float32)       # NCHW

    configs = [(3, 1), (1, 1), (3, 2)]                           # (ksize, stride)
    keys = jax.random.split(kp, len(configs))
    for (ksize, stride), key in zip(configs, keys):
        params = make_baseconv_params(key, Cin, Cout, ksize, stride)
        y = baseconv_forward(params, x)
        y = jax.block_until_ready(y)

        pad = (ksize - 1) // 2
        ho = (H + 2 * pad - ksize) // stride + 1
        wo = (W + 2 * pad - ksize) // stride + 1
        assert y.shape == (B, Cout, ho, wo), (y.shape, (B, Cout, ho, wo))
        yf = y.astype(jnp.float32)
        assert bool(jnp.isfinite(yf).all())

        y_ref = baseconv_reference(params, x)
        diff = jnp.abs(yf - y_ref)
        max_err = float(jnp.max(diff))
        mean_err = float(jnp.mean(diff))
        # bf16 output + approx-reciprocal SiLU -> scale-aware tolerance.
        tol = 1e-2 + 2e-2 * float(jnp.max(jnp.abs(y_ref)))
        assert max_err < tol, (ksize, stride, max_err, tol)
        assert mean_err < 2e-2, (ksize, stride, mean_err)

    print("KERNEL_OK")
</pallas_src>

<mosaic_0001>
module attributes {stable_mosaic.version = 11 : i64} {
  func.func @_conv_bn_silu_kernel(%arg0: i32, %arg1: i32, %arg2: i32, %arg3: memref<1x18x18x32xbf16, #tpu.memory_space<vmem>>, %arg4: memref<288x64xbf16, #tpu.memory_space<vmem>>, %arg5: memref<1x64xf32, #tpu.memory_space<vmem>>, %arg6: memref<1x256x64xbf16, #tpu.memory_space<vmem>>, %arg7: memref<16x16x288xf32, #tpu.memory_space<vmem>>) attributes {dimension_semantics = [#tpu.dimension_semantics<parallel>, #tpu.dimension_semantics<parallel>, #tpu.dimension_semantics<parallel>], iteration_bounds = array<i64: 2, 1, 1>, scalar_prefetch = 0 : i64, scratch_operands = 1 : i64, tpu.core_type = #tpu.core_type<tc>, window_params = [{transform_indices = @transform_0, window_bounds = array<i64: 1, 18, 18, 32>}, {transform_indices = @transform_1, window_bounds = array<i64: 288, 64>}, {transform_indices = @transform_2, window_bounds = array<i64: 1, 64>}, {transform_indices = @transform_3, window_bounds = array<i64: 1, 256, 64>}]} {
    %c0 = arith.constant 0 : index
    %c0_0 = arith.constant 0 : index
    %c0_1 = arith.constant 0 : index
    %c0_2 = arith.constant 0 : index
    %0 = vector.load %arg3[%c0, %c0_0, %c0_1, %c0_2] : memref<1x18x18x32xbf16, #tpu.memory_space<vmem>>, vector<1x16x16x32xbf16>
    %1 = vector.shape_cast %0 : vector<1x16x16x32xbf16> to vector<16x16x32xbf16>
    %2 = arith.extf %1 : vector<16x16x32xbf16> to vector<16x16x32xf32>
    %c0_3 = arith.constant 0 : index
    %c0_4 = arith.constant 0 : index
    %c0_5 = arith.constant 0 : index
    %3 = vector.load %arg7[%c0_3, %c0_4, %c0_5] : memref<16x16x288xf32, #tpu.memory_space<vmem>>, vector<16x16x32xf32>
    tpu.vector_store %arg7[%c0_3, %c0_4, %c0_5], %2 {strides = array<i32>} : memref<16x16x288xf32, #tpu.memory_space<vmem>>, vector<16x16x32xf32>,
    %c0_6 = arith.constant 0 : index
    %c0_7 = arith.constant 0 : index
    %c1 = arith.constant 1 : index
    %c0_8 = arith.constant 0 : index
    %4 = vector.load %arg3[%c0_6, %c0_7, %c1, %c0_8] : memref<1x18x18x32xbf16, #tpu.memory_space<vmem>>, vector<1x16x16x32xbf16>
    %5 = vector.shape_cast %4 : vector<1x16x16x32xbf16> to vector<16x16x32xbf16>
    %6 = arith.extf %5 : vector<16x16x32xbf16> to vector<16x16x32xf32>
    %c0_9 = arith.constant 0 : index
    %c0_10 = arith.constant 0 : index
    %c32 = arith.constant 32 : index
    %7 = vector.load %arg7[%c0_9, %c0_10, %c32] : memref<16x16x288xf32, #tpu.memory_space<vmem>>, vector<16x16x32xf32>
    tpu.vector_store %arg7[%c0_9, %c0_10, %c32], %6 {strides = array<i32>} : memref<16x16x288xf32, #tpu.memory_space<vmem>>, vector<16x16x32xf32>,
    %c0_11 = arith.constant 0 : index
    %c0_12 = arith.constant 0 : index
    %c2 = arith.constant 2 : index
    %c0_13 = arith.constant 0 : index
    %8 = vector.load %arg3[%c0_11, %c0_12, %c2, %c0_13] : memref<1x18x18x32xbf16, #tpu.memory_space<vmem>>, vector<1x16x16x32xbf16>
    %9 = vector.shape_cast %8 : vector<1x16x16x32xbf16> to vector<16x16x32xbf16>
    %10 = arith.extf %9 : vector<16x16x32xbf16> to vector<16x16x32xf32>
    %c0_14 = arith.constant 0 : index
    %c0_15 = arith.constant 0 : index
    %c64 = arith.constant 64 : index
    %11 = vector.load %arg7[%c0_14, %c0_15, %c64] : memref<16x16x288xf32, #tpu.memory_space<vmem>>, vector<16x16x32xf32>
    tpu.vector_store %arg7[%c0_14, %c0_15, %c64], %10 {strides = array<i32>} : memref<16x16x288xf32, #tpu.memory_space<vmem>>, vector<16x16x32xf32>,
    %c0_16 = arith.constant 0 : index
    %c1_17 = arith.constant 1 : index
    %c0_18 = arith.constant 0 : index
    %c0_19 = arith.constant 0 : index
    %12 = vector.load %arg3[%c0_16, %c1_17, %c0_18, %c0_19] : memref<1x18x18x32xbf16, #tpu.memory_space<vmem>>, vector<1x16x16x32xbf16>
    %13 = vector.shape_cast %12 : vector<1x16x16x32xbf16> to vector<16x16x32xbf16>
    %14 = arith.extf %13 : vector<16x16x32xbf16> to vector<16x16x32xf32>
    %c0_20 = arith.constant 0 : index
    %c0_21 = arith.constant 0 : index
    %c96 = arith.constant 96 : index
    %15 = vector.load %arg7[%c0_20, %c0_21, %c96] : memref<16x16x288xf32, #tpu.memory_space<vmem>>, vector<16x16x32xf32>
    tpu.vector_store %arg7[%c0_20, %c0_21, %c96], %14 {strides = array<i32>} : memref<16x16x288xf32, #tpu.memory_space<vmem>>, vector<16x16x32xf32>,
    %c0_22 = arith.constant 0 : index
    %c1_23 = arith.constant 1 : index
    %c1_24 = arith.constant 1 : index
    %c0_25 = arith.constant 0 : index
    %16 = vector.load %arg3[%c0_22, %c1_23, %c1_24, %c0_25] : memref<1x18x18x32xbf16, #tpu.memory_space<vmem>>, vector<1x16x16x32xbf16>
    %17 = vector.shape_cast %16 : vector<1x16x16x32xbf16> to vector<16x16x32xbf16>
    %18 = arith.extf %17 : vector<16x16x32xbf16> to vector<16x16x32xf32>
    %c0_26 = arith.constant 0 : index
    %c0_27 = arith.constant 0 : index
    %c128 = arith.constant 128 : index
    %19 = vector.load %arg7[%c0_26, %c0_27, %c128] : memref<16x16x288xf32, #tpu.memory_space<vmem>>, vector<16x16x32xf32>
    tpu.vector_store %arg7[%c0_26, %c0_27, %c128], %18 {strides = array<i32>} : memref<16x16x288xf32, #tpu.memory_space<vmem>>, vector<16x16x32xf32>,
    %c0_28 = arith.constant 0 : index
    %c1_29 = arith.constant 1 : index
    %c2_30 = arith.constant 2 : index
    %c0_31 = arith.constant 0 : index
    %20 = vector.load %arg3[%c0_28, %c1_29, %c2_30, %c0_31] : memref<1x18x18x32xbf16, #tpu.memory_space<vmem>>, vector<1x16x16x32xbf16>
    %21 = vector.shape_cast %20 : vector<1x16x16x32xbf16> to vector<16x16x32xbf16>
    %22 = arith.extf %21 : vector<16x16x32xbf16> to vector<16x16x32xf32>
    %c0_32 = arith.constant 0 : index
    %c0_33 = arith.constant 0 : index
    %c160 = arith.constant 160 : index
    %23 = vector.load %arg7[%c0_32, %c0_33, %c160] : memref<16x16x288xf32, #tpu.memory_space<vmem>>, vector<16x16x32xf32>
    tpu.vector_store %arg7[%c0_32, %c0_33, %c160], %22 {strides = array<i32>} : memref<16x16x288xf32, #tpu.memory_space<vmem>>, vector<16x16x32xf32>,
    %c0_34 = arith.constant 0 : index
    %c2_35 = arith.constant 2 : index
    %c0_36 = arith.constant 0 : index
    %c0_37 = arith.constant 0 : index
    %24 = vector.load %arg3[%c0_34, %c2_35, %c0_36, %c0_37] : memref<1x18x18x32xbf16, #tpu.memory_space<vmem>>, vector<1x16x16x32xbf16>
    %25 = vector.shape_cast %24 : vector<1x16x16x32xbf16> to vector<16x16x32xbf16>
    %26 = arith.extf %25 : vector<16x16x32xbf16> to vector<16x16x32xf32>
    %c0_38 = arith.constant 0 : index
    %c0_39 = arith.constant 0 : index
    %c192 = arith.constant 192 : index
    %27 = vector.load %arg7[%c0_38, %c0_39, %c192] : memref<16x16x288xf32, #tpu.memory_space<vmem>>, vector<16x16x32xf32>
    tpu.vector_store %arg7[%c0_38, %c0_39, %c192], %26 {strides = array<i32>} : memref<16x16x288xf32, #tpu.memory_space<vmem>>, vector<16x16x32xf32>,
    %c0_40 = arith.constant 0 : index
    %c2_41 = arith.constant 2 : index
    %c1_42 = arith.constant 1 : index
    %c0_43 = arith.constant 0 : index
    %28 = vector.load %arg3[%c0_40, %c2_41, %c1_42, %c0_43] : memref<1x18x18x32xbf16, #tpu.memory_space<vmem>>, vector<1x16x16x32xbf16>
    %29 = vector.shape_cast %28 : vector<1x16x16x32xbf16> to vector<16x16x32xbf16>
    %30 = arith.extf %29 : vector<16x16x32xbf16> to vector<16x16x32xf32>
    %c0_44 = arith.constant 0 : index
    %c0_45 = arith.constant 0 : index
    %c224 = arith.constant 224 : index
    %31 = vector.load %arg7[%c0_44, %c0_45, %c224] : memref<16x16x288xf32, #tpu.memory_space<vmem>>, vector<16x16x32xf32>
    tpu.vector_store %arg7[%c0_44, %c0_45, %c224], %30 {strides = array<i32>} : memref<16x16x288xf32, #tpu.memory_space<vmem>>, vector<16x16x32xf32>,
    %c0_46 = arith.constant 0 : index
    %c2_47 = arith.constant 2 : index
    %c2_48 = arith.constant 2 : index
    %c0_49 = arith.constant 0 : index
    %32 = vector.load %arg3[%c0_46, %c2_47, %c2_48, %c0_49] : memref<1x18x18x32xbf16, #tpu.memory_space<vmem>>, vector<1x16x16x32xbf16>
    %33 = vector.shape_cast %32 : vector<1x16x16x32xbf16> to vector<16x16x32xbf16>
    %34 = arith.extf %33 : vector<16x16x32xbf16> to vector<16x16x32xf32>
    %c0_50 = arith.constant 0 : index
    %c0_51 = arith.constant 0 : index
    %c256 = arith.constant 256 : index
    %35 = vector.load %arg7[%c0_50, %c0_51, %c256] : memref<16x16x288xf32, #tpu.memory_space<vmem>>, vector<16x16x32xf32>
    tpu.vector_store %arg7[%c0_50, %c0_51, %c256], %34 {strides = array<i32>} : memref<16x16x288xf32, #tpu.memory_space<vmem>>, vector<16x16x32xf32>,
    %c0_52 = arith.constant 0 : index
    %c0_53 = arith.constant 0 : index
    %c0_54 = arith.constant 0 : index
    %36 = vector.load %arg7[%c0_52, %c0_53, %c0_54] : memref<16x16x288xf32, #tpu.memory_space<vmem>>, vector<16x16x288xf32>
    %37 = vector.shape_cast %36 : vector<16x16x288xf32> to vector<256x288xf32>
    %38 = arith.truncf %37 : vector<256x288xf32> to vector<256x288xbf16>
    %c0_55 = arith.constant 0 : index
    %c0_56 = arith.constant 0 : index
    %39 = vector.load %arg4[%c0_55, %c0_56] : memref<288x64xbf16, #tpu.memory_space<vmem>>, vector<288x64xbf16>
    %cst = arith.constant dense<0.000000e+00> : vector<256x64xf32>
    %40 = tpu.matmul %38, %39, %cst {dimension_numbers = #tpu.dot_dimension_numbers<[1], [0], [0], [1], [0, 0, 1, 1], [], []>} : vector<256x288xbf16>, vector<288x64xbf16>, vector<256x64xf32> -> vector<256x64xf32>
    %c0_57 = arith.constant 0 : index
    %c0_58 = arith.constant 0 : index
    %41 = vector.load %arg5[%c0_57, %c0_58] : memref<1x64xf32, #tpu.memory_space<vmem>>, vector<1x64xf32>
    %42 = vector.broadcast %41 : vector<1x64xf32> to vector<256x64xf32>
    %43 = arith.addf %40, %42 : vector<256x64xf32>
    %cst_59 = arith.constant 0.000000e+00 : f32
    %44 = vector.broadcast %cst_59 : f32 to vector<256x64xf32>
    %45 = arith.subf %44, %43 : vector<256x64xf32>
    %46 = math.exp %45 : vector<256x64xf32>
    %cst_60 = arith.constant 1.000000e+00 : f32
    %47 = vector.broadcast %cst_60 : f32 to vector<256x64xf32>
    %48 = arith.addf %47, %46 : vector<256x64xf32>
    %49 = tpu.reciprocal %48 {approx = true} : vector<256x64xf32> -> vector<256x64xf32>
    %50 = arith.mulf %43, %49 : vector<256x64xf32>
    %51 = arith.truncf %50 : vector<256x64xf32> to vector<256x64xbf16>
    %c0_61 = arith.constant 0 : index
    %c0_62 = arith.constant 0 : index
    %c0_63 = arith.constant 0 : index
    %52 = vector.load %arg6[%c0_61, %c0_62, %c0_63] : memref<1x256x64xbf16, #tpu.memory_space<vmem>>, vector<1x256x64xbf16>
    %53 = vector.shape_cast %52 : vector<1x256x64xbf16> to vector<256x64xbf16>
    %54 = vector.shape_cast %51 : vector<256x64xbf16> to vector<1x256x64xbf16>
    tpu.vector_store %arg6[%c0_61, %c0_62, %c0_63], %54 {strides = array<i32>} : memref<1x256x64xbf16, #tpu.memory_space<vmem>>, vector<1x256x64xbf16>,
    return
  }
  func.func @transform_0(%arg0: i32, %arg1: i32, %arg2: i32) -> (i32, i32, i32, i32) {
    %c0_i32 = arith.constant 0 : i32
    %c0_i32_0 = arith.constant 0 : i32
    %c0_i32_1 = arith.constant 0 : i32
    %c0_i32_2 = arith.constant 0 : i32
    return %arg0, %c0_i32, %c0_i32_0, %c0_i32_1 : i32, i32, i32, i32
  }
  func.func @transform_1(%arg0: i32, %arg1: i32, %arg2: i32) -> (i32, i32) {
    %c0_i32 = arith.constant 0 : i32
    %c0_i32_0 = arith.constant 0 : i32
    return %c0_i32, %arg1 : i32, i32
  }
  func.func @transform_2(%arg0: i32, %arg1: i32, %arg2: i32) -> (i32, i32) {
    %c0_i32 = arith.constant 0 : i32
    %c0_i32_0 = arith.constant 0 : i32
    return %c0_i32, %arg1 : i32, i32
  }
  func.func @transform_3(%arg0: i32, %arg1: i32, %arg2: i32) -> (i32, i32, i32) {
    %c0_i32 = arith.constant 0 : i32
    return %arg0, %arg2, %arg1 : i32, i32, i32
  }
}

</mosaic_0001>

<llo_original>
// kernel: tpu_custom_call.1
$region0: #{tpu_custom_call.1}
  #allocation0 [shape = 'u32[]', space=smem, size = 0x4, offset = 0x4, fixed_abs, tag = 'smem constant byte address 0x4 - core index']
  #allocation1 [shape = 'u32[144,128]{1,0:T(1,128)}', space=vmem, size = 0x12000, scoped, tag = 'internal scratch']
  #allocation2 [shape = 'f32[16,16,288]{2,1,0:T(8,128)}', space=vmem, size = 0x60000, scoped, tag = 'scratch operand']
  %s0 = inlined_call_operand.vmem [shape: bf16[2,18,18,32], index: 0, kind: input, shape index: {}]
  %s1 = inlined_call_operand.vmem [shape: bf16[288,64], index: 1, kind: input, shape index: {}]
  %s2 = inlined_call_operand.vmem [shape: f32[1,64], index: 2, kind: input, shape index: {}]
  %s3 = inlined_call_operand.vmem [shape: bf16[2,256,64], index: 3, kind: output, shape index: {}]
  %s4 = sld [smem:[#allocation0]]
  $region45: #{tpu_custom_call.1} parent=0
    _
  %s6 = ssub.s32 1, %s4
  %s7 = scalar_select 0, %s6, %s4
  loop: start=0, step=1, limit=4
  $region2: #{tpu_custom_call.1} parent=0 // loop_pre_header
    _
  $region3: #{tpu_custom_call.1} parent=0 // loop_header
    %s9 = sphi 0, %s13
    %p10 = scmp.ge.s32.totalorder %s9, 4
    %s16 = sphi 0, %s35
    %s17 = sphi 0, %s31
    %s18 = sphi 0, %s27
    %s19 = sphi 0, %s16
    %s20 = sphi 0, %s17
    %s21 = sphi 0, %s18
    %s22 = sphi 0, %s19
    %s23 = sphi 0, %s20
    %s24 = sphi 0, %s21
    %s38 = sphi 0, %s40
    %s41 = sphi 0, %s38
    %s42 = sphi 0, %s41
    %s58 = sphi 0, %s42
    %s64 = sphi 0, %s66
    %s67 = sphi 0, %s64
    %s68 = sphi 0, %s67
    %s84 = sphi 0, %s68
    %s90 = sphi 0, %s92
    %s93 = sphi 0, %s90
    %s94 = sphi 0, %s93
    %s110 = sphi 0, %s94
    %s120 = sphi 0, %s122
    %s123 = sphi 0, %s120
    %s124 = sphi 0, %s123
    %s140 = sphi 0, %s124
  $region4: #{tpu_custom_call.1} parent=0 // loop_header_branch
    %12 = sbr.rel (%p10) target = $region8
  $region5: #{tpu_custom_call.1} parent=0 // loop_body
    %s14 = ssub.s32 %s9, 1
    %s15 = ssub.s32 %s9, 2
    %s25 = sadd.s32 1, %s18
    %p26 = scmp.ge.s32.totalorder %s25, 1
    %s27 = scalar_select %p26, 0, %s25
    %s28 = sadd.s32 1, %s17
    %s29 = scalar_select %p26, %s28, %s17
    %p30 = scmp.ge.s32.totalorder %s29, 1
    %s31 = scalar_select %p30, 0, %s29
    %s32 = sadd.s32 1, %s16
    %s33 = scalar_select %p30, %s32, %s16
    %p34 = scmp.ge.s32.totalorder %s33, 2
    %s35 = scalar_select %p34, 0, %s33
    %s36 = ssub.s32 %s16, %s35
    %p37 = scmp.eq.s32.totalorder %s36, 0
    %s39 = sadd.s32 %s38, 1
    %s40 = scalar_select %p37, %s38, %s39
    %p43 = pneg %p37
    %p44 = scmp.eq.s32.totalorder %s9, 1
    %p45 = por %p43, %p44
    %p46 = scmp.ne.s32.totalorder %s38, %s41
    %p47 = scmp.eq.s32.totalorder %s9, 0
    %p48 = por %p46, %p47
    %p49 = scmp.ne.s32.totalorder %s38, %s41
    %p50 = scmp.eq.s32.totalorder %s14, 1
    %p51 = por %p49, %p50
    %p52 = scmp.ne.s32.totalorder %s41, %s42
    %p53 = scmp.eq.s32.totalorder %s14, 0
    %p54 = por %p52, %p53
    %p55 = scmp.ne.s32.totalorder %s41, %s42
    %p56 = scmp.eq.s32.totalorder %s15, 1
    %p57 = por %p55, %p56
    %p59 = scmp.ne.s32.totalorder %s42, %s58
    %p60 = scmp.eq.s32.totalorder %s15, 0
    %p61 = por %p59, %p60
    %s62 = ssub.s32 %s17, %s31
    %p63 = scmp.eq.s32.totalorder %s62, 0
    %s65 = sadd.s32 %s64, 1
    %s66 = scalar_select %p63, %s64, %s65
    %p69 = pneg %p63
    %p70 = scmp.eq.s32.totalorder %s9, 1
    %p71 = por %p69, %p70
    %p72 = scmp.ne.s32.totalorder %s64, %s67
    %p73 = scmp.eq.s32.totalorder %s9, 0
    %p74 = por %p72, %p73
    %p75 = scmp.ne.s32.totalorder %s64, %s67
    %p76 = scmp.eq.s32.totalorder %s14, 1
    %p77 = por %p75, %p76
    %p78 = scmp.ne.s32.totalorder %s67, %s68
    %p79 = scmp.eq.s32.totalorder %s14, 0
    %p80 = por %p78, %p79
    %p81 = scmp.ne.s32.totalorder %s67, %s68
    %p82 = scmp.eq.s32.totalorder %s15, 1
    %p83 = por %p81, %p82
    %p85 = scmp.ne.s32.totalorder %s68, %s84
    %p86 = scmp.eq.s32.totalorder %s15, 0
    %p87 = por %p85, %p86
    %s88 = ssub.s32 %s17, %s31
    %p89 = scmp.eq.s32.totalorder %s88, 0
    %s91 = sadd.s32 %s90, 1
    %s92 = scalar_select %p89, %s90, %s91
    %p95 = pneg %p89
    %p96 = scmp.eq.s32.totalorder %s9, 1
    %p97 = por %p95, %p96
    %p98 = scmp.ne.s32.totalorder %s90, %s93
    %p99 = scmp.eq.s32.totalorder %s9, 0
    %p100 = por %p98, %p99
    %p101 = scmp.ne.s32.totalorder %s90, %s93
    %p102 = scmp.eq.s32.totalorder %s14, 1
    %p103 = por %p101, %p102
    %p104 = scmp.ne.s32.totalorder %s93, %s94
    %p105 = scmp.eq.s32.totalorder %s14, 0
    %p106 = por %p104, %p105
    %p107 = scmp.ne.s32.totalorder %s93, %s94
    %p108 = scmp.eq.s32.totalorder %s15, 1
    %p109 = por %p107, %p108
    %p111 = scmp.ne.s32.totalorder %s94, %s110
    %p112 = scmp.eq.s32.totalorder %s15, 0
    %p113 = por %p111, %p112
    %s114 = ssub.s32 %s16, %s35
    %s115 = ssub.s32 %s18, %s27
    %s116 = sor.u32 %s114, %s115
    %s117 = ssub.s32 %s17, %s31
    %s118 = sor.u32 %s116, %s117
    %p119 = scmp.eq.s32.totalorder %s118, 0
    %s121 = sadd.s32 %s120, 1
    %s122 = scalar_select %p119, %s120, %s121
    %p125 = pneg %p119
    %p126 = scmp.eq.s32.totalorder %s9, 1
    %p127 = por %p125, %p126
    %p128 = scmp.ne.s32.totalorder %s120, %s123
    %p129 = scmp.eq.s32.totalorder %s9, 0
    %p130 = por %p128, %p129
    %p131 = scmp.ne.s32.totalorder %s120, %s123
    %p132 = scmp.eq.s32.totalorder %s14, 1
    %p133 = por %p131, %p132
    %p134 = scmp.ne.s32.totalorder %s123, %s124
    %p135 = scmp.eq.s32.totalorder %s14, 0
    %p136 = por %p134, %p135
    %p137 = scmp.ne.s32.totalorder %s123, %s124
    %p138 = scmp.eq.s32.totalorder %s15, 1
    %p139 = por %p137, %p138
    %p141 = scmp.ne.s32.totalorder %s124, %s140
    %p142 = scmp.eq.s32.totalorder %s15, 0
    %p143 = por %p141, %p142
    %p144 = scmp.le.s32.totalorder 1, %s9
    %p145 = scmp.lt.s32.totalorder %s9, 3
    %p146 = pnand %p144, %p145
    %p147 = pneg %p146
    // Predicated region
    $region9: #{tpu_custom_call.1} parent=5 // pred_check
      _
    $region10: #{tpu_custom_call.1} parent=5 // pred_check_branch
      %149 = sbr.rel (%p146) target = $region12
    $region11: #{tpu_custom_call.1} parent=5 // pred_region
      %s150 = ssub.s32 %s9, 1
      // Predicated region
      $region13: #{tpu_custom_call.1} parent=11 // pred_check
        %p151 = pneg %p80
      $region14: #{tpu_custom_call.1} parent=11 // pred_check_branch
        %153 = sbr.rel (%p151) target = $region16
      $region15: #{tpu_custom_call.1} parent=11 // pred_region
        %p154 = scmp.lt.s32.totalorder %s20, 0
        %s155 = scalar_select %p154, %s20, 0
        %s156 = smul.addr %s155, 4
        %s157 = scalar_lea.vmem %s1, %s156
      $region16: #{tpu_custom_call.1} parent=11 // pred_fallthru
        _
      // Predicated region
      $region17: #{tpu_custom_call.1} parent=11 // pred_check
        %p158 = pneg %p106
      $region18: #{tpu_custom_call.1} parent=11 // pred_check_branch
        %160 = sbr.rel (%p158) target = $region20
      $region19: #{tpu_custom_call.1} parent=11 // pred_region
        %p161 = scmp.lt.s32.totalorder %s20, 0
        %s162 = scalar_select %p161, %s20, 0
        %s163 = scalar_lea.vmem %s2, %s162
      $region20: #{tpu_custom_call.1} parent=11 // pred_fallthru
        _
    $region12: #{tpu_custom_call.1} parent=5 // pred_fallthru
      _
    %p164 = scmp.lt.s32.totalorder %s9, 2
    // Predicated region
    $region21: #{tpu_custom_call.1} parent=5 // pred_check
      %p165 = pneg %p164
    $region22: #{tpu_custom_call.1} parent=5 // pred_check_branch
      %167 = sbr.rel (%p165) target = $region24
    $region23: #{tpu_custom_call.1} parent=5 // pred_region
      // Predicated region
      $region25: #{tpu_custom_call.1} parent=23 // pred_check
        %p168 = pneg %p48
      $region26: #{tpu_custom_call.1} parent=23 // pred_check_branch
        %170 = sbr.rel (%p168) target = $region28
      $region27: #{tpu_custom_call.1} parent=23 // pred_region
        %p171 = scmp.lt.s32.totalorder %s16, 1
        %s172 = scalar_select %p171, %s16, 1
        %s173 = smul.addr %s172, 54
        %s174 = smul.addr %s173, 4
        %s175 = scalar_lea.vmem %s0, %s174
      $region28: #{tpu_custom_call.1} parent=23 // pred_fallthru
        _
    $region24: #{tpu_custom_call.1} parent=5 // pred_fallthru
      _
    %p176 = scmp.le.s32.totalorder 1, %s9
    %p177 = scmp.lt.s32.totalorder %s9, 3
    %p178 = pnand %p176, %p177
    %p179 = pneg %p178
    // Predicated region
    $region29: #{tpu_custom_call.1} parent=5 // pred_check
      _
    $region30: #{tpu_custom_call.1} parent=5 // pred_check_branch
      %181 = sbr.rel (%p178) target = $region32
    $region31: #{tpu_custom_call.1} parent=5 // pred_region
      %s182 = ssub.s32 %s9, 1
      %p183 = scmp.lt.s32.totalorder %s19, 1
      %s184 = scalar_select %p183, %s19, 1
      %s185 = smul.addr %s184, 54
      %s186 = smul.addr %s185, 4
      %s187 = scalar_lea.vmem %s0, %s186
      %p188 = pneg %p54
      %p189 = pneg %p51
      %p190 = scmp.lt.s32.totalorder %s20, 0
      %s191 = scalar_select %p190, %s20, 0
      %s192 = smul.addr %s191, 4
      %s193 = scalar_lea.vmem %s1, %s192
      %p194 = pneg %p80
      %p195 = pneg %p77
      %p196 = scmp.lt.s32.totalorder %s20, 0
      %s197 = scalar_select %p196, %s20, 0
      %s198 = scalar_lea.vmem %s2, %s197
      %p199 = pneg %p106
      %p200 = pneg %p103
      %p201 = pneg %p136
      %p202 = pneg %p133
      %s203 = smul.u32 32, %s21
      %p204 = scmp.lt.s32.totalorder %s19, 1
      %s205 = scalar_select %p204, %s19, 1
      %p206 = scmp.lt.s32.totalorder %s203, 31
      %s207 = scalar_select %p206, %s203, 31
      %p208 = scmp.lt.s32.totalorder %s20, 0
      %s209 = scalar_select %p208, %s20, 0
      %s210 = sadd.s32 %s209, %s207
      %s211 = smul.addr %s205, 32
      %s212 = sadd.s32 %s210, %s211
      %s213 = smul.addr %s212, 4
      %s214 = scalar_lea.vmem %s3, %s213
      %p215 = scmp.lt.s32.totalorder %s19, 1
      %s216 = scalar_select %p215, %s19, 1
      %s217 = smul.addr %s216, 54
      %s218 = smul.addr %s217, 4
      %s219 = scalar_lea.vmem %s0, %s218
      %p220 = scmp.lt.s32.totalorder %s20, 0
      %s221 = scalar_select %p220, %s20, 0
      %s222 = smul.addr %s221, 4
      %s223 = scalar_lea.vmem %s1, %s222
      %p224 = scmp.lt.s32.totalorder %s20, 0
      %s225 = scalar_select %p224, %s20, 0
      %s226 = scalar_lea.vmem %s2, %s225
      %s227 = smul.u32 32, %s21
      %p228 = scmp.lt.s32.totalorder %s19, 1
      %s229 = scalar_select %p228, %s19, 1
      %p230 = scmp.lt.s32.totalorder %s227, 31
      %s231 = scalar_select %p230, %s227, 31
      %p232 = scmp.lt.s32.totalorder %s20, 0
      %s233 = scalar_select %p232, %s20, 0
      %s234 = sadd.s32 %s233, %s231
      %s235 = smul.addr %s229, 32
      %s236 = sadd.s32 %s234, %s235
      %s237 = smul.addr %s236, 4
      %s238 = scalar_lea.vmem %s3, %s237
      %s239 = smul.u32 32, %s21
      %v241 = vld [vmem:[%s219] sm:$0xf]
      %v242 = vld [vmem:[%s219 + $0x4] sm:$0xf]
      %v243 = vld [vmem:[%s219 + $0xc] sm:$0xf]
      %v244 = vld [vmem:[%s219 + $0x10] sm:$0xf]
      %v245 = vld [vmem:[%s219 + $0x18] sm:$0xf]
      %v246 = vld [vmem:[%s219 + $0x1c] sm:$0xf]
      %v247 = vld [vmem:[%s219 + $0x24] sm:$0xf]
      %v248 = vld [vmem:[%s219 + $0x28] sm:$0xf]
      %v249 = vld [vmem:[%s219 + $0x30] sm:$0xf]
      %v250 = vld [vmem:[%s219 + $0x34] sm:$0xf]
      %v251 = vld [vmem:[%s219 + $0x3c] sm:$0xf]
      %v252 = vld [vmem:[%s219 + $0x40] sm:$0xf]
      %v253 = vld [vmem:[%s219 + $0x48] sm:$0xf]
      %v254 = vld [vmem:[%s219 + $0x4c] sm:$0xf]
      %v255 = vld [vmem:[%s219 + $0x54] sm:$0xf]
      %v256 = vld [vmem:[%s219 + $0x58] sm:$0xf]
      %v257 = vld [vmem:[%s219 + $0x60] sm:$0xf]
      %v258 = vld [vmem:[%s219 + $0x64] sm:$0xf]
      %v259 = vld [vmem:[%s219 + $0x6c] sm:$0xf]
      %v260 = vld [vmem:[%s219 + $0x70] sm:$0xf]
      %v261 = vld [vmem:[%s219 + $0x78] sm:$0xf]
      %v262 = vld [vmem:[%s219 + $0x7c] sm:$0xf]
      %v263 = vld [vmem:[%s219 + $0x84] sm:$0xf]
      %v264 = vld [vmem:[%s219 + $0x88] sm:$0xf]
      %v265 = vld [vmem:[%s219 + $0x90] sm:$0xf]
      %v266 = vld [vmem:[%s219 + $0x94] sm:$0xf]
      %v267 = vld [vmem:[%s219 + $0x9c] sm:$0xf]
      %v268 = vld [vmem:[%s219 + $0xa0] sm:$0xf]
      %v269 = vld [vmem:[%s219 + $0xa8] sm:$0xf]
      %v270 = vld [vmem:[%s219 + $0xac] sm:$0xf]
      %v271 = vld [vmem:[%s219 + $0xb4] sm:$0xf]
      %v272 = vld [vmem:[%s219 + $0xb8] sm:$0xf]
      %v273 = vunpack.c.l.bf16 %v241
      %v274 = vunpack.c.l.bf16 %v242
      %v275 = vunpack.c.l.bf16 %v243
      %v276 = vunpack.c.l.bf16 %v244
      %v277 = vunpack.c.l.bf16 %v245
      %v278 = vunpack.c.l.bf16 %v246
      %v279 = vunpack.c.l.bf16 %v247
      %v280 = vunpack.c.l.bf16 %v248
      %v281 = vunpack.c.l.bf16 %v249
      %v282 = vunpack.c.l.bf16 %v250
      %v283 = vunpack.c.l.bf16 %v251
      %v284 = vunpack.c.l.bf16 %v252
      %v285 = vunpack.c.l.bf16 %v253
      %v286 = vunpack.c.l.bf16 %v254
      %v287 = vunpack.c.l.bf16 %v255
      %v288 = vunpack.c.l.bf16 %v256
      %v289 = vunpack.c.l.bf16 %v257
      %v290 = vunpack.c.l.bf16 %v258
      %v291 = vunpack.c.l.bf16 %v259
      %v292 = vunpack.c.l.bf16 %v260
      %v293 = vunpack.c.l.bf16 %v261
      %v294 = vunpack.c.l.bf16 %v262
      %v295 = vunpack.c.l.bf16 %v263
      %v296 = vunpack.c.l.bf16 %v264
      %v297 = vunpack.c.l.bf16 %v265
      %v298 = vunpack.c.l.bf16 %v266
      %v299 = vunpack.c.l.bf16 %v267
      %v300 = vunpack.c.l.bf16 %v268
      %v301 = vunpack.c.l.bf16 %v269
      %v302 = vunpack.c.l.bf16 %v270
      %v303 = vunpack.c.l.bf16 %v271
      %v304 = vunpack.c.l.bf16 %v272
      %vm305 = vcmask 261120
      %306 = vst.msk [vmem:[#allocation2] sm:$0xff] %vm305, %v273
      %307 = vst.msk [vmem:[#allocation2 + $0x18] sm:$0xff] %vm305, %v274
      %308 = vst.msk [vmem:[#allocation2 + $0x30] sm:$0xff] %vm305, %v275
      %309 = vst.msk [vmem:[#allocation2 + $0x48] sm:$0xff] %vm305, %v276
      %310 = vst.msk [vmem:[#allocation2 + $0x60] sm:$0xff] %vm305, %v277
      %311 = vst.msk [vmem:[#allocation2 + $0x78] sm:$0xff] %vm305, %v278
      %312 = vst.msk [vmem:[#allocation2 + $0x90] sm:$0xff] %vm305, %v279
      %313 = vst.msk [vmem:[#allocation2 + $0xa8] sm:$0xff] %vm305, %v280
      %314 = vst.msk [vmem:[#allocation2 + $0xc0] sm:$0xff] %vm305, %v281
      %315 = vst.msk [vmem:[#allocation2 + $0xd8] sm:$0xff] %vm305, %v282
      %316 = vst.msk [vmem:[#allocation2 + $0xf0] sm:$0xff] %vm305, %v283
      %317 = vst.msk [vmem:[#allocation2 + $0x108] sm:$0xff] %vm305, %v284
      %318 = vst.msk [vmem:[#allocation2 + $0x120] sm:$0xff] %vm305, %v285
      %319 = vst.msk [vmem:[#allocation2 + $0x138] sm:$0xff] %vm305, %v286
      %320 = vst.msk [vmem:[#allocation2 + $0x150] sm:$0xff] %vm305, %v287
      %321 = vst.msk [vmem:[#allocation2 + $0x168] sm:$0xff] %vm305, %v288
      %322 = vst.msk [vmem:[#allocation2 + $0x180] sm:$0xff] %vm305, %v289
      %323 = vst.msk [vmem:[#allocation2 + $0x198] sm:$0xff] %vm305, %v290
      %324 = vst.msk [vmem:[#allocation2 + $0x1b0] sm:$0xff] %vm305, %v291
      %325 = vst.msk [vmem:[#allocation2 + $0x1c8] sm:$0xff] %vm305, %v292
      %326 = vst.msk [vmem:[#allocation2 + $0x1e0] sm:$0xff] %vm305, %v293
      %327 = vst.msk [vmem:[#allocation2 + $0x1f8] sm:$0xff] %vm305, %v294
      %328 = vst.msk [vmem:[#allocation2 + $0x210] sm:$0xff] %vm305, %v295
      %329 = vst.msk [vmem:[#allocation2 + $0x228] sm:$0xff] %vm305, %v296
      %330 = vst.msk [vmem:[#allocation2 + $0x240] sm:$0xff] %vm305, %v297
      %331 = vst.msk [vmem:[#allocation2 + $0x258] sm:$0xff] %vm305, %v298
      %332 = vst.msk [vmem:[#allocation2 + $0x270] sm:$0xff] %vm305, %v299
      %333 = vst.msk [vmem:[#allocation2 + $0x288] sm:$0xff] %vm305, %v300
      %334 = vst.msk [vmem:[#allocation2 + $0x2a0] sm:$0xff] %vm305, %v301
      %335 = vst.msk [vmem:[#allocation2 + $0x2b8] sm:$0xff] %vm305, %v302
      %336 = vst.msk [vmem:[#allocation2 + $0x2d0] sm:$0xff] %vm305, %v303
      %337 = vst.msk [vmem:[#allocation2 + $0x2e8] sm:$0xff] %vm305, %v304
      %v338 = vld [vmem:[%s219] sm:$0xf]
      %v339 = vld [vmem:[%s219 + $0x4] sm:$0xf]
      %v340 = vld [vmem:[%s219 + $0x8] sm:$0x1]
      %v341 = vld [vmem:[%s219 + $0xc] sm:$0xf]
      %v342 = vld [vmem:[%s219 + $0x10] sm:$0xf]
      %v343 = vld [vmem:[%s219 + $0x14] sm:$0x1]
      %v344 = vld [vmem:[%s219 + $0x18] sm:$0xf]
      %v345 = vld [vmem:[%s219 + $0x1c] sm:$0xf]
      %v346 = vld [vmem:[%s219 + $0x20] sm:$0x1]
      %v347 = vld [vmem:[%s219 + $0x24] sm:$0xf]
      %v348 = vld [vmem:[%s219 + $0x28] sm:$0xf]
      %v349 = vld [vmem:[%s219 + $0x2c] sm:$0x1]
      %v350 = vld [vmem:[%s219 + $0x30] sm:$0xf]
      %v351 = vld [vmem:[%s219 + $0x34] sm:$0xf]
      %v352 = vld [vmem:[%s219 + $0x38] sm:$0x1]
      %v353 = vld [vmem:[%s219 + $0x3c] sm:$0xf]
      %v354 = vld [vmem:[%s219 + $0x40] sm:$0xf]
      %v355 = vld [vmem:[%s219 + $0x44] sm:$0x1]
      %v356 = vld [vmem:[%s219 + $0x48] sm:$0xf]
      %v357 = vld [vmem:[%s219 + $0x4c] sm:$0xf]
      %v358 = vld [vmem:[%s219 + $0x50] sm:$0x1]
      %v359 = vld [vmem:[%s219 + $0x54] sm:$0xf]
      %v360 = vld [vmem:[%s219 + $0x58] sm:$0xf]
      %v361 = vld [vmem:[%s219 + $0x5c] sm:$0x1]
      %v362 = vld [vmem:[%s219 + $0x60] sm:$0xf]
      %v363 = vld [vmem:[%s219 + $0x64] sm:$0xf]
      %v364 = vld [vmem:[%s219 + $0x68] sm:$0x1]
      %v365 = vld [vmem:[%s219 + $0x6c] sm:$0xf]
      %v366 = vld [vmem:[%s219 + $0x70] sm:$0xf]
      %v367 = vld [vmem:[%s219 + $0x74] sm:$0x1]
      %v368 = vld [vmem:[%s219 + $0x78] sm:$0xf]
      %v369 = vld [vmem:[%s219 + $0x7c] sm:$0xf]
      %v370 = vld [vmem:[%s219 + $0x80] sm:$0x1]
      %v371 = vld [vmem:[%s219 + $0x84] sm:$0xf]
      %v372 = vld [vmem:[%s219 + $0x88] sm:$0xf]
      %v373 = vld [vmem:[%s219 + $0x8c] sm:$0x1]
      %v374 = vld [vmem:[%s219 + $0x90] sm:$0xf]
      %v375 = vld [vmem:[%s219 + $0x94] sm:$0xf]
      %v376 = vld [vmem:[%s219 + $0x98] sm:$0x1]
      %v377 = vld [vmem:[%s219 + $0x9c] sm:$0xf]
      %v378 = vld [vmem:[%s219 + $0xa0] sm:$0xf]
      %v379 = vld [vmem:[%s219 + $0xa4] sm:$0x1]
      %v380 = vld [vmem:[%s219 + $0xa8] sm:$0xf]
      %v381 = vld [vmem:[%s219 + $0xac] sm:$0xf]
      %v382 = vld [vmem:[%s219 + $0xb0] sm:$0x1]
      %v383 = vld [vmem:[%s219 + $0xb4] sm:$0xf]
      %v384 = vld [vmem:[%s219 + $0xb8] sm:$0xf]
      %v385 = vld [vmem:[%s219 + $0xbc] sm:$0x1]
      %v386 = vunpack.c.l.bf16 %v338
      %v387 = vunpack.c.l.bf16 %v339
      %v388 = vunpack.c.l.bf16 %v340
      %v389 = vunpack.c.l.bf16 %v341
      %v390 = vunpack.c.l.bf16 %v342
      %v391 = vunpack.c.l.bf16 %v343
      %v392 = vunpack.c.l.bf16 %v344
      %v393 = vunpack.c.l.bf16 %v345
      %v394 = vunpack.c.l.bf16 %v346
      %v395 = vunpack.c.l.bf16 %v347
      %v396 = vunpack.c.l.bf16 %v348
      %v397 = vunpack.c.l.bf16 %v349
      %v398 = vunpack.c.l.bf16 %v350
      %v399 = vunpack.c.l.bf16 %v351
      %v400 = vunpack.c.l.bf16 %v352
      %v401 = vunpack.c.l.bf16 %v353
      %v402 = vunpack.c.l.bf16 %v354
      %v403 = vunpack.c.l.bf16 %v355
      %v404 = vunpack.c.l.bf16 %v356
      %v405 = vunpack.c.l.bf16 %v357
      %v406 = vunpack.c.l.bf16 %v358
      %v407 = vunpack.c.l.bf16 %v359
      %v408 = vunpack.c.l.bf16 %v360
      %v409 = vunpack.c.l.bf16 %v361
      %v410 = vunpack.c.l.bf16 %v362
      %v411 = vunpack.c.l.bf16 %v363
      %v412 = vunpack.c.l.bf16 %v364
      %v413 = vunpack.c.l.bf16 %v365
      %v414 = vunpack.c.l.bf16 %v366
      %v415 = vunpack.c.l.bf16 %v367
      %v416 = vunpack.c.l.bf16 %v368
      %v417 = vunpack.c.l.bf16 %v369
      %v418 = vunpack.c.l.bf16 %v370
      %v419 = vunpack.c.l.bf16 %v371
      %v420 = vunpack.c.l.bf16 %v372
      %v421 = vunpack.c.l.bf16 %v373
      %v422 = vunpack.c.l.bf16 %v374
      %v423 = vunpack.c.l.bf16 %v375
      %v424 = vunpack.c.l.bf16 %v376
      %v425 = vunpack.c.l.bf16 %v377
      %v426 = vunpack.c.l.bf16 %v378
      %v427 = vunpack.c.l.bf16 %v379
      %v428 = vunpack.c.l.bf16 %v380
      %v429 = vunpack.c.l.bf16 %v381
      %v430 = vunpack.c.l.bf16 %v382
      %v431 = vunpack.c.l.bf16 %v383
      %v432 = vunpack.c.l.bf16 %v384
      %v433 = vunpack.c.l.bf16 %v385
      %vm482 = vcmask 1046528
      %v483 = vrot.slane %v386, 1
      %v484 = vrot.slane %v387, 1
      %v485 = vsel %vm482, %v483, %v484
      %v486 = vrot.slane %v388, 1
      %v487 = vsel %vm482, %v484, %v486
      %v488 = vrot.slane %v389, 1
      %v489 = vrot.slane %v390, 1
      %v490 = vsel %vm482, %v488, %v489
      %v491 = vrot.slane %v391, 1
      %v492 = vsel %vm482, %v489, %v491
      %v493 = vrot.slane %v392, 1
      %v494 = vrot.slane %v393, 1
      %v495 = vsel %vm482, %v493, %v494
      %v496 = vrot.slane %v394, 1
      %v497 = vsel %vm482, %v494, %v496
      %v498 = vrot.slane %v395, 1
      %v499 = vrot.slane %v396, 1
      %v500 = vsel %vm482, %v498, %v499
      %v501 = vrot.slane %v397, 1
      %v502 = vsel %vm482, %v499, %v501
      %v503 = vrot.slane %v398, 1
      %v504 = vrot.slane %v399, 1
      %v505 = vsel %vm482, %v503, %v504
      %v506 = vrot.slane %v400, 1
      %v507 = vsel %vm482, %v504, %v506
      %v508 = vrot.slane %v401, 1
      %v509 = vrot.slane %v402, 1
      %v510 = vsel %vm482, %v508, %v509
      %v511 = vrot.slane %v403, 1
      %v512 = vsel %vm482, %v509, %v511
      %v513 = vrot.slane %v404, 1
      %v514 = vrot.slane %v405, 1
      %v515 = vsel %vm482, %v513, %v514
      %v516 = vrot.slane %v406, 1
      %v517 = vsel %vm482, %v514, %v516
      %v518 = vrot.slane %v407, 1
      %v519 = vrot.slane %v408, 1
      %v520 = vsel %vm482, %v518, %v519
      %v521 = vrot.slane %v409, 1
      %v522 = vsel %vm482, %v519, %v521
      %v523 = vrot.slane %v410, 1
      %v524 = vrot.slane %v411, 1
      %v525 = vsel %vm482, %v523, %v524
      %v526 = vrot.slane %v412, 1
      %v527 = vsel %vm482, %v524, %v526
      %v528 = vrot.slane %v413, 1
      %v529 = vrot.slane %v414, 1
      %v530 = vsel %vm482, %v528, %v529
      %v531 = vrot.slane %v415, 1
      %v532 = vsel %vm482, %v529, %v531
      %v533 = vrot.slane %v416, 1
      %v534 = vrot.slane %v417, 1
      %v535 = vsel %vm482, %v533, %v534
      %v536 = vrot.slane %v418, 1
      %v537 = vsel %vm482, %v534, %v536
      %v538 = vrot.slane %v419, 1
      %v539 = vrot.slane %v420, 1
      %v540 = vsel %vm482, %v538, %v539
      %v541 = vrot.slane %v421, 1
      %v542 = vsel %vm482, %v539, %v541
      %v543 = vrot.slane %v422, 1
      %v544 = vrot.slane %v423, 1
      %v545 = vsel %vm482, %v543, %v544
      %v546 = vrot.slane %v424, 1
      %v547 = vsel %vm482, %v544, %v546
      %v548 = vrot.slane %v425, 1
      %v549 = vrot.slane %v426, 1
      %v550 = vsel %vm482, %v548, %v549
      %v551 = vrot.slane %v427, 1
      %v552 = vsel %vm482, %v549, %v551
      %v553 = vrot.slane %v428, 1
      %v554 = vrot.slane %v429, 1
      %v555 = vsel %vm482, %v553, %v554
      %v556 = vrot.slane %v430, 1
      %v557 = vsel %vm482, %v554, %v556
      %v558 = vrot.slane %v431, 1
      %v559 = vrot.slane %v432, 1
      %v560 = vsel %vm482, %v558, %v559
      %v561 = vrot.slane %v433, 1
      %v562 = vsel %vm482, %v559, %v561
      %563 = vrot.lane.b32.xlu0 %v485, 32
      %v564 = vpop.permute.xlu0 %563
      %565 = vrot.lane.b32.xlu0 %v487, 32
      %v566 = vpop.permute.xlu0 %565
      %567 = vrot.lane.b32.xlu0 %v490, 32
      %v568 = vpop.permute.xlu0 %567
      %569 = vrot.lane.b32.xlu0 %v492, 32
      %v570 = vpop.permute.xlu0 %569
      %571 = vrot.lane.b32.xlu0 %v495, 32
      %v572 = vpop.permute.xlu0 %571
      %573 = vrot.lane.b32.xlu0 %v497, 32
      %v574 = vpop.permute.xlu0 %573
      %575 = vrot.lane.b32.xlu0 %v500, 32
      %v576 = vpop.permute.xlu0 %575
      %577 = vrot.lane.b32.xlu0 %v502, 32
      %v578 = vpop.permute.xlu0 %577
      %579 = vrot.lane.b32.xlu0 %v505, 32
      %v580 = vpop.permute.xlu0 %579
      %581 = vrot.lane.b32.xlu0 %v507, 32
      %v582 = vpop.permute.xlu0 %581
      %583 = vrot.lane.b32.xlu0 %v510, 32
      %v584 = vpop.permute.xlu0 %583
      %585 = vrot.lane.b32.xlu0 %v512, 32
      %v586 = vpop.permute.xlu0 %585
      %587 = vrot.lane.b32.xlu0 %v515, 32
      %v588 = vpop.permute.xlu0 %587
      %589 = vrot.lane.b32.xlu0 %v517, 32
      %v590 = vpop.permute.xlu0 %589
      %591 = vrot.lane.b32.xlu0 %v520, 32
      %v592 = vpop.permute.xlu0 %591
      %593 = vrot.lane.b32.xlu0 %v522, 32
      %v594 = vpop.permute.xlu0 %593
      %595 = vrot.lane.b32.xlu0 %v525, 32
      %v596 = vpop.permute.xlu0 %595
      %597 = vrot.lane.b32.xlu0 %v527, 32
      %v598 = vpop.permute.xlu0 %597
      %599 = vrot.lane.b32.xlu0 %v530, 32
      %v600 = vpop.permute.xlu0 %599
      %601 = vrot.lane.b32.xlu0 %v532, 32
      %v602 = vpop.permute.xlu0 %601
      %603 = vrot.lane.b32.xlu0 %v535, 32
      %v604 = vpop.permute.xlu0 %603
      %605 = vrot.lane.b32.xlu0 %v537, 32
      %v606 = vpop.permute.xlu0 %605
      %607 = vrot.lane.b32.xlu0 %v540, 32
      %v608 = vpop.permute.xlu0 %607
      %609 = vrot.lane.b32.xlu0 %v542, 32
      %v610 = vpop.permute.xlu0 %609
      %611 = vrot.lane.b32.xlu0 %v545, 32
      %v612 = vpop.permute.xlu0 %611
      %613 = vrot.lane.b32.xlu0 %v547, 32
      %v614 = vpop.permute.xlu0 %613
      %615 = vrot.lane.b32.xlu0 %v550, 32
      %v616 = vpop.permute.xlu0 %615
      %617 = vrot.lane.b32.xlu0 %v552, 32
      %v618 = vpop.permute.xlu0 %617
      %619 = vrot.lane.b32.xlu0 %v555, 32
      %v620 = vpop.permute.xlu0 %619
      %621 = vrot.lane.b32.xlu0 %v557, 32
      %v622 = vpop.permute.xlu0 %621
      %623 = vrot.lane.b32.xlu0 %v560, 32
      %v624 = vpop.permute.xlu0 %623
      %625 = vrot.lane.b32.xlu0 %v562, 32
      %v626 = vpop.permute.xlu0 %625
      %vm659 = vcmask 523520
      %660 = vst.msk [vmem:[#allocation2] sm:$0xff] %vm659, %v564
      %661 = vst.msk [vmem:[#allocation2 + $0x18] sm:$0xff] %vm659, %v566
      %662 = vst.msk [vmem:[#allocation2 + $0x30] sm:$0xff] %vm659, %v568
      %663 = vst.msk [vmem:[#allocation2 + $0x48] sm:$0xff] %vm659, %v570
      %664 = vst.msk [vmem:[#allocation2 + $0x60] sm:$0xff] %vm659, %v572
      %665 = vst.msk [vmem:[#allocation2 + $0x78] sm:$0xff] %vm659, %v574
      %666 = vst.msk [vmem:[#allocation2 + $0x90] sm:$0xff] %vm659, %v576
      %667 = vst.msk [vmem:[#allocation2 + $0xa8] sm:$0xff] %vm659, %v578
      %668 = vst.msk [vmem:[#allocation2 + $0xc0] sm:$0xff] %vm659, %v580
      %669 = vst.msk [vmem:[#allocation2 + $0xd8] sm:$0xff] %vm659, %v582
      %670 = vst.msk [vmem:[#allocation2 + $0xf0] sm:$0xff] %vm659, %v584
      %671 = vst.msk [vmem:[#allocation2 + $0x108] sm:$0xff] %vm659, %v586
      %672 = vst.msk [vmem:[#allocation2 + $0x120] sm:$0xff] %vm659, %v588
      %673 = vst.msk [vmem:[#allocation2 + $0x138] sm:$0xff] %vm659, %v590
      %674 = vst.msk [vmem:[#allocation2 + $0x150] sm:$0xff] %vm659, %v592
      %675 = vst.msk [vmem:[#allocation2 + $0x168] sm:$0xff] %vm659, %v594
      %676 = vst.msk [vmem:[#allocation2 + $0x180] sm:$0xff] %vm659, %v596
      %677 = vst.msk [vmem:[#allocation2 + $0x198] sm:$0xff] %vm659, %v598
      %678 = vst.msk [vmem:[#allocation2 + $0x1b0] sm:$0xff] %vm659, %v600
      %679 = vst.msk [vmem:[#allocation2 + $0x1c8] sm:$0xff] %vm659, %v602
      %680 = vst.msk [vmem:[#allocation2 + $0x1e0] sm:$0xff] %vm659, %v604
      %681 = vst.msk [vmem:[#allocation2 + $0x1f8] sm:$0xff] %vm659, %v606
      %682 = vst.msk [vmem:[#allocation2 + $0x210] sm:$0xff] %vm659, %v608
      %683 = vst.msk [vmem:[#allocation2 + $0x228] sm:$0xff] %vm659, %v610
      %684 = vst.msk [vmem:[#allocation2 + $0x240] sm:$0xff] %vm659, %v612
      %685 = vst.msk [vmem:[#allocation2 + $0x258] sm:$0xff] %vm659, %v614
      %686 = vst.msk [vmem:[#allocation2 + $0x270] sm:$0xff] %vm659, %v616
      %687 = vst.msk [vmem:[#allocation2 + $0x288] sm:$0xff] %vm659, %v618
      %688 = vst.msk [vmem:[#allocation2 + $0x2a0] sm:$0xff] %vm659, %v620
      %689 = vst.msk [vmem:[#allocation2 + $0x2b8] sm:$0xff] %vm659, %v622
      %690 = vst.msk [vmem:[#allocation2 + $0x2d0] sm:$0xff] %vm659, %v624
      %691 = vst.msk [vmem:[#allocation2 + $0x2e8] sm:$0xff] %vm659, %v626
      %v692 = vld [vmem:[%s219] sm:$0xe]
      %v693 = vld [vmem:[%s219 + $0x4] sm:$0xf]
      %v694 = vld [vmem:[%s219 + $0x8] sm:$0x1]
      %v695 = vld [vmem:[%s219 + $0xc] sm:$0xe]
      %v696 = vld [vmem:[%s219 + $0x10] sm:$0xf]
      %v697 = vld [vmem:[%s219 + $0x14] sm:$0x1]
      %v698 = vld [vmem:[%s219 + $0x18] sm:$0xe]
      %v699 = vld [vmem:[%s219 + $0x1c] sm:$0xf]
      %v700 = vld [vmem:[%s219 + $0x20] sm:$0x1]
      %v701 = vld [vmem:[%s219 + $0x24] sm:$0xe]
      %v702 = vld [vmem:[%s219 + $0x28] sm:$0xf]
      %v703 = vld [vmem:[%s219 + $0x2c] sm:$0x1]
      %v704 = vld [vmem:[%s219 + $0x30] sm:$0xe]
      %v705 = vld [vmem:[%s219 + $0x34] sm:$0xf]
      %v706 = vld [vmem:[%s219 + $0x38] sm:$0x1]
      %v707 = vld [vmem:[%s219 + $0x3c] sm:$0xe]
      %v708 = vld [vmem:[%s219 + $0x40] sm:$0xf]
      %v709 = vld [vmem:[%s219 + $0x44] sm:$0x1]
      %v710 = vld [vmem:[%s219 + $0x48] sm:$0xe]
      %v711 = vld [vmem:[%s219 + $0x4c] sm:$0xf]
      %v712 = vld [vmem:[%s219 + $0x50] sm:$0x1]
      %v713 = vld [vmem:[%s219 + $0x54] sm:$0xe]
      %v714 = vld [vmem:[%s219 + $0x58] sm:$0xf]
      %v715 = vld [vmem:[%s219 + $0x5c] sm:$0x1]
      %v716 = vld [vmem:[%s219 + $0x60] sm:$0xe]
      %v717 = vld [vmem:[%s219 + $0x64] sm:$0xf]
      %v718 = vld [vmem:[%s219 + $0x68] sm:$0x1]
      %v719 = vld [vmem:[%s219 + $0x6c] sm:$0xe]
      %v720 = vld [vmem:[%s219 + $0x70] sm:$0xf]
      %v721 = vld [vmem:[%s219 + $0x74] sm:$0x1]
      %v722 = vld [vmem:[%s219 + $0x78] sm:$0xe]
      %v723 = vld [vmem:[%s219 + $0x7c] sm:$0xf]
      %v724 = vld [vmem:[%s219 + $0x80] sm:$0x1]
      %v725 = vld [vmem:[%s219 + $0x84] sm:$0xe]
      %v726 = vld [vmem:[%s219 + $0x88] sm:$0xf]
      %v727 = vld [vmem:[%s219 + $0x8c] sm:$0x1]
      %v728 = vld [vmem:[%s219 + $0x90] sm:$0xe]
      %v729 = vld [vmem:[%s219 + $0x94] sm:$0xf]
      %v730 = vld [vmem:[%s219 + $0x98] sm:$0x1]
      %v731 = vld [vmem:[%s219 + $0x9c] sm:$0xe]
      %v732 = vld [vmem:[%s219 + $0xa0] sm:$0xf]
      %v733 = vld [vmem:[%s219 + $0xa4] sm:$0x1]
      %v734 = vld [vmem:[%s219 + $0xa8] sm:$0xe]
      %v735 = vld [vmem:[%s219 + $0xac] sm:$0xf]
      %v736 = vld [vmem:[%s219 + $0xb0] sm:$0x1]
      %v737 = vld [vmem:[%s219 + $0xb4] sm:$0xe]
      %v738 = vld [vmem:[%s219 + $0xb8] sm:$0xf]
      %v739 = vld [vmem:[%s219 + $0xbc] sm:$0x1]
      %v740 = vunpack.c.l.bf16 %v692
      %v741 = vunpack.c.l.bf16 %v693
      %v742 = vunpack.c.l.bf16 %v694
      %v743 = vunpack.c.l.bf16 %v695
      %v744 = vunpack.c.l.bf16 %v696
      %v745 = vunpack.c.l.bf16 %v697
      %v746 = vunpack.c.l.bf16 %v698
      %v747 = vunpack.c.l.bf16 %v699
      %v748 = vunpack.c.l.bf16 %v700
      %v749 = vunpack.c.l.bf16 %v701
      %v750 = vunpack.c.l.bf16 %v702
      %v751 = vunpack.c.l.bf16 %v703
      %v752 = vunpack.c.l.bf16 %v704
      %v753 = vunpack.c.l.bf16 %v705
      %v754 = vunpack.c.l.bf16 %v706
      %v755 = vunpack.c.l.bf16 %v707
      %v756 = vunpack.c.l.bf16 %v708
      %v757 = vunpack.c.l.bf16 %v709
      %v758 = vunpack.c.l.bf16 %v710
      %v759 = vunpack.c.l.bf16 %v711
      %v760 = vunpack.c.l.bf16 %v712
      %v761 = vunpack.c.l.bf16 %v713
      %v762 = vunpack.c.l.bf16 %v714
      %v763 = vunpack.c.l.bf16 %v715
      %v764 = vunpack.c.l.bf16 %v716
      %v765 = vunpack.c.l.bf16 %v717
      %v766 = vunpack.c.l.bf16 %v718
      %v767 = vunpack.c.l.bf16 %v719
      %v768 = vunpack.c.l.bf16 %v720
      %v769 = vunpack.c.l.bf16 %v721
      %v770 = vunpack.c.l.bf16 %v722
      %v771 = vunpack.c.l.bf16 %v723
      %v772 = vunpack.c.l.bf16 %v724
      %v773 = vunpack.c.l.bf16 %v725
      %v774 = vunpack.c.l.bf16 %v726
      %v775 = vunpack.c.l.bf16 %v727
      %v776 = vunpack.c.l.bf16 %v728
      %v777 = vunpack.c.l.bf16 %v729
      %v778 = vunpack.c.l.bf16 %v730
      %v779 = vunpack.c.l.bf16 %v731
      %v780 = vunpack.c.l.bf16 %v732
      %v781 = vunpack.c.l.bf16 %v733
      %v782 = vunpack.c.l.bf16 %v734
      %v783 = vunpack.c.l.bf16 %v735
      %v784 = vunpack.c.l.bf16 %v736
      %v785 = vunpack.c.l.bf16 %v737
      %v786 = vunpack.c.l.bf16 %v738
      %v787 = vunpack.c.l.bf16 %v739
      %vm836 = vcmask 1045504
      %v837 = vrot.slane %v740, 2
      %v838 = vrot.slane %v741, 2
      %v839 = vsel %vm836, %v837, %v838
      %v840 = vrot.slane %v742, 2
      %v841 = vsel %vm836, %v838, %v840
      %v842 = vrot.slane %v743, 2
      %v843 = vrot.slane %v744, 2
      %v844 = vsel %vm836, %v842, %v843
      %v845 = vrot.slane %v745, 2
      %v846 = vsel %vm836, %v843, %v845
      %v847 = vrot.slane %v746, 2
      %v848 = vrot.slane %v747, 2
      %v849 = vsel %vm836, %v847, %v848
      %v850 = vrot.slane %v748, 2
      %v851 = vsel %vm836, %v848, %v850
      %v852 = vrot.slane %v749, 2
      %v853 = vrot.slane %v750, 2
      %v854 = vsel %vm836, %v852, %v853
      %v855 = vrot.slane %v751, 2
      %v856 = vsel %vm836, %v853, %v855
      %v857 = vrot.slane %v752, 2
      %v858 = vrot.slane %v753, 2
      %v859 = vsel %vm836, %v857, %v858
      %v860 = vrot.slane %v754, 2
      %v861 = vsel %vm836, %v858, %v860
      %v862 = vrot.slane %v755, 2
      %v863 = vrot.slane %v756, 2
      %v864 = vsel %vm836, %v862, %v863
      %v865 = vrot.slane %v757, 2
      %v866 = vsel %vm836, %v863, %v865
      %v867 = vrot.slane %v758, 2
      %v868 = vrot.slane %v759, 2
      %v869 = vsel %vm836, %v867, %v868
      %v870 = vrot.slane %v760, 2
      %v871 = vsel %vm836, %v868, %v870
      %v872 = vrot.slane %v761, 2
      %v873 = vrot.slane %v762, 2
      %v874 = vsel %vm836, %v872, %v873
      %v875 = vrot.slane %v763, 2
      %v876 = vsel %vm836, %v873, %v875
      %v877 = vrot.slane %v764, 2
      %v878 = vrot.slane %v765, 2
      %v879 = vsel %vm836, %v877, %v878
      %v880 = vrot.slane %v766, 2
      %v881 = vsel %vm836, %v878, %v880
      %v882 = vrot.slane %v767, 2
      %v883 = vrot.slane %v768, 2
      %v884 = vsel %vm836, %v882, %v883
      %v885 = vrot.slane %v769, 2
      %v886 = vsel %vm836, %v883, %v885
      %v887 = vrot.slane %v770, 2
      %v888 = vrot.slane %v771, 2
      %v889 = vsel %vm836, %v887, %v888
      %v890 = vrot.slane %v772, 2
      %v891 = vsel %vm836, %v888, %v890
      %v892 = vrot.slane %v773, 2
      %v893 = vrot.slane %v774, 2
      %v894 = vsel %vm836, %v892, %v893
      %v895 = vrot.slane %v775, 2
      %v896 = vsel %vm836, %v893, %v895
      %v897 = vrot.slane %v776, 2
      %v898 = vrot.slane %v777, 2
      %v899 = vsel %vm836, %v897, %v898
      %v900 = vrot.slane %v778, 2
      %v901 = vsel %vm836, %v898, %v900
      %v902 = vrot.slane %v779, 2
      %v903 = vrot.slane %v780, 2
      %v904 = vsel %vm836, %v902, %v903
      %v905 = vrot.slane %v781, 2
      %v906 = vsel %vm836, %v903, %v905
      %v907 = vrot.slane %v782, 2
      %v908 = vrot.slane %v783, 2
      %v909 = vsel %vm836, %v907, %v908
      %v910 = vrot.slane %v784, 2
      %v911 = vsel %vm836, %v908, %v910
      %v912 = vrot.slane %v785, 2
      %v913 = vrot.slane %v786, 2
      %v914 = vsel %vm836, %v912, %v913
      %v915 = vrot.slane %v787, 2
      %v916 = vsel %vm836, %v913, %v915
      %917 = vrot.lane.b32.xlu0 %v839, 64
      %v918 = vpop.permute.xlu0 %917
      %919 = vrot.lane.b32.xlu0 %v841, 64
      %v920 = vpop.permute.xlu0 %919
      %921 = vrot.lane.b32.xlu0 %v844, 64
      %v922 = vpop.permute.xlu0 %921
      %923 = vrot.lane.b32.xlu0 %v846, 64
      %v924 = vpop.permute.xlu0 %923
      %925 = vrot.lane.b32.xlu0 %v849, 64
      %v926 = vpop.permute.xlu0 %925
      %927 = vrot.lane.b32.xlu0 %v851, 64
      %v928 = vpop.permute.xlu0 %927
      %929 = vrot.lane.b32.xlu0 %v854, 64
      %v930 = vpop.permute.xlu0 %929
      %931 = vrot.lane.b32.xlu0 %v856, 64
      %v932 = vpop.permute.xlu0 %931
      %933 = vrot.lane.b32.xlu0 %v859, 64
      %v934 = vpop.permute.xlu0 %933
      %935 = vrot.lane.b32.xlu0 %v861, 64
      %v936 = vpop.permute.xlu0 %935
      %937 = vrot.lane.b32.xlu0 %v864, 64
      %v938 = vpop.permute.xlu0 %937
      %939 = vrot.lane.b32.xlu0 %v866, 64
      %v940 = vpop.permute.xlu0 %939
      %941 = vrot.lane.b32.xlu0 %v869, 64
      %v942 = vpop.permute.xlu0 %941
      %943 = vrot.lane.b32.xlu0 %v871, 64
      %v944 = vpop.permute.xlu0 %943
      %945 = vrot.lane.b32.xlu0 %v874, 64
      %v946 = vpop.permute.xlu0 %945
      %947 = vrot.lane.b32.xlu0 %v876, 64
      %v948 = vpop.permute.xlu0 %947
      %949 = vrot.lane.b32.xlu0 %v879, 64
      %v950 = vpop.permute.xlu0 %949
      %951 = vrot.lane.b32.xlu0 %v881, 64
      %v952 = vpop.permute.xlu0 %951
      %953 = vrot.lane.b32.xlu0 %v884, 64
      %v954 = vpop.permute.xlu0 %953
      %955 = vrot.lane.b32.xlu0 %v886, 64
      %v956 = vpop.permute.xlu0 %955
      %957 = vrot.lane.b32.xlu0 %v889, 64
      %v958 = vpop.permute.xlu0 %957
      %959 = vrot.lane.b32.xlu0 %v891, 64
      %v960 = vpop.permute.xlu0 %959
      %961 = vrot.lane.b32.xlu0 %v894, 64
      %v962 = vpop.permute.xlu0 %961
      %963 = vrot.lane.b32.xlu0 %v896, 64
      %v964 = vpop.permute.xlu0 %963
      %965 = vrot.lane.b32.xlu0 %v899, 64
      %v966 = vpop.permute.xlu0 %965
      %967 = vrot.lane.b32.xlu0 %v901, 64
      %v968 = vpop.permute.xlu0 %967
      %969 = vrot.lane.b32.xlu0 %v904, 64
      %v970 = vpop.permute.xlu0 %969
      %971 = vrot.lane.b32.xlu0 %v906, 64
      %v972 = vpop.permute.xlu0 %971
      %973 = vrot.lane.b32.xlu0 %v909, 64
      %v974 = vpop.permute.xlu0 %973
      %975 = vrot.lane.b32.xlu0 %v911, 64
      %v976 = vpop.permute.xlu0 %975
      %977 = vrot.lane.b32.xlu0 %v914, 64
      %v978 = vpop.permute.xlu0 %977
      %979 = vrot.lane.b32.xlu0 %v916, 64
      %v980 = vpop.permute.xlu0 %979
      %vm1013 = vcmask 785920
      %1014 = vst.msk [vmem:[#allocation2] sm:$0xff] %vm1013, %v918
      %1015 = vst.msk [vmem:[#allocation2 + $0x18] sm:$0xff] %vm1013, %v920
      %1016 = vst.msk [vmem:[#allocation2 + $0x30] sm:$0xff] %vm1013, %v922
      %1017 = vst.msk [vmem:[#allocation2 + $0x48] sm:$0xff] %vm1013, %v924
      %1018 = vst.msk [vmem:[#allocation2 + $0x60] sm:$0xff] %vm1013, %v926
      %1019 = vst.msk [vmem:[#allocation2 + $0x78] sm:$0xff] %vm1013, %v928
      %1020 = vst.msk [vmem:[#allocation2 + $0x90] sm:$0xff] %vm1013, %v930
      %1021 = vst.msk [vmem:[#allocation2 + $0xa8] sm:$0xff] %vm1013, %v932
      %1022 = vst.msk [vmem:[#allocation2 + $0xc0] sm:$0xff] %vm1013, %v934
      %1023 = vst.msk [vmem:[#allocation2 + $0xd8] sm:$0xff] %vm1013, %v936
      %1024 = vst.msk [vmem:[#allocation2 + $0xf0] sm:$0xff] %vm1013, %v938
      %1025 = vst.msk [vmem:[#allocation2 + $0x108] sm:$0xff] %vm1013, %v940
      %1026 = vst.msk [vmem:[#allocation2 + $0x120] sm:$0xff] %vm1013, %v942
      %1027 = vst.msk [vmem:[#allocation2 + $0x138] sm:$0xff] %vm1013, %v944
      %1028 = vst.msk [vmem:[#allocation2 + $0x150] sm:$0xff] %vm1013, %v946
      %1029 = vst.msk [vmem:[#allocation2 + $0x168] sm:$0xff] %vm1013, %v948
      %1030 = vst.msk [vmem:[#allocation2 + $0x180] sm:$0xff] %vm1013, %v950
      %1031 = vst.msk [vmem:[#allocation2 + $0x198] sm:$0xff] %vm1013, %v952
      %1032 = vst.msk [vmem:[#allocation2 + $0x1b0] sm:$0xff] %vm1013, %v954
      %1033 = vst.msk [vmem:[#allocation2 + $0x1c8] sm:$0xff] %vm1013, %v956
      %1034 = vst.msk [vmem:[#allocation2 + $0x1e0] sm:$0xff] %vm1013, %v958
      %1035 = vst.msk [vmem:[#allocation2 + $0x1f8] sm:$0xff] %vm1013, %v960
      %1036 = vst.msk [vmem:[#allocation2 + $0x210] sm:$0xff] %vm1013, %v962
      %1037 = vst.msk [vmem:[#allocation2 + $0x228] sm:$0xff] %vm1013, %v964
      %1038 = vst.msk [vmem:[#allocation2 + $0x240] sm:$0xff] %vm1013, %v966
      %1039 = vst.msk [vmem:[#allocation2 + $0x258] sm:$0xff] %vm1013, %v968
      %1040 = vst.msk [vmem:[#allocation2 + $0x270] sm:$0xff] %vm1013, %v970
      %1041 = vst.msk [vmem:[#allocation2 + $0x288] sm:$0xff] %vm1013, %v972
      %1042 = vst.msk [vmem:[#allocation2 + $0x2a0] sm:$0xff] %vm1013, %v974
      %1043 = vst.msk [vmem:[#allocation2 + $0x2b8] sm:$0xff] %vm1013, %v976
      %1044 = vst.msk [vmem:[#allocation2 + $0x2d0] sm:$0xff] %vm1013, %v978
      %1045 = vst.msk [vmem:[#allocation2 + $0x2e8] sm:$0xff] %vm1013, %v980
      %s1046 = scalar_lea.vmem %s219, 12
      %v1047 = vld [vmem:[%s1046] sm:$0xf]
      %v1048 = vld [vmem:[%s1046 + $0x4] sm:$0xf]
      %v1049 = vld [vmem:[%s1046 + $0xc] sm:$0xf]
      %v1050 = vld [vmem:[%s1046 + $0x10] sm:$0xf]
      %v1051 = vld [vmem:[%s1046 + $0x18] sm:$0xf]
      %v1052 = vld [vmem:[%s1046 + $0x1c] sm:$0xf]
      %v1053 = vld [vmem:[%s1046 + $0x24] sm:$0xf]
      %v1054 = vld [vmem:[%s1046 + $0x28] sm:$0xf]
      %v1055 = vld [vmem:[%s1046 + $0x30] sm:$0xf]
      %v1056 = vld [vmem:[%s1046 + $0x34] sm:$0xf]
      %v1057 = vld [vmem:[%s1046 + $0x3c] sm:$0xf]
      %v1058 = vld [vmem:[%s1046 + $0x40] sm:$0xf]
      %v1059 = vld [vmem:[%s1046 + $0x48] sm:$0xf]
      %v1060 = vld [vmem:[%s1046 + $0x4c] sm:$0xf]
      %v1061 = vld [vmem:[%s1046 + $0x54] sm:$0xf]
      %v1062 = vld [vmem:[%s1046 + $0x58] sm:$0xf]
      %v1063 = vld [vmem:[%s1046 + $0x60] sm:$0xf]
      %v1064 = vld [vmem:[%s1046 + $0x64] sm:$0xf]
      %v1065 = vld [vmem:[%s1046 + $0x6c] sm:$0xf]
      %v1066 = vld [vmem:[%s1046 + $0x70] sm:$0xf]
      %v1067 = vld [vmem:[%s1046 + $0x78] sm:$0xf]
      %v1068 = vld [vmem:[%s1046 + $0x7c] sm:$0xf]
      %v1069 = vld [vmem:[%s1046 + $0x84] sm:$0xf]
      %v1070 = vld [vmem:[%s1046 + $0x88] sm:$0xf]
      %v1071 = vld [vmem:[%s1046 + $0x90] sm:$0xf]
      %v1072 = vld [vmem:[%s1046 + $0x94] sm:$0xf]
      %v1073 = vld [vmem:[%s1046 + $0x9c] sm:$0xf]
      %v1074 = vld [vmem:[%s1046 + $0xa0] sm:$0xf]
      %v1075 = vld [vmem:[%s1046 + $0xa8] sm:$0xf]
      %v1076 = vld [vmem:[%s1046 + $0xac] sm:$0xf]
      %v1077 = vld [vmem:[%s1046 + $0xb4] sm:$0xf]
      %v1078 = vld [vmem:[%s1046 + $0xb8] sm:$0xf]
      %v1079 = vunpack.c.l.bf16 %v1047
      %v1080 = vunpack.c.l.bf16 %v1048
      %v1081 = vunpack.c.l.bf16 %v1049
      %v1082 = vunpack.c.l.bf16 %v1050
      %v1083 = vunpack.c.l.bf16 %v1051
      %v1084 = vunpack.c.l.bf16 %v1052
      %v1085 = vunpack.c.l.bf16 %v1053
      %v1086 = vunpack.c.l.bf16 %v1054
      %v1087 = vunpack.c.l.bf16 %v1055
      %v1088 = vunpack.c.l.bf16 %v1056
      %v1089 = vunpack.c.l.bf16 %v1057
      %v1090 = vunpack.c.l.bf16 %v1058
      %v1091 = vunpack.c.l.bf16 %v1059
      %v1092 = vunpack.c.l.bf16 %v1060
      %v1093 = vunpack.c.l.bf16 %v1061
      %v1094 = vunpack.c.l.bf16 %v1062
      %v1095 = vunpack.c.l.bf16 %v1063
      %v1096 = vunpack.c.l.bf16 %v1064
      %v1097 = vunpack.c.l.bf16 %v1065
      %v1098 = vunpack.c.l.bf16 %v1066
      %v1099 = vunpack.c.l.bf16 %v1067
      %v1100 = vunpack.c.l.bf16 %v1068
      %v1101 = vunpack.c.l.bf16 %v1069
      %v1102 = vunpack.c.l.bf16 %v1070
      %v1103 = vunpack.c.l.bf16 %v1071
      %v1104 = vunpack.c.l.bf16 %v1072
      %v1105 = vunpack.c.l.bf16 %v1073
      %v1106 = vunpack.c.l.bf16 %v1074
      %v1107 = vunpack.c.l.bf16 %v1075
      %v1108 = vunpack.c.l.bf16 %v1076
      %v1109 = vunpack.c.l.bf16 %v1077
      %v1110 = vunpack.c.l.bf16 %v1078
      %1143 = vrot.lane.b32.xlu0 %v1079, 96
      %v1144 = vpop.permute.xlu0 %1143
      %1145 = vrot.lane.b32.xlu0 %v1080, 96
      %v1146 = vpop.permute.xlu0 %1145
      %1147 = vrot.lane.b32.xlu0 %v1081, 96
      %v1148 = vpop.permute.xlu0 %1147
      %1149 = vrot.lane.b32.xlu0 %v1082, 96
      %v1150 = vpop.permute.xlu0 %1149
      %1151 = vrot.lane.b32.xlu0 %v1083, 96
      %v1152 = vpop.permute.xlu0 %1151
      %1153 = vrot.lane.b32.xlu0 %v1084, 96
      %v1154 = vpop.permute.xlu0 %1153
      %1155 = vrot.lane.b32.xlu0 %v1085, 96
      %v1156 = vpop.permute.xlu0 %1155
      %1157 = vrot.lane.b32.xlu0 %v1086, 96
      %v1158 = vpop.permute.xlu0 %1157
      %1159 = vrot.lane.b32.xlu0 %v1087, 96
      %v1160 = vpop.permute.xlu0 %1159
      %1161 = vrot.lane.b32.xlu0 %v1088, 96
      %v1162 = vpop.permute.xlu0 %1161
      %1163 = vrot.lane.b32.xlu0 %v1089, 96
      %v1164 = vpop.permute.xlu0 %1163
      %1165 = vrot.lane.b32.xlu0 %v1090, 96
      %v1166 = vpop.permute.xlu0 %1165
      %1167 = vrot.lane.b32.xlu0 %v1091, 96
      %v1168 = vpop.permute.xlu0 %1167
      %1169 = vrot.lane.b32.xlu0 %v1092, 96
      %v1170 = vpop.permute.xlu0 %1169
      %1171 = vrot.lane.b32.xlu0 %v1093, 96
      %v1172 = vpop.permute.xlu0 %1171
      %1173 = vrot.lane.b32.xlu0 %v1094, 96
      %v1174 = vpop.permute.xlu0 %1173
      %1175 = vrot.lane.b32.xlu0 %v1095, 96
      %v1176 = vpop.permute.xlu0 %1175
      %1177 = vrot.lane.b32.xlu0 %v1096, 96
      %v1178 = vpop.permute.xlu0 %1177
      %1179 = vrot.lane.b32.xlu0 %v1097, 96
      %v1180 = vpop.permute.xlu0 %1179
      %1181 = vrot.lane.b32.xlu0 %v1098, 96
      %v1182 = vpop.permute.xlu0 %1181
      %1183 = vrot.lane.b32.xlu0 %v1099, 96
      %v1184 = vpop.permute.xlu0 %1183
      %1185 = vrot.lane.b32.xlu0 %v1100, 96
      %v1186 = vpop.permute.xlu0 %1185
      %1187 = vrot.lane.b32.xlu0 %v1101, 96
      %v1188 = vpop.permute.xlu0 %1187
      %1189 = vrot.lane.b32.xlu0 %v1102, 96
      %v1190 = vpop.permute.xlu0 %1189
      %1191 = vrot.lane.b32.xlu0 %v1103, 96
      %v1192 = vpop.permute.xlu0 %1191
      %1193 = vrot.lane.b32.xlu0 %v1104, 96
      %v1194 = vpop.permute.xlu0 %1193
      %1195 = vrot.lane.b32.xlu0 %v1105, 96
      %v1196 = vpop.permute.xlu0 %1195
      %1197 = vrot.lane.b32.xlu0 %v1106, 96
      %v1198 = vpop.permute.xlu0 %1197
      %1199 = vrot.lane.b32.xlu0 %v1107, 96
      %v1200 = vpop.permute.xlu0 %1199
      %1201 = vrot.lane.b32.xlu0 %v1108, 96
      %v1202 = vpop.permute.xlu0 %1201
      %1203 = vrot.lane.b32.xlu0 %v1109, 96
      %v1204 = vpop.permute.xlu0 %1203
      %1205 = vrot.lane.b32.xlu0 %v1110, 96
      %v1206 = vpop.permute.xlu0 %1205
      %vm1239 = vcmask 1048320
      %1240 = vst.msk [vmem:[#allocation2] sm:$0xff] %vm1239, %v1144
      %1241 = vst.msk [vmem:[#allocation2 + $0x18] sm:$0xff] %vm1239, %v1146
      %1242 = vst.msk [vmem:[#allocation2 + $0x30] sm:$0xff] %vm1239, %v1148
      %1243 = vst.msk [vmem:[#allocation2 + $0x48] sm:$0xff] %vm1239, %v1150
      %1244 = vst.msk [vmem:[#allocation2 + $0x60] sm:$0xff] %vm1239, %v1152
      %1245 = vst.msk [vmem:[#allocation2 + $0x78] sm:$0xff] %vm1239, %v1154
      %1246 = vst.msk [vmem:[#allocation2 + $0x90] sm:$0xff] %vm1239, %v1156
      %1247 = vst.msk [vmem:[#allocation2 + $0xa8] sm:$0xff] %vm1239, %v1158
      %1248 = vst.msk [vmem:[#allocation2 + $0xc0] sm:$0xff] %vm1239, %v1160
      %1249 = vst.msk [vmem:[#allocation2 + $0xd8] sm:$0xff] %vm1239, %v1162
      %1250 = vst.msk [vmem:[#allocation2 + $0xf0] sm:$0xff] %vm1239, %v1164
      %1251 = vst.msk [vmem:[#allocation2 + $0x108] sm:$0xff] %vm1239, %v1166
      %1252 = vst.msk [vmem:[#allocation2 + $0x120] sm:$0xff] %vm1239, %v1168
      %1253 = vst.msk [vmem:[#allocation2 + $0x138] sm:$0xff] %vm1239, %v1170
      %1254 = vst.msk [vmem:[#allocation2 + $0x150] sm:$0xff] %vm1239, %v1172
      %1255 = vst.msk [vmem:[#allocation2 + $0x168] sm:$0xff] %vm1239, %v1174
      %1256 = vst.msk [vmem:[#allocation2 + $0x180] sm:$0xff] %vm1239, %v1176
      %1257 = vst.msk [vmem:[#allocation2 + $0x198] sm:$0xff] %vm1239, %v1178
      %1258 = vst.msk [vmem:[#allocation2 + $0x1b0] sm:$0xff] %vm1239, %v1180
      %1259 = vst.msk [vmem:[#allocation2 + $0x1c8] sm:$0xff] %vm1239, %v1182
      %1260 = vst.msk [vmem:[#allocation2 + $0x1e0] sm:$0xff] %vm1239, %v1184
      %1261 = vst.msk [vmem:[#allocation2 + $0x1f8] sm:$0xff] %vm1239, %v1186
      %1262 = vst.msk [vmem:[#allocation2 + $0x210] sm:$0xff] %vm1239, %v1188
      %1263 = vst.msk [vmem:[#allocation2 + $0x228] sm:$0xff] %vm1239, %v1190
      %1264 = vst.msk [vmem:[#allocation2 + $0x240] sm:$0xff] %vm1239, %v1192
      %1265 = vst.msk [vmem:[#allocation2 + $0x258] sm:$0xff] %vm1239, %v1194
      %1266 = vst.msk [vmem:[#allocation2 + $0x270] sm:$0xff] %vm1239, %v1196
      %1267 = vst.msk [vmem:[#allocation2 + $0x288] sm:$0xff] %vm1239, %v1198
      %1268 = vst.msk [vmem:[#allocation2 + $0x2a0] sm:$0xff] %vm1239, %v1200
      %1269 = vst.msk [vmem:[#allocation2 + $0x2b8] sm:$0xff] %vm1239, %v1202
      %1270 = vst.msk [vmem:[#allocation2 + $0x2d0] sm:$0xff] %vm1239, %v1204
      %1271 = vst.msk [vmem:[#allocation2 + $0x2e8] sm:$0xff] %vm1239, %v1206
      %v1272 = vld [vmem:[%s1046] sm:$0xf]
      %v1273 = vld [vmem:[%s1046 + $0x4] sm:$0xf]
      %v1274 = vld [vmem:[%s1046 + $0x8] sm:$0x1]
      %v1275 = vld [vmem:[%s1046 + $0xc] sm:$0xf]
      %v1276 = vld [vmem:[%s1046 + $0x10] sm:$0xf]
      %v1277 = vld [vmem:[%s1046 + $0x14] sm:$0x1]
      %v1278 = vld [vmem:[%s1046 + $0x18] sm:$0xf]
      %v1279 = vld [vmem:[%s1046 + $0x1c] sm:$0xf]
      %v1280 = vld [vmem:[%s1046 + $0x20] sm:$0x1]
      %v1281 = vld [vmem:[%s1046 + $0x24] sm:$0xf]
      %v1282 = vld [vmem:[%s1046 + $0x28] sm:$0xf]
      %v1283 = vld [vmem:[%s1046 + $0x2c] sm:$0x1]
      %v1284 = vld [vmem:[%s1046 + $0x30] sm:$0xf]
      %v1285 = vld [vmem:[%s1046 + $0x34] sm:$0xf]
      %v1286 = vld [vmem:[%s1046 + $0x38] sm:$0x1]
      %v1287 = vld [vmem:[%s1046 + $0x3c] sm:$0xf]
      %v1288 = vld [vmem:[%s1046 + $0x40] sm:$0xf]
      %v1289 = vld [vmem:[%s1046 + $0x44] sm:$0x1]
      %v1290 = vld [vmem:[%s1046 + $0x48] sm:$0xf]
      %v1291 = vld [vmem:[%s1046 + $0x4c] sm:$0xf]
      %v1292 = vld [vmem:[%s1046 + $0x50] sm:$0x1]
      %v1293 = vld [vmem:[%s1046 + $0x54] sm:$0xf]
      %v1294 = vld [vmem:[%s1046 + $0x58] sm:$0xf]
      %v1295 = vld [vmem:[%s1046 + $0x5c] sm:$0x1]
      %v1296 = vld [vmem:[%s1046 + $0x60] sm:$0xf]
      %v1297 = vld [vmem:[%s1046 + $0x64] sm:$0xf]
      %v1298 = vld [vmem:[%s1046 + $0x68] sm:$0x1]
      %v1299 = vld [vmem:[%s1046 + $0x6c] sm:$0xf]
      %v1300 = vld [vmem:[%s1046 + $0x70] sm:$0xf]
      %v1301 = vld [vmem:[%s1046 + $0x74] sm:$0x1]
      %v1302 = vld [vmem:[%s1046 + $0x78] sm:$0xf]
      %v1303 = vld [vmem:[%s1046 + $0x7c] sm:$0xf]
      %v1304 = vld [vmem:[%s1046 + $0x80] sm:$0x1]
      %v1305 = vld [vmem:[%s1046 + $0x84] sm:$0xf]
      %v1306 = vld [vmem:[%s1046 + $0x88] sm:$0xf]
      %v1307 = vld [vmem:[%s1046 + $0x8c] sm:$0x1]
      %v1308 = vld [vmem:[%s1046 + $0x90] sm:$0xf]
      %v1309 = vld [vmem:[%s1046 + $0x94] sm:$0xf]
      %v1310 = vld [vmem:[%s1046 + $0x98] sm:$0x1]
      %v1311 = vld [vmem:[%s1046 + $0x9c] sm:$0xf]
      %v1312 = vld [vmem:[%s1046 + $0xa0] sm:$0xf]
      %v1313 = vld [vmem:[%s1046 + $0xa4] sm:$0x1]
      %v1314 = vld [vmem:[%s1046 + $0xa8] sm:$0xf]
      %v1315 = vld [vmem:[%s1046 + $0xac] sm:$0xf]
      %v1316 = vld [vmem:[%s1046 + $0xb0] sm:$0x1]
      %v1317 = vld [vmem:[%s1046 + $0xb4] sm:$0xf]
      %v1318 = vld [vmem:[%s1046 + $0xb8] sm:$0xf]
      %v1319 = vld [vmem:[%s1046 + $0xbc] sm:$0x1]
      %v1320 = vunpack.c.l.bf16 %v1272
      %v1321 = vunpack.c.l.bf16 %v1273
      %v1322 = vunpack.c.l.bf16 %v1274
      %v1323 = vunpack.c.l.bf16 %v1275
      %v1324 = vunpack.c.l.bf16 %v1276
      %v1325 = vunpack.c.l.bf16 %v1277
      %v1326 = vunpack.c.l.bf16 %v1278
      %v1327 = vunpack.c.l.bf16 %v1279
      %v1328 = vunpack.c.l.bf16 %v1280
      %v1329 = vunpack.c.l.bf16 %v1281
      %v1330 = vunpack.c.l.bf16 %v1282
      %v1331 = vunpack.c.l.bf16 %v1283
      %v1332 = vunpack.c.l.bf16 %v1284
      %v1333 = vunpack.c.l.bf16 %v1285
      %v1334 = vunpack.c.l.bf16 %v1286
      %v1335 = vunpack.c.l.bf16 %v1287
      %v1336 = vunpack.c.l.bf16 %v1288
      %v1337 = vunpack.c.l.bf16 %v1289
      %v1338 = vunpack.c.l.bf16 %v1290
      %v1339 = vunpack.c.l.bf16 %v1291
      %v1340 = vunpack.c.l.bf16 %v1292
      %v1341 = vunpack.c.l.bf16 %v1293
      %v1342 = vunpack.c.l.bf16 %v1294
      %v1343 = vunpack.c.l.bf16 %v1295
      %v1344 = vunpack.c.l.bf16 %v1296
      %v1345 = vunpack.c.l.bf16 %v1297
      %v1346 = vunpack.c.l.bf16 %v1298
      %v1347 = vunpack.c.l.bf16 %v1299
      %v1348 = vunpack.c.l.bf16 %v1300
      %v1349 = vunpack.c.l.bf16 %v1301
      %v1350 = vunpack.c.l.bf16 %v1302
      %v1351 = vunpack.c.l.bf16 %v1303
      %v1352 = vunpack.c.l.bf16 %v1304
      %v1353 = vunpack.c.l.bf16 %v1305
      %v1354 = vunpack.c.l.bf16 %v1306
      %v1355 = vunpack.c.l.bf16 %v1307
      %v1356 = vunpack.c.l.bf16 %v1308
      %v1357 = vunpack.c.l.bf16 %v1309
      %v1358 = vunpack.c.l.bf16 %v1310
      %v1359 = vunpack.c.l.bf16 %v1311
      %v1360 = vunpack.c.l.bf16 %v1312
      %v1361 = vunpack.c.l.bf16 %v1313
      %v1362 = vunpack.c.l.bf16 %v1314
      %v1363 = vunpack.c.l.bf16 %v1315
      %v1364 = vunpack.c.l.bf16 %v1316
      %v1365 = vunpack.c.l.bf16 %v1317
      %v1366 = vunpack.c.l.bf16 %v1318
      %v1367 = vunpack.c.l.bf16 %v1319
      %v1416 = vrot.slane %v1320, 1
      %v1417 = vrot.slane %v1321, 1
      %v1418 = vsel %vm482, %v1416, %v1417
      %v1419 = vrot.slane %v1322, 1
      %v1420 = vsel %vm482, %v1417, %v1419
      %v1421 = vrot.slane %v1323, 1
      %v1422 = vrot.slane %v1324, 1
      %v1423 = vsel %vm482, %v1421, %v1422
      %v1424 = vrot.slane %v1325, 1
      %v1425 = vsel %vm482, %v1422, %v1424
      %v1426 = vrot.slane %v1326, 1
      %v1427 = vrot.slane %v1327, 1
      %v1428 = vsel %vm482, %v1426, %v1427
      %v1429 = vrot.slane %v1328, 1
      %v1430 = vsel %vm482, %v1427, %v1429
      %v1431 = vrot.slane %v1329, 1
      %v1432 = vrot.slane %v1330, 1
      %v1433 = vsel %vm482, %v1431, %v1432
      %v1434 = vrot.slane %v1331, 1
      %v1435 = vsel %vm482, %v1432, %v1434
      %v1436 = vrot.slane %v1332, 1
      %v1437 = vrot.slane %v1333, 1
      %v1438 = vsel %vm482, %v1436, %v1437
      %v1439 = vrot.slane %v1334, 1
      %v1440 = vsel %vm482, %v1437, %v1439
      %v1441 = vrot.slane %v1335, 1
      %v1442 = vrot.slane %v1336, 1
      %v1443 = vsel %vm482, %v1441, %v1442
      %v1444 = vrot.slane %v1337, 1
      %v1445 = vsel %vm482, %v1442, %v1444
      %v1446 = vrot.slane %v1338, 1
      %v1447 = vrot.slane %v1339, 1
      %v1448 = vsel %vm482, %v1446, %v1447
      %v1449 = vrot.slane %v1340, 1
      %v1450 = vsel %vm482, %v1447, %v1449
      %v1451 = vrot.slane %v1341, 1
      %v1452 = vrot.slane %v1342, 1
      %v1453 = vsel %vm482, %v1451, %v1452
      %v1454 = vrot.slane %v1343, 1
      %v1455 = vsel %vm482, %v1452, %v1454
      %v1456 = vrot.slane %v1344, 1
      %v1457 = vrot.slane %v1345, 1
      %v1458 = vsel %vm482, %v1456, %v1457
      %v1459 = vrot.slane %v1346, 1
      %v1460 = vsel %vm482, %v1457, %v1459
      %v1461 = vrot.slane %v1347, 1
      %v1462 = vrot.slane %v1348, 1
      %v1463 = vsel %vm482, %v1461, %v1462
      %v1464 = vrot.slane %v1349, 1
      %v1465 = vsel %vm482, %v1462, %v1464
      %v1466 = vrot.slane %v1350, 1
      %v1467 = vrot.slane %v1351, 1
      %v1468 = vsel %vm482, %v1466, %v1467
      %v1469 = vrot.slane %v1352, 1
      %v1470 = vsel %vm482, %v1467, %v1469
      %v1471 = vrot.slane %v1353, 1
      %v1472 = vrot.slane %v1354, 1
      %v1473 = vsel %vm482, %v1471, %v1472
      %v1474 = vrot.slane %v1355, 1
      %v1475 = vsel %vm482, %v1472, %v1474
      %v1476 = vrot.slane %v1356, 1
      %v1477 = vrot.slane %v1357, 1
      %v1478 = vsel %vm482, %v1476, %v1477
      %v1479 = vrot.slane %v1358, 1
      %v1480 = vsel %vm482, %v1477, %v1479
      %v1481 = vrot.slane %v1359, 1
      %v1482 = vrot.slane %v1360, 1
      %v1483 = vsel %vm482, %v1481, %v1482
      %v1484 = vrot.slane %v1361, 1
      %v1485 = vsel %vm482, %v1482, %v1484
      %v1486 = vrot.slane %v1362, 1
      %v1487 = vrot.slane %v1363, 1
      %v1488 = vsel %vm482, %v1486, %v1487
      %v1489 = vrot.slane %v1364, 1
      %v1490 = vsel %vm482, %v1487, %v1489
      %v1491 = vrot.slane %v1365, 1
      %v1492 = vrot.slane %v1366, 1
      %v1493 = vsel %vm482, %v1491, %v1492
      %v1494 = vrot.slane %v1367, 1
      %v1495 = vsel %vm482, %v1492, %v1494
      %1528 = vst.msk [vmem:[#allocation2 + $0x8] sm:$0xff] %vm305, %v1418
      %1529 = vst.msk [vmem:[#allocation2 + $0x20] sm:$0xff] %vm305, %v1420
      %1530 = vst.msk [vmem:[#allocation2 + $0x38] sm:$0xff] %vm305, %v1423
      %1531 = vst.msk [vmem:[#allocation2 + $0x50] sm:$0xff] %vm305, %v1425
      %1532 = vst.msk [vmem:[#allocation2 + $0x68] sm:$0xff] %vm305, %v1428
      %1533 = vst.msk [vmem:[#allocation2 + $0x80] sm:$0xff] %vm305, %v1430
      %1534 = vst.msk [vmem:[#allocation2 + $0x98] sm:$0xff] %vm305, %v1433
      %1535 = vst.msk [vmem:[#allocation2 + $0xb0] sm:$0xff] %vm305, %v1435
      %1536 = vst.msk [vmem:[#allocation2 + $0xc8] sm:$0xff] %vm305, %v1438
      %1537 = vst.msk [vmem:[#allocation2 + $0xe0] sm:$0xff] %vm305, %v1440
      %1538 = vst.msk [vmem:[#allocation2 + $0xf8] sm:$0xff] %vm305, %v1443
      %1539 = vst.msk [vmem:[#allocation2 + $0x110] sm:$0xff] %vm305, %v1445
      %1540 = vst.msk [vmem:[#allocation2 + $0x128] sm:$0xff] %vm305, %v1448
      %1541 = vst.msk [vmem:[#allocation2 + $0x140] sm:$0xff] %vm305, %v1450
      %1542 = vst.msk [vmem:[#allocation2 + $0x158] sm:$0xff] %vm305, %v1453
      %1543 = vst.msk [vmem:[#allocation2 + $0x170] sm:$0xff] %vm305, %v1455
      %1544 = vst.msk [vmem:[#allocation2 + $0x188] sm:$0xff] %vm305, %v1458
      %1545 = vst.msk [vmem:[#allocation2 + $0x1a0] sm:$0xff] %vm305, %v1460
      %1546 = vst.msk [vmem:[#allocation2 + $0x1b8] sm:$0xff] %vm305, %v1463
      %1547 = vst.msk [vmem:[#allocation2 + $0x1d0] sm:$0xff] %vm305, %v1465
      %1548 = vst.msk [vmem:[#allocation2 + $0x1e8] sm:$0xff] %vm305, %v1468
      %1549 = vst.msk [vmem:[#allocation2 + $0x200] sm:$0xff] %vm305, %v1470
      %1550 = vst.msk [vmem:[#allocation2 + $0x218] sm:$0xff] %vm305, %v1473
      %1551 = vst.msk [vmem:[#allocation2 + $0x230] sm:$0xff] %vm305, %v1475
      %1552 = vst.msk [vmem:[#allocation2 + $0x248] sm:$0xff] %vm305, %v1478
      %1553 = vst.msk [vmem:[#allocation2 + $0x260] sm:$0xff] %vm305, %v1480
      %1554 = vst.msk [vmem:[#allocation2 + $0x278] sm:$0xff] %vm305, %v1483
      %1555 = vst.msk [vmem:[#allocation2 + $0x290] sm:$0xff] %vm305, %v1485
      %1556 = vst.msk [vmem:[#allocation2 + $0x2a8] sm:$0xff] %vm305, %v1488
      %1557 = vst.msk [vmem:[#allocation2 + $0x2c0] sm:$0xff] %vm305, %v1490
      %1558 = vst.msk [vmem:[#allocation2 + $0x2d8] sm:$0xff] %vm305, %v1493
      %1559 = vst.msk [vmem:[#allocation2 + $0x2f0] sm:$0xff] %vm305, %v1495
      %v1560 = vld [vmem:[%s1046] sm:$0xe]
      %v1561 = vld [vmem:[%s1046 + $0x4] sm:$0xf]
      %v1562 = vld [vmem:[%s1046 + $0x8] sm:$0x1]
      %v1563 = vld [vmem:[%s1046 + $0xc] sm:$0xe]
      %v1564 = vld [vmem:[%s1046 + $0x10] sm:$0xf]
      %v1565 = vld [vmem:[%s1046 + $0x14] sm:$0x1]
      %v1566 = vld [vmem:[%s1046 + $0x18] sm:$0xe]
      %v1567 = vld [vmem:[%s1046 + $0x1c] sm:$0xf]
      %v1568 = vld [vmem:[%s1046 + $0x20] sm:$0x1]
      %v1569 = vld [vmem:[%s1046 + $0x24] sm:$0xe]
      %v1570 = vld [vmem:[%s1046 + $0x28] sm:$0xf]
      %v1571 = vld [vmem:[%s1046 + $0x2c] sm:$0x1]
      %v1572 = vld [vmem:[%s1046 + $0x30] sm:$0xe]
      %v1573 = vld [vmem:[%s1046 + $0x34] sm:$0xf]
      %v1574 = vld [vmem:[%s1046 + $0x38] sm:$0x1]
      %v1575 = vld [vmem:[%s1046 + $0x3c] sm:$0xe]
      %v1576 = vld [vmem:[%s1046 + $0x40] sm:$0xf]
      %v1577 = vld [vmem:[%s1046 + $0x44] sm:$0x1]
      %v1578 = vld [vmem:[%s1046 + $0x48] sm:$0xe]
      %v1579 = vld [vmem:[%s1046 + $0x4c] sm:$0xf]
      %v1580 = vld [vmem:[%s1046 + $0x50] sm:$0x1]
      %v1581 = vld [vmem:[%s1046 + $0x54] sm:$0xe]
      %v1582 = vld [vmem:[%s1046 + $0x58] sm:$0xf]
      %v1583 = vld [vmem:[%s1046 + $0x5c] sm:$0x1]
      %v1584 = vld [vmem:[%s1046 + $0x60] sm:$0xe]
      %v1585 = vld [vmem:[%s1046 + $0x64] sm:$0xf]
      %v1586 = vld [vmem:[%s1046 + $0x68] sm:$0x1]
      %v1587 = vld [vmem:[%s1046 + $0x6c] sm:$0xe]
      %v1588 = vld [vmem:[%s1046 + $0x70] sm:$0xf]
      %v1589 = vld [vmem:[%s1046 + $0x74] sm:$0x1]
      %v1590 = vld [vmem:[%s1046 + $0x78] sm:$0xe]
      %v1591 = vld [vmem:[%s1046 + $0x7c] sm:$0xf]
      %v1592 = vld [vmem:[%s1046 + $0x80] sm:$0x1]
      %v1593 = vld [vmem:[%s1046 + $0x84] sm:$0xe]
      %v1594 = vld [vmem:[%s1046 + $0x88] sm:$0xf]
      %v1595 = vld [vmem:[%s1046 + $0x8c] sm:$0x1]
      %v1596 = vld [vmem:[%s1046 + $0x90] sm:$0xe]
      %v1597 = vld [vmem:[%s1046 + $0x94] sm:$0xf]
      %v1598 = vld [vmem:[%s1046 + $0x98] sm:$0x1]
      %v1599 = vld [vmem:[%s1046 + $0x9c] sm:$0xe]
      %v1600 = vld [vmem:[%s1046 + $0xa0] sm:$0xf]
      %v1601 = vld [vmem:[%s1046 + $0xa4] sm:$0x1]
      %v1602 = vld [vmem:[%s1046 + $0xa8] sm:$0xe]
      %v1603 = vld [vmem:[%s1046 + $0xac] sm:$0xf]
      %v1604 = vld [vmem:[%s1046 + $0xb0] sm:$0x1]
      %v1605 = vld [vmem:[%s1046 + $0xb4] sm:$0xe]
      %v1606 = vld [vmem:[%s1046 + $0xb8] sm:$0xf]
      %v1607 = vld [vmem:[%s1046 + $0xbc] sm:$0x1]
      %v1608 = vunpack.c.l.bf16 %v1560
      %v1609 = vunpack.c.l.bf16 %v1561
      %v1610 = vunpack.c.l.bf16 %v1562
      %v1611 = vunpack.c.l.bf16 %v1563
      %v1612 = vunpack.c.l.bf16 %v1564
      %v1613 = vunpack.c.l.bf16 %v1565
      %v1614 = vunpack.c.l.bf16 %v1566
      %v1615 = vunpack.c.l.bf16 %v1567
      %v1616 = vunpack.c.l.bf16 %v1568
      %v1617 = vunpack.c.l.bf16 %v1569
      %v1618 = vunpack.c.l.bf16 %v1570
      %v1619 = vunpack.c.l.bf16 %v1571
      %v1620 = vunpack.c.l.bf16 %v1572
      %v1621 = vunpack.c.l.bf16 %v1573
      %v1622 = vunpack.c.l.bf16 %v1574
      %v1623 = vunpack.c.l.bf16 %v1575
      %v1624 = vunpack.c.l.bf16 %v1576
      %v1625 = vunpack.c.l.bf16 %v1577
      %v1626 = vunpack.c.l.bf16 %v1578
      %v1627 = vunpack.c.l.bf16 %v1579
      %v1628 = vunpack.c.l.bf16 %v1580
      %v1629 = vunpack.c.l.bf16 %v1581
      %v1630 = vunpack.c.l.bf16 %v1582
      %v1631 = vunpack.c.l.bf16 %v1583
      %v1632 = vunpack.c.l.bf16 %v1584
      %v1633 = vunpack.c.l.bf16 %v1585
      %v1634 = vunpack.c.l.bf16 %v1586
      %v1635 = vunpack.c.l.bf16 %v1587
      %v1636 = vunpack.c.l.bf16 %v1588
      %v1637 = vunpack.c.l.bf16 %v1589
      %v1638 = vunpack.c.l.bf16 %v1590
      %v1639 = vunpack.c.l.bf16 %v1591
      %v1640 = vunpack.c.l.bf16 %v1592
      %v1641 = vunpack.c.l.bf16 %v1593
      %v1642 = vunpack.c.l.bf16 %v1594
      %v1643 = vunpack.c.l.bf16 %v1595
      %v1644 = vunpack.c.l.bf16 %v1596
      %v1645 = vunpack.c.l.bf16 %v1597
      %v1646 = vunpack.c.l.bf16 %v1598
      %v1647 = vunpack.c.l.bf16 %v1599
      %v1648 = vunpack.c.l.bf16 %v1600
      %v1649 = vunpack.c.l.bf16 %v1601
      %v1650 = vunpack.c.l.bf16 %v1602
      %v1651 = vunpack.c.l.bf16 %v1603
      %v1652 = vunpack.c.l.bf16 %v1604
      %v1653 = vunpack.c.l.bf16 %v1605
      %v1654 = vunpack.c.l.bf16 %v1606
      %v1655 = vunpack.c.l.bf16 %v1607
      %v1704 = vrot.slane %v1608, 2
      %v1705 = vrot.slane %v1609, 2
      %v1706 = vsel %vm836, %v1704, %v1705
      %v1707 = vrot.slane %v1610, 2
      %v1708 = vsel %vm836, %v1705, %v1707
      %v1709 = vrot.slane %v1611, 2
      %v1710 = vrot.slane %v1612, 2
      %v1711 = vsel %vm836, %v1709, %v1710
      %v1712 = vrot.slane %v1613, 2
      %v1713 = vsel %vm836, %v1710, %v1712
      %v1714 = vrot.slane %v1614, 2
      %v1715 = vrot.slane %v1615, 2
      %v1716 = vsel %vm836, %v1714, %v1715
      %v1717 = vrot.slane %v1616, 2
      %v1718 = vsel %vm836, %v1715, %v1717
      %v1719 = vrot.slane %v1617, 2
      %v1720 = vrot.slane %v1618, 2
      %v1721 = vsel %vm836, %v1719, %v1720
      %v1722 = vrot.slane %v1619, 2
      %v1723 = vsel %vm836, %v1720, %v1722
      %v1724 = vrot.slane %v1620, 2
      %v1725 = vrot.slane %v1621, 2
      %v1726 = vsel %vm836, %v1724, %v1725
      %v1727 = vrot.slane %v1622, 2
      %v1728 = vsel %vm836, %v1725, %v1727
      %v1729 = vrot.slane %v1623, 2
      %v1730 = vrot.slane %v1624, 2
      %v1731 = vsel %vm836, %v1729, %v1730
      %v1732 = vrot.slane %v1625, 2
      %v1733 = vsel %vm836, %v1730, %v1732
      %v1734 = vrot.slane %v1626, 2
      %v1735 = vrot.slane %v1627, 2
      %v1736 = vsel %vm836, %v1734, %v1735
      %v1737 = vrot.slane %v1628, 2
      %v1738 = vsel %vm836, %v1735, %v1737
      %v1739 = vrot.slane %v1629, 2
      %v1740 = vrot.slane %v1630, 2
      %v1741 = vsel %vm836, %v1739, %v1740
      %v1742 = vrot.slane %v1631, 2
      %v1743 = vsel %vm836, %v1740, %v1742
      %v1744 = vrot.slane %v1632, 2
      %v1745 = vrot.slane %v1633, 2
      %v1746 = vsel %vm836, %v1744, %v1745
      %v1747 = vrot.slane %v1634, 2
      %v1748 = vsel %vm836, %v1745, %v1747
      %v1749 = vrot.slane %v1635, 2
      %v1750 = vrot.slane %v1636, 2
      %v1751 = vsel %vm836, %v1749, %v1750
      %v1752 = vrot.slane %v1637, 2
      %v1753 = vsel %vm836, %v1750, %v1752
      %v1754 = vrot.slane %v1638, 2
      %v1755 = vrot.slane %v1639, 2
      %v1756 = vsel %vm836, %v1754, %v1755
      %v1757 = vrot.slane %v1640, 2
      %v1758 = vsel %vm836, %v1755, %v1757
      %v1759 = vrot.slane %v1641, 2
      %v1760 = vrot.slane %v1642, 2
      %v1761 = vsel %vm836, %v1759, %v1760
      %v1762 = vrot.slane %v1643, 2
      %v1763 = vsel %vm836, %v1760, %v1762
      %v1764 = vrot.slane %v1644, 2
      %v1765 = vrot.slane %v1645, 2
      %v1766 = vsel %vm836, %v1764, %v1765
      %v1767 = vrot.slane %v1646, 2
      %v1768 = vsel %vm836, %v1765, %v1767
      %v1769 = vrot.slane %v1647, 2
      %v1770 = vrot.slane %v1648, 2
      %v1771 = vsel %vm836, %v1769, %v1770
      %v1772 = vrot.slane %v1649, 2
      %v1773 = vsel %vm836, %v1770, %v1772
      %v1774 = vrot.slane %v1650, 2
      %v1775 = vrot.slane %v1651, 2
      %v1776 = vsel %vm836, %v1774, %v1775
      %v1777 = vrot.slane %v1652, 2
      %v1778 = vsel %vm836, %v1775, %v1777
      %v1779 = vrot.slane %v1653, 2
      %v1780 = vrot.slane %v1654, 2
      %v1781 = vsel %vm836, %v1779, %v1780
      %v1782 = vrot.slane %v1655, 2
      %v1783 = vsel %vm836, %v1780, %v1782
      %1784 = vrot.lane.b32.xlu0 %v1706, 32
      %v1785 = vpop.permute.xlu0 %1784
      %1786 = vrot.lane.b32.xlu0 %v1708, 32
      %v1787 = vpop.permute.xlu0 %1786
      %1788 = vrot.lane.b32.xlu0 %v1711, 32
      %v1789 = vpop.permute.xlu0 %1788
      %1790 = vrot.lane.b32.xlu0 %v1713, 32
      %v1791 = vpop.permute.xlu0 %1790
      %1792 = vrot.lane.b32.xlu0 %v1716, 32
      %v1793 = vpop.permute.xlu0 %1792
      %1794 = vrot.lane.b32.xlu0 %v1718, 32
      %v1795 = vpop.permute.xlu0 %1794
      %1796 = vrot.lane.b32.xlu0 %v1721, 32
      %v1797 = vpop.permute.xlu0 %1796
      %1798 = vrot.lane.b32.xlu0 %v1723, 32
      %v1799 = vpop.permute.xlu0 %1798
      %1800 = vrot.lane.b32.xlu0 %v1726, 32
      %v1801 = vpop.permute.xlu0 %1800
      %1802 = vrot.lane.b32.xlu0 %v1728, 32
      %v1803 = vpop.permute.xlu0 %1802
      %1804 = vrot.lane.b32.xlu0 %v1731, 32
      %v1805 = vpop.permute.xlu0 %1804
      %1806 = vrot.lane.b32.xlu0 %v1733, 32
      %v1807 = vpop.permute.xlu0 %1806
      %1808 = vrot.lane.b32.xlu0 %v1736, 32
      %v1809 = vpop.permute.xlu0 %1808
      %1810 = vrot.lane.b32.xlu0 %v1738, 32
      %v1811 = vpop.permute.xlu0 %1810
      %1812 = vrot.lane.b32.xlu0 %v1741, 32
      %v1813 = vpop.permute.xlu0 %1812
      %1814 = vrot.lane.b32.xlu0 %v1743, 32
      %v1815 = vpop.permute.xlu0 %1814
      %1816 = vrot.lane.b32.xlu0 %v1746, 32
      %v1817 = vpop.permute.xlu0 %1816
      %1818 = vrot.lane.b32.xlu0 %v1748, 32
      %v1819 = vpop.permute.xlu0 %1818
      %1820 = vrot.lane.b32.xlu0 %v1751, 32
      %v1821 = vpop.permute.xlu0 %1820
      %1822 = vrot.lane.b32.xlu0 %v1753, 32
      %v1823 = vpop.permute.xlu0 %1822
      %1824 = vrot.lane.b32.xlu0 %v1756, 32
      %v1825 = vpop.permute.xlu0 %1824
      %1826 = vrot.lane.b32.xlu0 %v1758, 32
      %v1827 = vpop.permute.xlu0 %1826
      %1828 = vrot.lane.b32.xlu0 %v1761, 32
      %v1829 = vpop.permute.xlu0 %1828
      %1830 = vrot.lane.b32.xlu0 %v1763, 32
      %v1831 = vpop.permute.xlu0 %1830
      %1832 = vrot.lane.b32.xlu0 %v1766, 32
      %v1833 = vpop.permute.xlu0 %1832
      %1834 = vrot.lane.b32.xlu0 %v1768, 32
      %v1835 = vpop.permute.xlu0 %1834
      %1836 = vrot.lane.b32.xlu0 %v1771, 32
      %v1837 = vpop.permute.xlu0 %1836
      %1838 = vrot.lane.b32.xlu0 %v1773, 32
      %v1839 = vpop.permute.xlu0 %1838
      %1840 = vrot.lane.b32.xlu0 %v1776, 32
      %v1841 = vpop.permute.xlu0 %1840
      %1842 = vrot.lane.b32.xlu0 %v1778, 32
      %v1843 = vpop.permute.xlu0 %1842
      %1844 = vrot.lane.b32.xlu0 %v1781, 32
      %v1845 = vpop.permute.xlu0 %1844
      %1846 = vrot.lane.b32.xlu0 %v1783, 32
      %v1847 = vpop.permute.xlu0 %1846
      %1880 = vst.msk [vmem:[#allocation2 + $0x8] sm:$0xff] %vm659, %v1785
      %1881 = vst.msk [vmem:[#allocation2 + $0x20] sm:$0xff] %vm659, %v1787
      %1882 = vst.msk [vmem:[#allocation2 + $0x38] sm:$0xff] %vm659, %v1789
      %1883 = vst.msk [vmem:[#allocation2 + $0x50] sm:$0xff] %vm659, %v1791
      %1884 = vst.msk [vmem:[#allocation2 + $0x68] sm:$0xff] %vm659, %v1793
      %1885 = vst.msk [vmem:[#allocation2 + $0x80] sm:$0xff] %vm659, %v1795
      %1886 = vst.msk [vmem:[#allocation2 + $0x98] sm:$0xff] %vm659, %v1797
      %1887 = vst.msk [vmem:[#allocation2 + $0xb0] sm:$0xff] %vm659, %v1799
      %1888 = vst.msk [vmem:[#allocation2 + $0xc8] sm:$0xff] %vm659, %v1801
      %1889 = vst.msk [vmem:[#allocation2 + $0xe0] sm:$0xff] %vm659, %v1803
      %1890 = vst.msk [vmem:[#allocation2 + $0xf8] sm:$0xff] %vm659, %v1805
      %1891 = vst.msk [vmem:[#allocation2 + $0x110] sm:$0xff] %vm659, %v1807
      %1892 = vst.msk [vmem:[#allocation2 + $0x128] sm:$0xff] %vm659, %v1809
      %1893 = vst.msk [vmem:[#allocation2 + $0x140] sm:$0xff] %vm659, %v1811
      %1894 = vst.msk [vmem:[#allocation2 + $0x158] sm:$0xff] %vm659, %v1813
      %1895 = vst.msk [vmem:[#allocation2 + $0x170] sm:$0xff] %vm659, %v1815
      %1896 = vst.msk [vmem:[#allocation2 + $0x188] sm:$0xff] %vm659, %v1817
      %1897 = vst.msk [vmem:[#allocation2 + $0x1a0] sm:$0xff] %vm659, %v1819
      %1898 = vst.msk [vmem:[#allocation2 + $0x1b8] sm:$0xff] %vm659, %v1821
      %1899 = vst.msk [vmem:[#allocation2 + $0x1d0] sm:$0xff] %vm659, %v1823
      %1900 = vst.msk [vmem:[#allocation2 + $0x1e8] sm:$0xff] %vm659, %v1825
      %1901 = vst.msk [vmem:[#allocation2 + $0x200] sm:$0xff] %vm659, %v1827
      %1902 = vst.msk [vmem:[#allocation2 + $0x218] sm:$0xff] %vm659, %v1829
      %1903 = vst.msk [vmem:[#allocation2 + $0x230] sm:$0xff] %vm659, %v1831
      %1904 = vst.msk [vmem:[#allocation2 + $0x248] sm:$0xff] %vm659, %v1833
      %1905 = vst.msk [vmem:[#allocation2 + $0x260] sm:$0xff] %vm659, %v1835
      %1906 = vst.msk [vmem:[#allocation2 + $0x278] sm:$0xff] %vm659, %v1837
      %1907 = vst.msk [vmem:[#allocation2 + $0x290] sm:$0xff] %vm659, %v1839
      %1908 = vst.msk [vmem:[#allocation2 + $0x2a8] sm:$0xff] %vm659, %v1841
      %1909 = vst.msk [vmem:[#allocation2 + $0x2c0] sm:$0xff] %vm659, %v1843
      %1910 = vst.msk [vmem:[#allocation2 + $0x2d8] sm:$0xff] %vm659, %v1845
      %1911 = vst.msk [vmem:[#allocation2 + $0x2f0] sm:$0xff] %vm659, %v1847
      %s1912 = scalar_lea.vmem %s219, 24
      %v1913 = vld [vmem:[%s1912] sm:$0xf]
      %v1914 = vld [vmem:[%s1912 + $0x4] sm:$0xf]
      %v1915 = vld [vmem:[%s1912 + $0xc] sm:$0xf]
      %v1916 = vld [vmem:[%s1912 + $0x10] sm:$0xf]
      %v1917 = vld [vmem:[%s1912 + $0x18] sm:$0xf]
      %v1918 = vld [vmem:[%s1912 + $0x1c] sm:$0xf]
      %v1919 = vld [vmem:[%s1912 + $0x24] sm:$0xf]
      %v1920 = vld [vmem:[%s1912 + $0x28] sm:$0xf]
      %v1921 = vld [vmem:[%s1912 + $0x30] sm:$0xf]
      %v1922 = vld [vmem:[%s1912 + $0x34] sm:$0xf]
      %v1923 = vld [vmem:[%s1912 + $0x3c] sm:$0xf]
      %v1924 = vld [vmem:[%s1912 + $0x40] sm:$0xf]
      %v1925 = vld [vmem:[%s1912 + $0x48] sm:$0xf]
      %v1926 = vld [vmem:[%s1912 + $0x4c] sm:$0xf]
      %v1927 = vld [vmem:[%s1912 + $0x54] sm:$0xf]
      %v1928 = vld [vmem:[%s1912 + $0x58] sm:$0xf]
      %v1929 = vld [vmem:[%s1912 + $0x60] sm:$0xf]
      %v1930 = vld [vmem:[%s1912 + $0x64] sm:$0xf]
      %v1931 = vld [vmem:[%s1912 + $0x6c] sm:$0xf]
      %v1932 = vld [vmem:[%s1912 + $0x70] sm:$0xf]
      %v1933 = vld [vmem:[%s1912 + $0x78] sm:$0xf]
      %v1934 = vld [vmem:[%s1912 + $0x7c] sm:$0xf]
      %v1935 = vld [vmem:[%s1912 + $0x84] sm:$0xf]
      %v1936 = vld [vmem:[%s1912 + $0x88] sm:$0xf]
      %v1937 = vld [vmem:[%s1912 + $0x90] sm:$0xf]
      %v1938 = vld [vmem:[%s1912 + $0x94] sm:$0xf]
      %v1939 = vld [vmem:[%s1912 + $0x9c] sm:$0xf]
      %v1940 = vld [vmem:[%s1912 + $0xa0] sm:$0xf]
      %v1941 = vld [vmem:[%s1912 + $0xa8] sm:$0xf]
      %v1942 = vld [vmem:[%s1912 + $0xac] sm:$0xf]
      %v1943 = vld [vmem:[%s1912 + $0xb4] sm:$0xf]
      %v1944 = vld [vmem:[%s1912 + $0xb8] sm:$0xf]
      %v1945 = vunpack.c.l.bf16 %v1913
      %v1946 = vunpack.c.l.bf16 %v1914
      %v1947 = vunpack.c.l.bf16 %v1915
      %v1948 = vunpack.c.l.bf16 %v1916
      %v1949 = vunpack.c.l.bf16 %v1917
      %v1950 = vunpack.c.l.bf16 %v1918
      %v1951 = vunpack.c.l.bf16 %v1919
      %v1952 = vunpack.c.l.bf16 %v1920
      %v1953 = vunpack.c.l.bf16 %v1921
      %v1954 = vunpack.c.l.bf16 %v1922
      %v1955 = vunpack.c.l.bf16 %v1923
      %v1956 = vunpack.c.l.bf16 %v1924
      %v1957 = vunpack.c.l.bf16 %v1925
      %v1958 = vunpack.c.l.bf16 %v1926
      %v1959 = vunpack.c.l.bf16 %v1927
      %v1960 = vunpack.c.l.bf16 %v1928
      %v1961 = vunpack.c.l.bf16 %v1929
      %v1962 = vunpack.c.l.bf16 %v1930
      %v1963 = vunpack.c.l.bf16 %v1931
      %v1964 = vunpack.c.l.bf16 %v1932
      %v1965 = vunpack.c.l.bf16 %v1933
      %v1966 = vunpack.c.l.bf16 %v1934
      %v1967 = vunpack.c.l.bf16 %v1935
      %v1968 = vunpack.c.l.bf16 %v1936
      %v1969 = vunpack.c.l.bf16 %v1937
      %v1970 = vunpack.c.l.bf16 %v1938
      %v1971 = vunpack.c.l.bf16 %v1939
      %v1972 = vunpack.c.l.bf16 %v1940
      %v1973 = vunpack.c.l.bf16 %v1941
      %v1974 = vunpack.c.l.bf16 %v1942
      %v1975 = vunpack.c.l.bf16 %v1943
      %v1976 = vunpack.c.l.bf16 %v1944
      %2009 = vrot.lane.b32.xlu0 %v1945, 64
      %v2010 = vpop.permute.xlu0 %2009
      %2011 = vrot.lane.b32.xlu0 %v1946, 64
      %v2012 = vpop.permute.xlu0 %2011
      %2013 = vrot.lane.b32.xlu0 %v1947, 64
      %v2014 = vpop.permute.xlu0 %2013
      %2015 = vrot.lane.b32.xlu0 %v1948, 64
      %v2016 = vpop.permute.xlu0 %2015
      %2017 = vrot.lane.b32.xlu0 %v1949, 64
      %v2018 = vpop.permute.xlu0 %2017
      %2019 = vrot.lane.b32.xlu0 %v1950, 64
      %v2020 = vpop.permute.xlu0 %2019
      %2021 = vrot.lane.b32.xlu0 %v1951, 64
      %v2022 = vpop.permute.xlu0 %2021
      %2023 = vrot.lane.b32.xlu0 %v1952, 64
      %v2024 = vpop.permute.xlu0 %2023
      %2025 = vrot.lane.b32.xlu0 %v1953, 64
      %v2026 = vpop.permute.xlu0 %2025
      %2027 = vrot.lane.b32.xlu0 %v1954, 64
      %v2028 = vpop.permute.xlu0 %2027
      %2029 = vrot.lane.b32.xlu0 %v1955, 64
      %v2030 = vpop.permute.xlu0 %2029
      %2031 = vrot.lane.b32.xlu0 %v1956, 64
      %v2032 = vpop.permute.xlu0 %2031
      %2033 = vrot.lane.b32.xlu0 %v1957, 64
      %v2034 = vpop.permute.xlu0 %2033
      %2035 = vrot.lane.b32.xlu0 %v1958, 64
      %v2036 = vpop.permute.xlu0 %2035
      %2037 = vrot.lane.b32.xlu0 %v1959, 64
      %v2038 = vpop.permute.xlu0 %2037
      %2039 = vrot.lane.b32.xlu0 %v1960, 64
      %v2040 = vpop.permute.xlu0 %2039
      %2041 = vrot.lane.b32.xlu0 %v1961, 64
      %v2042 = vpop.permute.xlu0 %2041
      %2043 = vrot.lane.b32.xlu0 %v1962, 64
      %v2044 = vpop.permute.xlu0 %2043
      %2045 = vrot.lane.b32.xlu0 %v1963, 64
      %v2046 = vpop.permute.xlu0 %2045
      %2047 = vrot.lane.b32.xlu0 %v1964, 64
      %v2048 = vpop.permute.xlu0 %2047
      %2049 = vrot.lane.b32.xlu0 %v1965, 64
      %v2050 = vpop.permute.xlu0 %2049
      %2051 = vrot.lane.b32.xlu0 %v1966, 64
      %v2052 = vpop.permute.xlu0 %2051
      %2053 = vrot.lane.b32.xlu0 %v1967, 64
      %v2054 = vpop.permute.xlu0 %2053
      %2055 = vrot.lane.b32.xlu0 %v1968, 64
      %v2056 = vpop.permute.xlu0 %2055
      %2057 = vrot.lane.b32.xlu0 %v1969, 64
      %v2058 = vpop.permute.xlu0 %2057
      %2059 = vrot.lane.b32.xlu0 %v1970, 64
      %v2060 = vpop.permute.xlu0 %2059
      %2061 = vrot.lane.b32.xlu0 %v1971, 64
      %v2062 = vpop.permute.xlu0 %2061
      %2063 = vrot.lane.b32.xlu0 %v1972, 64
      %v2064 = vpop.permute.xlu0 %2063
      %2065 = vrot.lane.b32.xlu0 %v1973, 64
      %v2066 = vpop.permute.xlu0 %2065
      %2067 = vrot.lane.b32.xlu0 %v1974, 64
      %v2068 = vpop.permute.xlu0 %2067
      %2069 = vrot.lane.b32.xlu0 %v1975, 64
      %v2070 = vpop.permute.xlu0 %2069
      %2071 = vrot.lane.b32.xlu0 %v1976, 64
      %v2072 = vpop.permute.xlu0 %2071
      %2105 = vst.msk [vmem:[#allocation2 + $0x8] sm:$0xff] %vm1013, %v2010
      %2106 = vst.msk [vmem:[#allocation2 + $0x20] sm:$0xff] %vm1013, %v2012
      %2107 = vst.msk [vmem:[#allocation2 + $0x38] sm:$0xff] %vm1013, %v2014
      %2108 = vst.msk [vmem:[#allocation2 + $0x50] sm:$0xff] %vm1013, %v2016
      %2109 = vst.msk [vmem:[#allocation2 + $0x68] sm:$0xff] %vm1013, %v2018
      %2110 = vst.msk [vmem:[#allocation2 + $0x80] sm:$0xff] %vm1013, %v2020
      %2111 = vst.msk [vmem:[#allocation2 + $0x98] sm:$0xff] %vm1013, %v2022
      %2112 = vst.msk [vmem:[#allocation2 + $0xb0] sm:$0xff] %vm1013, %v2024
      %2113 = vst.msk [vmem:[#allocation2 + $0xc8] sm:$0xff] %vm1013, %v2026
      %2114 = vst.msk [vmem:[#allocation2 + $0xe0] sm:$0xff] %vm1013, %v2028
      %2115 = vst.msk [vmem:[#allocation2 + $0xf8] sm:$0xff] %vm1013, %v2030
      %2116 = vst.msk [vmem:[#allocation2 + $0x110] sm:$0xff] %vm1013, %v2032
      %2117 = vst.msk [vmem:[#allocation2 + $0x128] sm:$0xff] %vm1013, %v2034
      %2118 = vst.msk [vmem:[#allocation2 + $0x140] sm:$0xff] %vm1013, %v2036
      %2119 = vst.msk [vmem:[#allocation2 + $0x158] sm:$0xff] %vm1013, %v2038
      %2120 = vst.msk [vmem:[#allocation2 + $0x170] sm:$0xff] %vm1013, %v2040
      %2121 = vst.msk [vmem:[#allocation2 + $0x188] sm:$0xff] %vm1013, %v2042
      %2122 = vst.msk [vmem:[#allocation2 + $0x1a0] sm:$0xff] %vm1013, %v2044
      %2123 = vst.msk [vmem:[#allocation2 + $0x1b8] sm:$0xff] %vm1013, %v2046
      %2124 = vst.msk [vmem:[#allocation2 + $0x1d0] sm:$0xff] %vm1013, %v2048
      %2125 = vst.msk [vmem:[#allocation2 + $0x1e8] sm:$0xff] %vm1013, %v2050
      %2126 = vst.msk [vmem:[#allocation2 + $0x200] sm:$0xff] %vm1013, %v2052
      %2127 = vst.msk [vmem:[#allocation2 + $0x218] sm:$0xff] %vm1013, %v2054
      %2128 = vst.msk [vmem:[#allocation2 + $0x230] sm:$0xff] %vm1013, %v2056
      %2129 = vst.msk [vmem:[#allocation2 + $0x248] sm:$0xff] %vm1013, %v2058
      %2130 = vst.msk [vmem:[#allocation2 + $0x260] sm:$0xff] %vm1013, %v2060
      %2131 = vst.msk [vmem:[#allocation2 + $0x278] sm:$0xff] %vm1013, %v2062
      %2132 = vst.msk [vmem:[#allocation2 + $0x290] sm:$0xff] %vm1013, %v2064
      %2133 = vst.msk [vmem:[#allocation2 + $0x2a8] sm:$0xff] %vm1013, %v2066
      %2134 = vst.msk [vmem:[#allocation2 + $0x2c0] sm:$0xff] %vm1013, %v2068
      %2135 = vst.msk [vmem:[#allocation2 + $0x2d8] sm:$0xff] %vm1013, %v2070
      %2136 = vst.msk [vmem:[#allocation2 + $0x2f0] sm:$0xff] %vm1013, %v2072
      %v2137 = vld [vmem:[%s1912] sm:$0xf]
      %v2138 = vld [vmem:[%s1912 + $0x4] sm:$0xf]
      %v2139 = vld [vmem:[%s1912 + $0x8] sm:$0x1]
      %v2140 = vld [vmem:[%s1912 + $0xc] sm:$0xf]
      %v2141 = vld [vmem:[%s1912 + $0x10] sm:$0xf]
      %v2142 = vld [vmem:[%s1912 + $0x14] sm:$0x1]
      %v2143 = vld [vmem:[%s1912 + $0x18] sm:$0xf]
      %v2144 = vld [vmem:[%s1912 + $0x1c] sm:$0xf]
      %v2145 = vld [vmem:[%s1912 + $0x20] sm:$0x1]
      %v2146 = vld [vmem:[%s1912 + $0x24] sm:$0xf]
      %v2147 = vld [vmem:[%s1912 + $0x28] sm:$0xf]
      %v2148 = vld [vmem:[%s1912 + $0x2c] sm:$0x1]
      %v2149 = vld [vmem:[%s1912 + $0x30] sm:$0xf]
      %v2150 = vld [vmem:[%s1912 + $0x34] sm:$0xf]
      %v2151 = vld [vmem:[%s1912 + $0x38] sm:$0x1]
      %v2152 = vld [vmem:[%s1912 + $0x3c] sm:$0xf]
      %v2153 = vld [vmem:[%s1912 + $0x40] sm:$0xf]
      %v2154 = vld [vmem:[%s1912 + $0x44] sm:$0x1]
      %v2155 = vld [vmem:[%s1912 + $0x48] sm:$0xf]
      %v2156 = vld [vmem:[%s1912 + $0x4c] sm:$0xf]
      %v2157 = vld [vmem:[%s1912 + $0x50] sm:$0x1]
      %v2158 = vld [vmem:[%s1912 + $0x54] sm:$0xf]
      %v2159 = vld [vmem:[%s1912 + $0x58] sm:$0xf]
      %v2160 = vld [vmem:[%s1912 + $0x5c] sm:$0x1]
      %v2161 = vld [vmem:[%s1912 + $0x60] sm:$0xf]
      %v2162 = vld [vmem:[%s1912 + $0x64] sm:$0xf]
      %v2163 = vld [vmem:[%s1912 + $0x68] sm:$0x1]
      %v2164 = vld [vmem:[%s1912 + $0x6c] sm:$0xf]
      %v2165 = vld [vmem:[%s1912 + $0x70] sm:$0xf]
      %v2166 = vld [vmem:[%s1912 + $0x74] sm:$0x1]
      %v2167 = vld [vmem:[%s1912 + $0x78] sm:$0xf]
      %v2168 = vld [vmem:[%s1912 + $0x7c] sm:$0xf]
      %v2169 = vld [vmem:[%s1912 + $0x80] sm:$0x1]
      %v2170 = vld [vmem:[%s1912 + $0x84] sm:$0xf]
      %v2171 = vld [vmem:[%s1912 + $0x88] sm:$0xf]
      %v2172 = vld [vmem:[%s1912 + $0x8c] sm:$0x1]
      %v2173 = vld [vmem:[%s1912 + $0x90] sm:$0xf]
      %v2174 = vld [vmem:[%s1912 + $0x94] sm:$0xf]
      %v2175 = vld [vmem:[%s1912 + $0x98] sm:$0x1]
      %v2176 = vld [vmem:[%s1912 + $0x9c] sm:$0xf]
      %v2177 = vld [vmem:[%s1912 + $0xa0] sm:$0xf]
      %v2178 = vld [vmem:[%s1912 + $0xa4] sm:$0x1]
      %v2179 = vld [vmem:[%s1912 + $0xa8] sm:$0xf]
      %v2180 = vld [vmem:[%s1912 + $0xac] sm:$0xf]
      %v2181 = vld [vmem:[%s1912 + $0xb0] sm:$0x1]
      %v2182 = vld [vmem:[%s1912 + $0xb4] sm:$0xf]
      %v2183 = vld [vmem:[%s1912 + $0xb8] sm:$0xf]
      %v2184 = vld [vmem:[%s1912 + $0xbc] sm:$0x1]
      %v2185 = vunpack.c.l.bf16 %v2137
      %v2186 = vunpack.c.l.bf16 %v2138
      %v2187 = vunpack.c.l.bf16 %v2139
      %v2188 = vunpack.c.l.bf16 %v2140
      %v2189 = vunpack.c.l.bf16 %v2141
      %v2190 = vunpack.c.l.bf16 %v2142
      %v2191 = vunpack.c.l.bf16 %v2143
      %v2192 = vunpack.c.l.bf16 %v2144
      %v2193 = vunpack.c.l.bf16 %v2145
      %v2194 = vunpack.c.l.bf16 %v2146
      %v2195 = vunpack.c.l.bf16 %v2147
      %v2196 = vunpack.c.l.bf16 %v2148
      %v2197 = vunpack.c.l.bf16 %v2149
      %v2198 = vunpack.c.l.bf16 %v2150
      %v2199 = vunpack.c.l.bf16 %v2151
      %v2200 = vunpack.c.l.bf16 %v2152
      %v2201 = vunpack.c.l.bf16 %v2153
      %v2202 = vunpack.c.l.bf16 %v2154
      %v2203 = vunpack.c.l.bf16 %v2155
      %v2204 = vunpack.c.l.bf16 %v2156
      %v2205 = vunpack.c.l.bf16 %v2157
      %v2206 = vunpack.c.l.bf16 %v2158
      %v2207 = vunpack.c.l.bf16 %v2159
      %v2208 = vunpack.c.l.bf16 %v2160
      %v2209 = vunpack.c.l.bf16 %v2161
      %v2210 = vunpack.c.l.bf16 %v2162
      %v2211 = vunpack.c.l.bf16 %v2163
      %v2212 = vunpack.c.l.bf16 %v2164
      %v2213 = vunpack.c.l.bf16 %v2165
      %v2214 = vunpack.c.l.bf16 %v2166
      %v2215 = vunpack.c.l.bf16 %v2167
      %v2216 = vunpack.c.l.bf16 %v2168
      %v2217 = vunpack.c.l.bf16 %v2169
      %v2218 = vunpack.c.l.bf16 %v2170
      %v2219 = vunpack.c.l.bf16 %v2171
      %v2220 = vunpack.c.l.bf16 %v2172
      %v2221 = vunpack.c.l.bf16 %v2173
      %v2222 = vunpack.c.l.bf16 %v2174
      %v2223 = vunpack.c.l.bf16 %v2175
      %v2224 = vunpack.c.l.bf16 %v2176
      %v2225 = vunpack.c.l.bf16 %v2177
      %v2226 = vunpack.c.l.bf16 %v2178
      %v2227 = vunpack.c.l.bf16 %v2179
      %v2228 = vunpack.c.l.bf16 %v2180
      %v2229 = vunpack.c.l.bf16 %v2181
      %v2230 = vunpack.c.l.bf16 %v2182
      %v2231 = vunpack.c.l.bf16 %v2183
      %v2232 = vunpack.c.l.bf16 %v2184
      %v2281 = vrot.slane %v2185, 1
      %v2282 = vrot.slane %v2186, 1
      %v2283 = vsel %vm482, %v2281, %v2282
      %v2284 = vrot.slane %v2187, 1
      %v2285 = vsel %vm482, %v2282, %v2284
      %v2286 = vrot.slane %v2188, 1
      %v2287 = vrot.slane %v2189, 1
      %v2288 = vsel %vm482, %v2286, %v2287
      %v2289 = vrot.slane %v2190, 1
      %v2290 = vsel %vm482, %v2287, %v2289
      %v2291 = vrot.slane %v2191, 1
      %v2292 = vrot.slane %v2192, 1
      %v2293 = vsel %vm482, %v2291, %v2292
      %v2294 = vrot.slane %v2193, 1
      %v2295 = vsel %vm482, %v2292, %v2294
      %v2296 = vrot.slane %v2194, 1
      %v2297 = vrot.slane %v2195, 1
      %v2298 = vsel %vm482, %v2296, %v2297
      %v2299 = vrot.slane %v2196, 1
      %v2300 = vsel %vm482, %v2297, %v2299
      %v2301 = vrot.slane %v2197, 1
      %v2302 = vrot.slane %v2198, 1
      %v2303 = vsel %vm482, %v2301, %v2302
      %v2304 = vrot.slane %v2199, 1
      %v2305 = vsel %vm482, %v2302, %v2304
      %v2306 = vrot.slane %v2200, 1
      %v2307 = vrot.slane %v2201, 1
      %v2308 = vsel %vm482, %v2306, %v2307
      %v2309 = vrot.slane %v2202, 1
      %v2310 = vsel %vm482, %v2307, %v2309
      %v2311 = vrot.slane %v2203, 1
      %v2312 = vrot.slane %v2204, 1
      %v2313 = vsel %vm482, %v2311, %v2312
      %v2314 = vrot.slane %v2205, 1
      %v2315 = vsel %vm482, %v2312, %v2314
      %v2316 = vrot.slane %v2206, 1
      %v2317 = vrot.slane %v2207, 1
      %v2318 = vsel %vm482, %v2316, %v2317
      %v2319 = vrot.slane %v2208, 1
      %v2320 = vsel %vm482, %v2317, %v2319
      %v2321 = vrot.slane %v2209, 1
      %v2322 = vrot.slane %v2210, 1
      %v2323 = vsel %vm482, %v2321, %v2322
      %v2324 = vrot.slane %v2211, 1
      %v2325 = vsel %vm482, %v2322, %v2324
      %v2326 = vrot.slane %v2212, 1
      %v2327 = vrot.slane %v2213, 1
      %v2328 = vsel %vm482, %v2326, %v2327
      %v2329 = vrot.slane %v2214, 1
      %v2330 = vsel %vm482, %v2327, %v2329
      %v2331 = vrot.slane %v2215, 1
      %v2332 = vrot.slane %v2216, 1
      %v2333 = vsel %vm482, %v2331, %v2332
      %v2334 = vrot.slane %v2217, 1
      %v2335 = vsel %vm482, %v2332, %v2334
      %v2336 = vrot.slane %v2218, 1
      %v2337 = vrot.slane %v2219, 1
      %v2338 = vsel %vm482, %v2336, %v2337
      %v2339 = vrot.slane %v2220, 1
      %v2340 = vsel %vm482, %v2337, %v2339
      %v2341 = vrot.slane %v2221, 1
      %v2342 = vrot.slane %v2222, 1
      %v2343 = vsel %vm482, %v2341, %v2342
      %v2344 = vrot.slane %v2223, 1
      %v2345 = vsel %vm482, %v2342, %v2344
      %v2346 = vrot.slane %v2224, 1
      %v2347 = vrot.slane %v2225, 1
      %v2348 = vsel %vm482, %v2346, %v2347
      %v2349 = vrot.slane %v2226, 1
      %v2350 = vsel %vm482, %v2347, %v2349
      %v2351 = vrot.slane %v2227, 1
      %v2352 = vrot.slane %v2228, 1
      %v2353 = vsel %vm482, %v2351, %v2352
      %v2354 = vrot.slane %v2229, 1
      %v2355 = vsel %vm482, %v2352, %v2354
      %v2356 = vrot.slane %v2230, 1
      %v2357 = vrot.slane %v2231, 1
      %v2358 = vsel %vm482, %v2356, %v2357
      %v2359 = vrot.slane %v2232, 1
      %v2360 = vsel %vm482, %v2357, %v2359
      %2361 = vrot.lane.b32.xlu0 %v2283, 96
      %v2362 = vpop.permute.xlu0 %2361
      %2363 = vrot.lane.b32.xlu0 %v2285, 96
      %v2364 = vpop.permute.xlu0 %2363
      %2365 = vrot.lane.b32.xlu0 %v2288, 96
      %v2366 = vpop.permute.xlu0 %2365
      %2367 = vrot.lane.b32.xlu0 %v2290, 96
      %v2368 = vpop.permute.xlu0 %2367
      %2369 = vrot.lane.b32.xlu0 %v2293, 96
      %v2370 = vpop.permute.xlu0 %2369
      %2371 = vrot.lane.b32.xlu0 %v2295, 96
      %v2372 = vpop.permute.xlu0 %2371
      %2373 = vrot.lane.b32.xlu0 %v2298, 96
      %v2374 = vpop.permute.xlu0 %2373
      %2375 = vrot.lane.b32.xlu0 %v2300, 96
      %v2376 = vpop.permute.xlu0 %2375
      %2377 = vrot.lane.b32.xlu0 %v2303, 96
      %v2378 = vpop.permute.xlu0 %2377
      %2379 = vrot.lane.b32.xlu0 %v2305, 96
      %v2380 = vpop.permute.xlu0 %2379
      %2381 = vrot.lane.b32.xlu0 %v2308, 96
      %v2382 = vpop.permute.xlu0 %2381
      %2383 = vrot.lane.b32.xlu0 %v2310, 96
      %v2384 = vpop.permute.xlu0 %2383
      %2385 = vrot.lane.b32.xlu0 %v2313, 96
      %v2386 = vpop.permute.xlu0 %2385
      %2387 = vrot.lane.b32.xlu0 %v2315, 96
      %v2388 = vpop.permute.xlu0 %2387
      %2389 = vrot.lane.b32.xlu0 %v2318, 96
      %v2390 = vpop.permute.xlu0 %2389
      %2391 = vrot.lane.b32.xlu0 %v2320, 96
      %v2392 = vpop.permute.xlu0 %2391
      %2393 = vrot.lane.b32.xlu0 %v2323, 96
      %v2394 = vpop.permute.xlu0 %2393
      %2395 = vrot.lane.b32.xlu0 %v2325, 96
      %v2396 = vpop.permute.xlu0 %2395
      %2397 = vrot.lane.b32.xlu0 %v2328, 96
      %v2398 = vpop.permute.xlu0 %2397
      %2399 = vrot.lane.b32.xlu0 %v2330, 96
      %v2400 = vpop.permute.xlu0 %2399
      %2401 = vrot.lane.b32.xlu0 %v2333, 96
      %v2402 = vpop.permute.xlu0 %2401
      %2403 = vrot.lane.b32.xlu0 %v2335, 96
      %v2404 = vpop.permute.xlu0 %2403
      %2405 = vrot.lane.b32.xlu0 %v2338, 96
      %v2406 = vpop.permute.xlu0 %2405
      %2407 = vrot.lane.b32.xlu0 %v2340, 96
      %v2408 = vpop.permute.xlu0 %2407
      %2409 = vrot.lane.b32.xlu0 %v2343, 96
      %v2410 = vpop.permute.xlu0 %2409
      %2411 = vrot.lane.b32.xlu0 %v2345, 96
      %v2412 = vpop.permute.xlu0 %2411
      %2413 = vrot.lane.b32.xlu0 %v2348, 96
      %v2414 = vpop.permute.xlu0 %2413
      %2415 = vrot.lane.b32.xlu0 %v2350, 96
      %v2416 = vpop.permute.xlu0 %2415
      %2417 = vrot.lane.b32.xlu0 %v2353, 96
      %v2418 = vpop.permute.xlu0 %2417
      %2419 = vrot.lane.b32.xlu0 %v2355, 96
      %v2420 = vpop.permute.xlu0 %2419
      %2421 = vrot.lane.b32.xlu0 %v2358, 96
      %v2422 = vpop.permute.xlu0 %2421
      %2423 = vrot.lane.b32.xlu0 %v2360, 96
      %v2424 = vpop.permute.xlu0 %2423
      %2457 = vst.msk [vmem:[#allocation2 + $0x8] sm:$0xff] %vm1239, %v2362
      %2458 = vst.msk [vmem:[#allocation2 + $0x20] sm:$0xff] %vm1239, %v2364
      %2459 = vst.msk [vmem:[#allocation2 + $0x38] sm:$0xff] %vm1239, %v2366
      %2460 = vst.msk [vmem:[#allocation2 + $0x50] sm:$0xff] %vm1239, %v2368
      %2461 = vst.msk [vmem:[#allocation2 + $0x68] sm:$0xff] %vm1239, %v2370
      %2462 = vst.msk [vmem:[#allocation2 + $0x80] sm:$0xff] %vm1239, %v2372
      %2463 = vst.msk [vmem:[#allocation2 + $0x98] sm:$0xff] %vm1239, %v2374
      %2464 = vst.msk [vmem:[#allocation2 + $0xb0] sm:$0xff] %vm1239, %v2376
      %2465 = vst.msk [vmem:[#allocation2 + $0xc8] sm:$0xff] %vm1239, %v2378
      %2466 = vst.msk [vmem:[#allocation2 + $0xe0] sm:$0xff] %vm1239, %v2380
      %2467 = vst.msk [vmem:[#allocation2 + $0xf8] sm:$0xff] %vm1239, %v2382
      %2468 = vst.msk [vmem:[#allocation2 + $0x110] sm:$0xff] %vm1239, %v2384
      %2469 = vst.msk [vmem:[#allocation2 + $0x128] sm:$0xff] %vm1239, %v2386
      %2470 = vst.msk [vmem:[#allocation2 + $0x140] sm:$0xff] %vm1239, %v2388
      %2471 = vst.msk [vmem:[#allocation2 + $0x158] sm:$0xff] %vm1239, %v2390
      %2472 = vst.msk [vmem:[#allocation2 + $0x170] sm:$0xff] %vm1239, %v2392
      %2473 = vst.msk [vmem:[#allocation2 + $0x188] sm:$0xff] %vm1239, %v2394
      %2474 = vst.msk [vmem:[#allocation2 + $0x1a0] sm:$0xff] %vm1239, %v2396
      %2475 = vst.msk [vmem:[#allocation2 + $0x1b8] sm:$0xff] %vm1239, %v2398
      %2476 = vst.msk [vmem:[#allocation2 + $0x1d0] sm:$0xff] %vm1239, %v2400
      %2477 = vst.msk [vmem:[#allocation2 + $0x1e8] sm:$0xff] %vm1239, %v2402
      %2478 = vst.msk [vmem:[#allocation2 + $0x200] sm:$0xff] %vm1239, %v2404
      %2479 = vst.msk [vmem:[#allocation2 + $0x218] sm:$0xff] %vm1239, %v2406
      %2480 = vst.msk [vmem:[#allocation2 + $0x230] sm:$0xff] %vm1239, %v2408
      %2481 = vst.msk [vmem:[#allocation2 + $0x248] sm:$0xff] %vm1239, %v2410
      %2482 = vst.msk [vmem:[#allocation2 + $0x260] sm:$0xff] %vm1239, %v2412
      %2483 = vst.msk [vmem:[#allocation2 + $0x278] sm:$0xff] %vm1239, %v2414
      %2484 = vst.msk [vmem:[#allocation2 + $0x290] sm:$0xff] %vm1239, %v2416
      %2485 = vst.msk [vmem:[#allocation2 + $0x2a8] sm:$0xff] %vm1239, %v2418
      %2486 = vst.msk [vmem:[#allocation2 + $0x2c0] sm:$0xff] %vm1239, %v2420
      %2487 = vst.msk [vmem:[#allocation2 + $0x2d8] sm:$0xff] %vm1239, %v2422
      %2488 = vst.msk [vmem:[#allocation2 + $0x2f0] sm:$0xff] %vm1239, %v2424
      %v2489 = vld [vmem:[%s1912] sm:$0xe]
      %v2490 = vld [vmem:[%s1912 + $0x4] sm:$0xf]
      %v2491 = vld [vmem:[%s1912 + $0x8] sm:$0x1]
      %v2492 = vld [vmem:[%s1912 + $0xc] sm:$0xe]
      %v2493 = vld [vmem:[%s1912 + $0x10] sm:$0xf]
      %v2494 = vld [vmem:[%s1912 + $0x14] sm:$0x1]
      %v2495 = vld [vmem:[%s1912 + $0x18] sm:$0xe]
      %v2496 = vld [vmem:[%s1912 + $0x1c] sm:$0xf]
      %v2497 = vld [vmem:[%s1912 + $0x20] sm:$0x1]
      %v2498 = vld [vmem:[%s1912 + $0x24] sm:$0xe]
      %v2499 = vld [vmem:[%s1912 + $0x28] sm:$0xf]
      %v2500 = vld [vmem:[%s1912 + $0x2c] sm:$0x1]
      %v2501 = vld [vmem:[%s1912 + $0x30] sm:$0xe]
      %v2502 = vld [vmem:[%s1912 + $0x34] sm:$0xf]
      %v2503 = vld [vmem:[%s1912 + $0x38] sm:$0x1]
      %v2504 = vld [vmem:[%s1912 + $0x3c] sm:$0xe]
      %v2505 = vld [vmem:[%s1912 + $0x40] sm:$0xf]
      %v2506 = vld [vmem:[%s1912 + $0x44] sm:$0x1]
      %v2507 = vld [vmem:[%s1912 + $0x48] sm:$0xe]
      %v2508 = vld [vmem:[%s1912 + $0x4c] sm:$0xf]
      %v2509 = vld [vmem:[%s1912 + $0x50] sm:$0x1]
      %v2510 = vld [vmem:[%s1912 + $0x54] sm:$0xe]
      %v2511 = vld [vmem:[%s1912 + $0x58] sm:$0xf]
      %v2512 = vld [vmem:[%s1912 + $0x5c] sm:$0x1]
      %v2513 = vld [vmem:[%s1912 + $0x60] sm:$0xe]
      %v2514 = vld [vmem:[%s1912 + $0x64] sm:$0xf]
      %v2515 = vld [vmem:[%s1912 + $0x68] sm:$0x1]
      %v2516 = vld [vmem:[%s1912 + $0x6c] sm:$0xe]
      %v2517 = vld [vmem:[%s1912 + $0x70] sm:$0xf]
      %v2518 = vld [vmem:[%s1912 + $0x74] sm:$0x1]
      %v2519 = vld [vmem:[%s1912 + $0x78] sm:$0xe]
      %v2520 = vld [vmem:[%s1912 + $0x7c] sm:$0xf]
      %v2521 = vld [vmem:[%s1912 + $0x80] sm:$0x1]
      %v2522 = vld [vmem:[%s1912 + $0x84] sm:$0xe]
      %v2523 = vld [vmem:[%s1912 + $0x88] sm:$0xf]
      %v2524 = vld [vmem:[%s1912 + $0x8c] sm:$0x1]
      %v2525 = vld [vmem:[%s1912 + $0x90] sm:$0xe]
      %v2526 = vld [vmem:[%s1912 + $0x94] sm:$0xf]
      %v2527 = vld [vmem:[%s1912 + $0x98] sm:$0x1]
      %v2528 = vld [vmem:[%s1912 + $0x9c] sm:$0xe]
      %v2529 = vld [vmem:[%s1912 + $0xa0] sm:$0xf]
      %v2530 = vld [vmem:[%s1912 + $0xa4] sm:$0x1]
      %v2531 = vld [vmem:[%s1912 + $0xa8] sm:$0xe]
      %v2532 = vld [vmem:[%s1912 + $0xac] sm:$0xf]
      %v2533 = vld [vmem:[%s1912 + $0xb0] sm:$0x1]
      %v2534 = vld [vmem:[%s1912 + $0xb4] sm:$0xe]
      %v2535 = vld [vmem:[%s1912 + $0xb8] sm:$0xf]
      %v2536 = vld [vmem:[%s1912 + $0xbc] sm:$0x1]
      %v2537 = vunpack.c.l.bf16 %v2489
      %v2538 = vunpack.c.l.bf16 %v2490
      %v2539 = vunpack.c.l.bf16 %v2491
      %v2540 = vunpack.c.l.bf16 %v2492
      %v2541 = vunpack.c.l.bf16 %v2493
      %v2542 = vunpack.c.l.bf16 %v2494
      %v2543 = vunpack.c.l.bf16 %v2495
      %v2544 = vunpack.c.l.bf16 %v2496
      %v2545 = vunpack.c.l.bf16 %v2497
      %v2546 = vunpack.c.l.bf16 %v2498
      %v2547 = vunpack.c.l.bf16 %v2499
      %v2548 = vunpack.c.l.bf16 %v2500
      %v2549 = vunpack.c.l.bf16 %v2501
      %v2550 = vunpack.c.l.bf16 %v2502
      %v2551 = vunpack.c.l.bf16 %v2503
      %v2552 = vunpack.c.l.bf16 %v2504
      %v2553 = vunpack.c.l.bf16 %v2505
      %v2554 = vunpack.c.l.bf16 %v2506
      %v2555 = vunpack.c.l.bf16 %v2507
      %v2556 = vunpack.c.l.bf16 %v2508
      %v2557 = vunpack.c.l.bf16 %v2509
      %v2558 = vunpack.c.l.bf16 %v2510
      %v2559 = vunpack.c.l.bf16 %v2511
      %v2560 = vunpack.c.l.bf16 %v2512
      %v2561 = vunpack.c.l.bf16 %v2513
      %v2562 = vunpack.c.l.bf16 %v2514
      %v2563 = vunpack.c.l.bf16 %v2515
      %v2564 = vunpack.c.l.bf16 %v2516
      %v2565 = vunpack.c.l.bf16 %v2517
      %v2566 = vunpack.c.l.bf16 %v2518
      %v2567 = vunpack.c.l.bf16 %v2519
      %v2568 = vunpack.c.l.bf16 %v2520
      %v2569 = vunpack.c.l.bf16 %v2521
      %v2570 = vunpack.c.l.bf16 %v2522
      %v2571 = vunpack.c.l.bf16 %v2523
      %v2572 = vunpack.c.l.bf16 %v2524
      %v2573 = vunpack.c.l.bf16 %v2525
      %v2574 = vunpack.c.l.bf16 %v2526
      %v2575 = vunpack.c.l.bf16 %v2527
      %v2576 = vunpack.c.l.bf16 %v2528
      %v2577 = vunpack.c.l.bf16 %v2529
      %v2578 = vunpack.c.l.bf16 %v2530
      %v2579 = vunpack.c.l.bf16 %v2531
      %v2580 = vunpack.c.l.bf16 %v2532
      %v2581 = vunpack.c.l.bf16 %v2533
      %v2582 = vunpack.c.l.bf16 %v2534
      %v2583 = vunpack.c.l.bf16 %v2535
      %v2584 = vunpack.c.l.bf16 %v2536
      %v2633 = vrot.slane %v2537, 2
      %v2634 = vrot.slane %v2538, 2
      %v2635 = vsel %vm836, %v2633, %v2634
      %v2636 = vrot.slane %v2539, 2
      %v2637 = vsel %vm836, %v2634, %v2636
      %v2638 = vrot.slane %v2540, 2
      %v2639 = vrot.slane %v2541, 2
      %v2640 = vsel %vm836, %v2638, %v2639
      %v2641 = vrot.slane %v2542, 2
      %v2642 = vsel %vm836, %v2639, %v2641
      %v2643 = vrot.slane %v2543, 2
      %v2644 = vrot.slane %v2544, 2
      %v2645 = vsel %vm836, %v2643, %v2644
      %v2646 = vrot.slane %v2545, 2
      %v2647 = vsel %vm836, %v2644, %v2646
      %v2648 = vrot.slane %v2546, 2
      %v2649 = vrot.slane %v2547, 2
      %v2650 = vsel %vm836, %v2648, %v2649
      %v2651 = vrot.slane %v2548, 2
      %v2652 = vsel %vm836, %v2649, %v2651
      %v2653 = vrot.slane %v2549, 2
      %v2654 = vrot.slane %v2550, 2
      %v2655 = vsel %vm836, %v2653, %v2654
      %v2656 = vrot.slane %v2551, 2
      %v2657 = vsel %vm836, %v2654, %v2656
      %v2658 = vrot.slane %v2552, 2
      %v2659 = vrot.slane %v2553, 2
      %v2660 = vsel %vm836, %v2658, %v2659
      %v2661 = vrot.slane %v2554, 2
      %v2662 = vsel %vm836, %v2659, %v2661
      %v2663 = vrot.slane %v2555, 2
      %v2664 = vrot.slane %v2556, 2
      %v2665 = vsel %vm836, %v2663, %v2664
      %v2666 = vrot.slane %v2557, 2
      %v2667 = vsel %vm836, %v2664, %v2666
      %v2668 = vrot.slane %v2558, 2
      %v2669 = vrot.slane %v2559, 2
      %v2670 = vsel %vm836, %v2668, %v2669
      %v2671 = vrot.slane %v2560, 2
      %v2672 = vsel %vm836, %v2669, %v2671
      %v2673 = vrot.slane %v2561, 2
      %v2674 = vrot.slane %v2562, 2
      %v2675 = vsel %vm836, %v2673, %v2674
      %v2676 = vrot.slane %v2563, 2
      %v2677 = vsel %vm836, %v2674, %v2676
      %v2678 = vrot.slane %v2564, 2
      %v2679 = vrot.slane %v2565, 2
      %v2680 = vsel %vm836, %v2678, %v2679
      %v2681 = vrot.slane %v2566, 2
      %v2682 = vsel %vm836, %v2679, %v2681
      %v2683 = vrot.slane %v2567, 2
      %v2684 = vrot.slane %v2568, 2
      %v2685 = vsel %vm836, %v2683, %v2684
      %v2686 = vrot.slane %v2569, 2
      %v2687 = vsel %vm836, %v2684, %v2686
      %v2688 = vrot.slane %v2570, 2
      %v2689 = vrot.slane %v2571, 2
      %v2690 = vsel %vm836, %v2688, %v2689
      %v2691 = vrot.slane %v2572, 2
      %v2692 = vsel %vm836, %v2689, %v2691
      %v2693 = vrot.slane %v2573, 2
      %v2694 = vrot.slane %v2574, 2
      %v2695 = vsel %vm836, %v2693, %v2694
      %v2696 = vrot.slane %v2575, 2
      %v2697 = vsel %vm836, %v2694, %v2696
      %v2698 = vrot.slane %v2576, 2
      %v2699 = vrot.slane %v2577, 2
      %v2700 = vsel %vm836, %v2698, %v2699
      %v2701 = vrot.slane %v2578, 2
      %v2702 = vsel %vm836, %v2699, %v2701
      %v2703 = vrot.slane %v2579, 2
      %v2704 = vrot.slane %v2580, 2
      %v2705 = vsel %vm836, %v2703, %v2704
      %v2706 = vrot.slane %v2581, 2
      %v2707 = vsel %vm836, %v2704, %v2706
      %v2708 = vrot.slane %v2582, 2
      %v2709 = vrot.slane %v2583, 2
      %v2710 = vsel %vm836, %v2708, %v2709
      %v2711 = vrot.slane %v2584, 2
      %v2712 = vsel %vm836, %v2709, %v2711
      %2745 = vst.msk [vmem:[#allocation2 + $0x10] sm:$0xff] %vm305, %v2635
      %2746 = vst.msk [vmem:[#allocation2 + $0x28] sm:$0xff] %vm305, %v2637
      %2747 = vst.msk [vmem:[#allocation2 + $0x40] sm:$0xff] %vm305, %v2640
      %2748 = vst.msk [vmem:[#allocation2 + $0x58] sm:$0xff] %vm305, %v2642
      %2749 = vst.msk [vmem:[#allocation2 + $0x70] sm:$0xff] %vm305, %v2645
      %2750 = vst.msk [vmem:[#allocation2 + $0x88] sm:$0xff] %vm305, %v2647
      %2751 = vst.msk [vmem:[#allocation2 + $0xa0] sm:$0xff] %vm305, %v2650
      %2752 = vst.msk [vmem:[#allocation2 + $0xb8] sm:$0xff] %vm305, %v2652
      %2753 = vst.msk [vmem:[#allocation2 + $0xd0] sm:$0xff] %vm305, %v2655
      %2754 = vst.msk [vmem:[#allocation2 + $0xe8] sm:$0xff] %vm305, %v2657
      %2755 = vst.msk [vmem:[#allocation2 + $0x100] sm:$0xff] %vm305, %v2660
      %2756 = vst.msk [vmem:[#allocation2 + $0x118] sm:$0xff] %vm305, %v2662
      %2757 = vst.msk [vmem:[#allocation2 + $0x130] sm:$0xff] %vm305, %v2665
      %2758 = vst.msk [vmem:[#allocation2 + $0x148] sm:$0xff] %vm305, %v2667
      %2759 = vst.msk [vmem:[#allocation2 + $0x160] sm:$0xff] %vm305, %v2670
      %2760 = vst.msk [vmem:[#allocation2 + $0x178] sm:$0xff] %vm305, %v2672
      %2761 = vst.msk [vmem:[#allocation2 + $0x190] sm:$0xff] %vm305, %v2675
      %2762 = vst.msk [vmem:[#allocation2 + $0x1a8] sm:$0xff] %vm305, %v2677
      %2763 = vst.msk [vmem:[#allocation2 + $0x1c0] sm:$0xff] %vm305, %v2680
      %2764 = vst.msk [vmem:[#allocation2 + $0x1d8] sm:$0xff] %vm305, %v2682
      %2765 = vst.msk [vmem:[#allocation2 + $0x1f0] sm:$0xff] %vm305, %v2685
      %2766 = vst.msk [vmem:[#allocation2 + $0x208] sm:$0xff] %vm305, %v2687
      %2767 = vst.msk [vmem:[#allocation2 + $0x220] sm:$0xff] %vm305, %v2690
      %2768 = vst.msk [vmem:[#allocation2 + $0x238] sm:$0xff] %vm305, %v2692
      %2769 = vst.msk [vmem:[#allocation2 + $0x250] sm:$0xff] %vm305, %v2695
      %2770 = vst.msk [vmem:[#allocation2 + $0x268] sm:$0xff] %vm305, %v2697
      %2771 = vst.msk [vmem:[#allocation2 + $0x280] sm:$0xff] %vm305, %v2700
      %2772 = vst.msk [vmem:[#allocation2 + $0x298] sm:$0xff] %vm305, %v2702
      %2773 = vst.msk [vmem:[#allocation2 + $0x2b0] sm:$0xff] %vm305, %v2705
      %2774 = vst.msk [vmem:[#allocation2 + $0x2c8] sm:$0xff] %vm305, %v2707
      %2775 = vst.msk [vmem:[#allocation2 + $0x2e0] sm:$0xff] %vm305, %v2710
      %2776 = vst.msk [vmem:[#allocation2 + $0x2f8] sm:$0xff] %vm305, %v2712
      %v2777 = vld [vmem:[#allocation2] sm:$0xff]
      %v2778 = vld [vmem:[#allocation2 + $0x8] sm:$0xff]
      %v2779 = vld [vmem:[#allocation2 + $0x10] sm:$0xff]
      %v2780 = vld [vmem:[#allocation2 + $0x18] sm:$0xff]
      %v2781 = vld [vmem:[#allocation2 + $0x20] sm:$0xff]
      %v2782 = vld [vmem:[#allocation2 + $0x28] sm:$0xff]
      %v2783 = vld [vmem:[#allocation2 + $0x30] sm:$0xff]
      %v2784 = vld [vmem:[#allocation2 + $0x38] sm:$0xff]
      %v2785 = vld [vmem:[#allocation2 + $0x40] sm:$0xff]
      %v2786 = vld [vmem:[#allocation2 + $0x48] sm:$0xff]
      %v2787 = vld [vmem:[#allocation2 + $0x50] sm:$0xff]
      %v2788 = vld [vmem:[#allocation2 + $0x58] sm:$0xff]
      %v2789 = vld [vmem:[#allocation2 + $0x60] sm:$0xff]
      %v2790 = vld [vmem:[#allocation2 + $0x68] sm:$0xff]
      %v2791 = vld [vmem:[#allocation2 + $0x70] sm:$0xff]
      %v2792 = vld [vmem:[#allocation2 + $0x78] sm:$0xff]
      %v2793 = vld [vmem:[#allocation2 + $0x80] sm:$0xff]
      %v2794 = vld [vmem:[#allocation2 + $0x88] sm:$0xff]
      %v2795 = vld [vmem:[#allocation2 + $0x90] sm:$0xff]
      %v2796 = vld [vmem:[#allocation2 + $0x98] sm:$0xff]
      %v2797 = vld [vmem:[#allocation2 + $0xa0] sm:$0xff]
      %v2798 = vld [vmem:[#allocation2 + $0xa8] sm:$0xff]
      %v2799 = vld [vmem:[#allocation2 + $0xb0] sm:$0xff]
      %v2800 = vld [vmem:[#allocation2 + $0xb8] sm:$0xff]
      %v2801 = vld [vmem:[#allocation2 + $0xc0] sm:$0xff]
      %v2802 = vld [vmem:[#allocation2 + $0xc8] sm:$0xff]
      %v2803 = vld [vmem:[#allocation2 + $0xd0] sm:$0xff]
      %v2804 = vld [vmem:[#allocation2 + $0xd8] sm:$0xff]
      %v2805 = vld [vmem:[#allocation2 + $0xe0] sm:$0xff]
      %v2806 = vld [vmem:[#allocation2 + $0xe8] sm:$0xff]
      %v2807 = vld [vmem:[#allocation2 + $0xf0] sm:$0xff]
      %v2808 = vld [vmem:[#allocation2 + $0xf8] sm:$0xff]
      %v2809 = vld [vmem:[#allocation2 + $0x100] sm:$0xff]
      %v2810 = vld [vmem:[#allocation2 + $0x108] sm:$0xff]
      %v2811 = vld [vmem:[#allocation2 + $0x110] sm:$0xff]
      %v2812 = vld [vmem:[#allocation2 + $0x118] sm:$0xff]
      %v2813 = vld [vmem:[#allocation2 + $0x120] sm:$0xff]
      %v2814 = vld [vmem:[#allocation2 + $0x128] sm:$0xff]
      %v2815 = vld [vmem:[#allocation2 + $0x130] sm:$0xff]
      %v2816 = vld [vmem:[#allocation2 + $0x138] sm:$0xff]
      %v2817 = vld [vmem:[#allocation2 + $0x140] sm:$0xff]
      %v2818 = vld [vmem:[#allocation2 + $0x148] sm:$0xff]
      %v2819 = vld [vmem:[#allocation2 + $0x150] sm:$0xff]
      %v2820 = vld [vmem:[#allocation2 + $0x158] sm:$0xff]
      %v2821 = vld [vmem:[#allocation2 + $0x160] sm:$0xff]
      %v2822 = vld [vmem:[#allocation2 + $0x168] sm:$0xff]
      %v2823 = vld [vmem:[#allocation2 + $0x170] sm:$0xff]
      %v2824 = vld [vmem:[#allocation2 + $0x178] sm:$0xff]
      %v2825 = vld [vmem:[#allocation2 + $0x180] sm:$0xff]
      %v2826 = vld [vmem:[#allocation2 + $0x188] sm:$0xff]
      %v2827 = vld [vmem:[#allocation2 + $0x190] sm:$0xff]
      %v2828 = vld [vmem:[#allocation2 + $0x198] sm:$0xff]
      %v2829 = vld [vmem:[#allocation2 + $0x1a0] sm:$0xff]
      %v2830 = vld [vmem:[#allocation2 + $0x1a8] sm:$0xff]
      %v2831 = vld [vmem:[#allocation2 + $0x1b0] sm:$0xff]
      %v2832 = vld [vmem:[#allocation2 + $0x1b8] sm:$0xff]
      %v2833 = vld [vmem:[#allocation2 + $0x1c0] sm:$0xff]
      %v2834 = vld [vmem:[#allocation2 + $0x1c8] sm:$0xff]
      %v2835 = vld [vmem:[#allocation2 + $0x1d0] sm:$0xff]
      %v2836 = vld [vmem:[#allocation2 + $0x1d8] sm:$0xff]
      %v2837 = vld [vmem:[#allocation2 + $0x1e0] sm:$0xff]
      %v2838 = vld [vmem:[#allocation2 + $0x1e8] sm:$0xff]
      %v2839 = vld [vmem:[#allocation2 + $0x1f0] sm:$0xff]
      %v2840 = vld [vmem:[#allocation2 + $0x1f8] sm:$0xff]
      %v2841 = vld [vmem:[#allocation2 + $0x200] sm:$0xff]
      %v2842 = vld [vmem:[#allocation2 + $0x208] sm:$0xff]
      %v2843 = vld [vmem:[#allocation2 + $0x210] sm:$0xff]
      %v2844 = vld [vmem:[#allocation2 + $0x218] sm:$0xff]
      %v2845 = vld [vmem:[#allocation2 + $0x220] sm:$0xff]
      %v2846 = vld [vmem:[#allocation2 + $0x228] sm:$0xff]
      %v2847 = vld [vmem:[#allocation2 + $0x230] sm:$0xff]
      %v2848 = vld [vmem:[#allocation2 + $0x238] sm:$0xff]
      %v2849 = vld [vmem:[#allocation2 + $0x240] sm:$0xff]
      %v2850 = vld [vmem:[#allocation2 + $0x248] sm:$0xff]
      %v2851 = vld [vmem:[#allocation2 + $0x250] sm:$0xff]
      %v2852 = vld [vmem:[#allocation2 + $0x258] sm:$0xff]
      %v2853 = vld [vmem:[#allocation2 + $0x260] sm:$0xff]
      %v2854 = vld [vmem:[#allocation2 + $0x268] sm:$0xff]
      %v2855 = vld [vmem:[#allocation2 + $0x270] sm:$0xff]
      %v2856 = vld [vmem:[#allocation2 + $0x278] sm:$0xff]
      %v2857 = vld [vmem:[#allocation2 + $0x280] sm:$0xff]
      %v2858 = vld [vmem:[#allocation2 + $0x288] sm:$0xff]
      %v2859 = vld [vmem:[#allocation2 + $0x290] sm:$0xff]
      %v2860 = vld [vmem:[#allocation2 + $0x298] sm:$0xff]
      %v2861 = vld [vmem:[#allocation2 + $0x2a0] sm:$0xff]
      %v2862 = vld [vmem:[#allocation2 + $0x2a8] sm:$0xff]
      %v2863 = vld [vmem:[#allocation2 + $0x2b0] sm:$0xff]
      %v2864 = vld [vmem:[#allocation2 + $0x2b8] sm:$0xff]
      %v2865 = vld [vmem:[#allocation2 + $0x2c0] sm:$0xff]
      %v2866 = vld [vmem:[#allocation2 + $0x2c8] sm:$0xff]
      %v2867 = vld [vmem:[#allocation2 + $0x2d0] sm:$0xff]
      %v2868 = vld [vmem:[#allocation2 + $0x2d8] sm:$0xff]
      %v2869 = vld [vmem:[#allocation2 + $0x2e0] sm:$0xff]
      %v2870 = vld [vmem:[#allocation2 + $0x2e8] sm:$0xff]
      %v2871 = vld [vmem:[#allocation2 + $0x2f0] sm:$0xff]
      %v2872 = vld [vmem:[#allocation2 + $0x2f8] sm:$0xff]
      %v2873 = vpack.c.bf16 %v2780, %v2777
      %v2874 = vpack.c.bf16 %v2781, %v2778
      %v2875 = vpack.c.bf16 %v2782, %v2779
      %v2876 = vpack.c.bf16 %v2786, %v2783
      %v2877 = vpack.c.bf16 %v2787, %v2784
      %v2878 = vpack.c.bf16 %v2788, %v2785
      %v2879 = vpack.c.bf16 %v2792, %v2789
      %v2880 = vpack.c.bf16 %v2793, %v2790
      %v2881 = vpack.c.bf16 %v2794, %v2791
      %v2882 = vpack.c.bf16 %v2798, %v2795
      %v2883 = vpack.c.bf16 %v2799, %v2796
      %v2884 = vpack.c.bf16 %v2800, %v2797
      %v2885 = vpack.c.bf16 %v2804, %v2801
      %v2886 = vpack.c.bf16 %v2805, %v2802
      %v2887 = vpack.c.bf16 %v2806, %v2803
      %v2888 = vpack.c.bf16 %v2810, %v2807
      %v2889 = vpack.c.bf16 %v2811, %v2808
      %v2890 = vpack.c.bf16 %v2812, %v2809
      %v2891 = vpack.c.bf16 %v2816, %v2813
      %v2892 = vpack.c.bf16 %v2817, %v2814
      %v2893 = vpack.c.bf16 %v2818, %v2815
      %v2894 = vpack.c.bf16 %v2822, %v2819
      %v2895 = vpack.c.bf16 %v2823, %v2820
      %v2896 = vpack.c.bf16 %v2824, %v2821
      %v2897 = vpack.c.bf16 %v2828, %v2825
      %v2898 = vpack.c.bf16 %v2829, %v2826
      %v2899 = vpack.c.bf16 %v2830, %v2827
      %v2900 = vpack.c.bf16 %v2834, %v2831
      %v2901 = vpack.c.bf16 %v2835, %v2832
      %v2902 = vpack.c.bf16 %v2836, %v2833
      %v2903 = vpack.c.bf16 %v2840, %v2837
      %v2904 = vpack.c.bf16 %v2841, %v2838
      %v2905 = vpack.c.bf16 %v2842, %v2839
      %v2906 = vpack.c.bf16 %v2846, %v2843
      %v2907 = vpack.c.bf16 %v2847, %v2844
      %v2908 = vpack.c.bf16 %v2848, %v2845
      %v2909 = vpack.c.bf16 %v2852, %v2849
      %v2910 = vpack.c.bf16 %v2853, %v2850
      %v2911 = vpack.c.bf16 %v2854, %v2851
      %v2912 = vpack.c.bf16 %v2858, %v2855
      %v2913 = vpack.c.bf16 %v2859, %v2856
      %v2914 = vpack.c.bf16 %v2860, %v2857
      %v2915 = vpack.c.bf16 %v2864, %v2861
      %v2916 = vpack.c.bf16 %v2865, %v2862
      %v2917 = vpack.c.bf16 %v2866, %v2863
      %v2918 = vpack.c.bf16 %v2870, %v2867
      %v2919 = vpack.c.bf16 %v2871, %v2868
      %v2920 = vpack.c.bf16 %v2872, %v2869
      %v2921 = vld [vmem:[%s223] sm:$0xf]
      %v2922 = vld [vmem:[%s223 + $0x4] sm:$0xf]
      %v2923 = vld [vmem:[%s223 + $0x8] sm:$0xf]
      %v2924 = vld [vmem:[%s223 + $0xc] sm:$0xf]
      %v2925 = vld [vmem:[%s223 + $0x10] sm:$0xf]
      %v2926 = vld [vmem:[%s223 + $0x14] sm:$0xf]
      %v2927 = vld [vmem:[%s223 + $0x18] sm:$0xf]
      %v2928 = vld [vmem:[%s223 + $0x1c] sm:$0xf]
      %v2929 = vld [vmem:[%s223 + $0x20] sm:$0xf]
      %v2930 = vld [vmem:[%s223 + $0x24] sm:$0xf]
      %v2931 = vld [vmem:[%s223 + $0x28] sm:$0xf]
      %v2932 = vld [vmem:[%s223 + $0x2c] sm:$0xf]
      %v2933 = vld [vmem:[%s223 + $0x30] sm:$0xf]
      %v2934 = vld [vmem:[%s223 + $0x34] sm:$0xf]
      %v2935 = vld [vmem:[%s223 + $0x38] sm:$0xf]
      %v2936 = vld [vmem:[%s223 + $0x3c] sm:$0xf]
      %v2937 = vld [vmem:[%s223 + $0x40] sm:$0xf]
      %v2938 = vld [vmem:[%s223 + $0x44] sm:$0xf]
      %v2939 = vld [vmem:[%s223 + $0x48] sm:$0xf]
      %v2940 = vld [vmem:[%s223 + $0x4c] sm:$0xf]
      %v2941 = vld [vmem:[%s223 + $0x50] sm:$0xf]
      %v2942 = vld [vmem:[%s223 + $0x54] sm:$0xf]
      %v2943 = vld [vmem:[%s223 + $0x58] sm:$0xf]
      %v2944 = vld [vmem:[%s223 + $0x5c] sm:$0xf]
      %v2945 = vld [vmem:[%s223 + $0x60] sm:$0xf]
      %v2946 = vld [vmem:[%s223 + $0x64] sm:$0xf]
      %v2947 = vld [vmem:[%s223 + $0x68] sm:$0xf]
      %v2948 = vld [vmem:[%s223 + $0x6c] sm:$0xf]
      %v2949 = vld [vmem:[%s223 + $0x70] sm:$0xf]
      %v2950 = vld [vmem:[%s223 + $0x74] sm:$0xf]
      %v2951 = vld [vmem:[%s223 + $0x78] sm:$0xf]
      %v2952 = vld [vmem:[%s223 + $0x7c] sm:$0xf]
      %v2953 = vld [vmem:[%s223 + $0x80] sm:$0xf]
      %v2954 = vld [vmem:[%s223 + $0x84] sm:$0xf]
      %v2955 = vld [vmem:[%s223 + $0x88] sm:$0xf]
      %v2956 = vld [vmem:[%s223 + $0x8c] sm:$0xf]
      %v2957 = vld [vmem:[%s226] sm:$0x1]
      %v2959 = vlaneseq
      %v2960 = vshrl.u32 %v2959, 7
      %v2961 = vsub.s32 0, %v2960
      %v2962 = vrot.slane %v2957, %v2961
      %v3000 = vunpack.c.l.b16 %v2921
      %v3001 = vunpack.c.l.b16 %v2922
      %v3002 = vunpack.c.l.b16 %v2923
      %v3003 = vunpack.c.l.b16 %v2924
      %v3004 = vunpack.c.l.b16 %v2925
      %v3005 = vunpack.c.l.b16 %v2926
      %v3006 = vunpack.c.l.b16 %v2927
      %v3007 = vunpack.c.l.b16 %v2928
      %v3008 = vunpack.c.l.b16 %v2929
      %v3009 = vunpack.c.l.b16 %v2930
      %v3010 = vunpack.c.l.b16 %v2931
      %v3011 = vunpack.c.l.b16 %v2932
      %v3012 = vunpack.c.l.b16 %v2933
      %v3013 = vunpack.c.l.b16 %v2934
      %v3014 = vunpack.c.l.b16 %v2935
      %v3015 = vunpack.c.l.b16 %v2936
      %v3016 = vunpack.c.l.b16 %v2937
      %v3017 = vunpack.c.l.b16 %v2938
      %v3018 = vunpack.c.l.b16 %v2939
      %v3019 = vunpack.c.l.b16 %v2940
      %v3020 = vunpack.c.l.b16 %v2941
      %v3021 = vunpack.c.l.b16 %v2942
      %v3022 = vunpack.c.l.b16 %v2943
      %v3023 = vunpack.c.l.b16 %v2944
      %v3024 = vunpack.c.l.b16 %v2945
      %v3025 = vunpack.c.l.b16 %v2946
      %v3026 = vunpack.c.l.b16 %v2947
      %v3027 = vunpack.c.l.b16 %v2948
      %v3028 = vunpack.c.l.b16 %v2949
      %v3029 = vunpack.c.l.b16 %v2950
      %v3030 = vunpack.c.l.b16 %v2951
      %v3031 = vunpack.c.l.b16 %v2952
      %v3032 = vunpack.c.l.b16 %v2953
      %v3033 = vunpack.c.l.b16 %v2954
      %v3034 = vunpack.c.l.b16 %v2955
      %v3035 = vunpack.c.l.b16 %v2956
      %v3036 = vpack.c.b16 %v3001, %v3000
      %v3037 = vpack.c.b16 %v3003, %v3002
      %v3038 = vpack.c.b16 %v3005, %v3004
      %v3039 = vpack.c.b16 %v3007, %v3006
      %v3040 = vpack.c.b16 %v3009, %v3008
      %v3041 = vpack.c.b16 %v3011, %v3010
      %v3042 = vpack.c.b16 %v3013, %v3012
      %v3043 = vpack.c.b16 %v3015, %v3014
      %v3044 = vpack.c.b16 %v3017, %v3016
      %v3045 = vpack.c.b16 %v3019, %v3018
      %v3046 = vpack.c.b16 %v3021, %v3020
      %v3047 = vpack.c.b16 %v3023, %v3022
      %v3048 = vpack.c.b16 %v3025, %v3024
      %v3049 = vpack.c.b16 %v3027, %v3026
      %v3050 = vpack.c.b16 %v3029, %v3028
      %v3051 = vpack.c.b16 %v3031, %v3030
      %v3052 = vpack.c.b16 %v3033, %v3032
      %v3053 = vpack.c.b16 %v3035, %v3034
      %v3073 = vsel %vm305, %v2875, 0
      %v3076 = vsel %vm305, %v2878, 0
      %v3079 = vsel %vm305, %v2881, 0
      %v3082 = vsel %vm305, %v2884, 0
      %v3085 = vsel %vm305, %v2887, 0
      %v3088 = vsel %vm305, %v2890, 0
      %v3091 = vsel %vm305, %v2893, 0
      %v3094 = vsel %vm305, %v2896, 0
      %v3097 = vsel %vm305, %v2899, 0
      %v3100 = vsel %vm305, %v2902, 0
      %v3103 = vsel %vm305, %v2905, 0
      %v3106 = vsel %vm305, %v2908, 0
      %v3109 = vsel %vm305, %v2911, 0
      %v3112 = vsel %vm305, %v2914, 0
      %v3115 = vsel %vm305, %v2917, 0
      %v3118 = vsel %vm305, %v2920, 0
      %3120 = vmatprep.subr.bf16.mxu0 0
      %3121 = vmatpush1.bf16.msra.mxu0 %v3036
      %3122 = vmatprep.subr.bf16.mxu0 0
      %3123 = vmatpush1.bf16.msra.mxu0 %v3037
      %3124 = vmatprep.subr.bf16.mxu0 0
      %3125 = vmatpush1.bf16.msra.mxu0 %v3038
      %3126 = vmatprep.subr.bf16.mxu0 0
      %3127 = vmatpush1.bf16.msra.mxu0 %v3039
      %3128 = vmatprep.subr.bf16.mxu0 0
      %3129 = vmatpush1.bf16.msra.mxu0 %v3040
      %3130 = vmatprep.subr.bf16.mxu0 0
      %3131 = vmatpush1.bf16.msra.mxu0 %v3041
      %3132 = vmatprep.subr.bf16.mxu0 0
      %3133 = vmatpush1.bf16.msra.mxu0 %v3042
      %3134 = vmatprep.subr.bf16.mxu0 0
      %3135 = vmatpush1.bf16.msra.mxu0 %v3043
      %3136 = vmatprep.subr.bf16.mxu0 0
      %3137 = vmatpush1.bf16.msra.mxu0 %v3044
      %3138 = vmatprep.subr.bf16.mxu0 0
      %3139 = vmatpush1.bf16.msra.mxu0 %v3045
      %3140 = vmatprep.subr.bf16.mxu0 0
      %3141 = vmatpush1.bf16.msra.mxu0 %v3046
      %3142 = vmatprep.subr.bf16.mxu0 0
      %3143 = vmatpush1.bf16.msra.mxu0 %v3047
      %3144 = vmatprep.subr.bf16.mxu0 0
      %3145 = vmatpush1.bf16.msra.mxu0 %v3048
      %3146 = vmatprep.subr.bf16.mxu0 0
      %3147 = vmatpush1.bf16.msra.mxu0 %v3049
      %3148 = vmatprep.subr.bf16.mxu0 0
      %3149 = vmatpush1.bf16.msra.mxu0 %v3050
      %3150 = vmatprep.subr.bf16.mxu0 0
      %3151 = vmatpush1.bf16.msra.mxu0 %v3051
      %3152 = vmatprep.mubr.bf16.mxu0 %v2874
      %3153 = vmatmul.mubr.bf16.gmra.mrb[0].mxu0 %v2873
      %v3154 = vpop.f32.mrb[0].mxu0
      %v3155 = vadd.f32 %v2962, %v3154
      %v3156 = vpop.f32.mrb[0].mxu0
      %v3157 = vpop.f32.mrb[0].mxu0
      %v3158 = vadd.f32 %v2962, %v3157
      %v3159 = vpop.f32.mrb[0].mxu0
      %3160 = vmatprep.mubr.bf16.mxu0 %v2877
      %3161 = vmatmul.mubr.bf16.gmra.mrb[0].mxu0 %v2876
      %v3162 = vpop.f32.mrb[0].mxu0
      %v3163 = vadd.f32 %v2962, %v3162
      %v3164 = vpop.f32.mrb[0].mxu0
      %v3165 = vpop.f32.mrb[0].mxu0
      %v3166 = vadd.f32 %v2962, %v3165
      %v3167 = vpop.f32.mrb[0].mxu0
      %3168 = vmatprep.mubr.bf16.mxu0 %v2880
      %3169 = vmatmul.mubr.bf16.gmra.mrb[0].mxu0 %v2879
      %v3170 = vpop.f32.mrb[0].mxu0
      %v3171 = vadd.f32 %v2962, %v3170
      %v3172 = vpop.f32.mrb[0].mxu0
      %v3173 = vpop.f32.mrb[0].mxu0
      %v3174 = vadd.f32 %v2962, %v3173
      %v3175 = vpop.f32.mrb[0].mxu0
      %3176 = vmatprep.mubr.bf16.mxu0 %v2883
      %3177 = vmatmul.mubr.bf16.gmra.mrb[0].mxu0 %v2882
      %v3178 = vpop.f32.mrb[0].mxu0
      %v3179 = vadd.f32 %v2962, %v3178
      %v3180 = vpop.f32.mrb[0].mxu0
      %v3181 = vpop.f32.mrb[0].mxu0
      %v3182 = vadd.f32 %v2962, %v3181
      %v3183 = vpop.f32.mrb[0].mxu0
      %3184 = vmatprep.mubr.bf16.mxu0 %v2886
      %3185 = vmatmul.mubr.bf16.gmra.mrb[0].mxu0 %v2885
      %v3186 = vpop.f32.mrb[0].mxu0
      %v3187 = vadd.f32 %v2962, %v3186
      %v3188 = vpop.f32.mrb[0].mxu0
      %v3189 = vpop.f32.mrb[0].mxu0
      %v3190 = vadd.f32 %v2962, %v3189
      %v3191 = vpop.f32.mrb[0].mxu0
      %3192 = vmatprep.mubr.bf16.mxu0 %v2889
      %3193 = vmatmul.mubr.bf16.gmra.mrb[0].mxu0 %v2888
      %v3194 = vpop.f32.mrb[0].mxu0
      %v3195 = vadd.f32 %v2962, %v3194
      %v3196 = vpop.f32.mrb[0].mxu0
      %v3197 = vpop.f32.mrb[0].mxu0
      %v3198 = vadd.f32 %v2962, %v3197
      %v3199 = vpop.f32.mrb[0].mxu0
      %3200 = vmatprep.mubr.bf16.mxu0 %v2892
      %3201 = vmatmul.mubr.bf16.gmra.mrb[0].mxu0 %v2891
      %v3202 = vpop.f32.mrb[0].mxu0
      %v3203 = vadd.f32 %v2962, %v3202
      %v3204 = vpop.f32.mrb[0].mxu0
      %v3205 = vpop.f32.mrb[0].mxu0
      %v3206 = vadd.f32 %v2962, %v3205
      %v3207 = vpop.f32.mrb[0].mxu0
      %3208 = vmatprep.mubr.bf16.mxu0 %v2895
      %3209 = vmatmul.mubr.bf16.gmra.mrb[0].mxu0 %v2894
      %v3210 = vpop.f32.mrb[0].mxu0
      %v3211 = vadd.f32 %v2962, %v3210
      %v3212 = vpop.f32.mrb[0].mxu0
      %v3213 = vpop.f32.mrb[0].mxu0
      %v3214 = vadd.f32 %v2962, %v3213
      %v3215 = vpop.f32.mrb[0].mxu0
      %3216 = vmatprep.mubr.bf16.mxu0 %v2898
      %3217 = vmatmul.mubr.bf16.gmra.mrb[0].mxu0 %v2897
      %v3218 = vpop.f32.mrb[0].mxu0
      %v3219 = vadd.f32 %v2962, %v3218
      %v3220 = vpop.f32.mrb[0].mxu0
      %v3221 = vpop.f32.mrb[0].mxu0
      %v3222 = vadd.f32 %v2962, %v3221
      %v3223 = vpop.f32.mrb[0].mxu0
      %3224 = vmatprep.mubr.bf16.mxu0 %v2901
      %3225 = vmatmul.mubr.bf16.gmra.mrb[0].mxu0 %v2900
      %v3226 = vpop.f32.mrb[0].mxu0
      %v3227 = vadd.f32 %v2962, %v3226
      %v3228 = vpop.f32.mrb[0].mxu0
      %v3229 = vpop.f32.mrb[0].mxu0
      %v3230 = vadd.f32 %v2962, %v3229
      %v3231 = vpop.f32.mrb[0].mxu0
      %3232 = vmatprep.mubr.bf16.mxu0 %v2904
      %3233 = vmatmul.mubr.bf16.gmra.mrb[0].mxu0 %v2903
      %v3234 = vpop.f32.mrb[0].mxu0
      %v3235 = vadd.f32 %v2962, %v3234
      %v3236 = vpop.f32.mrb[0].mxu0
      %v3237 = vpop.f32.mrb[0].mxu0
      %v3238 = vadd.f32 %v2962, %v3237
      %v3239 = vpop.f32.mrb[0].mxu0
      %3240 = vmatprep.mubr.bf16.mxu0 %v2907
      %3241 = vmatmul.mubr.bf16.gmra.mrb[0].mxu0 %v2906
      %v3242 = vpop.f32.mrb[0].mxu0
      %v3243 = vadd.f32 %v2962, %v3242
      %v3244 = vpop.f32.mrb[0].mxu0
      %v3245 = vpop.f32.mrb[0].mxu0
      %v3246 = vadd.f32 %v2962, %v3245
      %v3247 = vpop.f32.mrb[0].mxu0
      %3248 = vmatprep.mubr.bf16.mxu0 %v2910
      %3249 = vmatmul.mubr.bf16.gmra.mrb[0].mxu0 %v2909
      %v3250 = vpop.f32.mrb[0].mxu0
      %v3251 = vadd.f32 %v2962, %v3250
      %v3252 = vpop.f32.mrb[0].mxu0
      %v3253 = vpop.f32.mrb[0].mxu0
      %v3254 = vadd.f32 %v2962, %v3253
      %v3255 = vpop.f32.mrb[0].mxu0
      %3256 = vmatprep.mubr.bf16.mxu0 %v2913
      %3257 = vmatmul.mubr.bf16.gmra.mrb[0].mxu0 %v2912
      %v3258 = vpop.f32.mrb[0].mxu0
      %v3259 = vadd.f32 %v2962, %v3258
      %v3260 = vpop.f32.mrb[0].mxu0
      %v3261 = vpop.f32.mrb[0].mxu0
      %v3262 = vadd.f32 %v2962, %v3261
      %v3263 = vpop.f32.mrb[0].mxu0
      %3264 = vmatprep.mubr.bf16.mxu0 %v2916
      %3265 = vmatmul.mubr.bf16.gmra.mrb[0].mxu0 %v2915
      %v3266 = vpop.f32.mrb[0].mxu0
      %v3267 = vadd.f32 %v2962, %v3266
      %v3268 = vpop.f32.mrb[0].mxu0
      %v3269 = vpop.f32.mrb[0].mxu0
      %v3270 = vadd.f32 %v2962, %v3269
      %v3271 = vpop.f32.mrb[0].mxu0
      %3272 = vmatprep.mubr.bf16.mxu0 %v2919
      %3273 = vmatmul.mubr.bf16.gmra.mrb[0].mxu0 %v2918
      %v3274 = vpop.f32.mrb[0].mxu0
      %v3275 = vadd.f32 %v2962, %v3274
      %v3276 = vpop.f32.mrb[0].mxu0
      %v3277 = vpop.f32.mrb[0].mxu0
      %v3278 = vadd.f32 %v2962, %v3277
      %v3279 = vpop.f32.mrb[0].mxu0
      %3280 = vdwg.mxu0
      %3281 = vmatprep.subr.bf16.mxu0 0
      %3282 = vmatpush1.bf16.msra.mxu0 %v3052
      %3283 = vmatprep.subr.bf16.mxu0 0
      %3284 = vmatpush1.bf16.msra.mxu0 %v3053
      %3285 = vmatprep.subr.bf16.mxu0 0
      %3286 = vmatpush1.bf16.msra.mxu0 0
      %3287 = vmatprep.subr.bf16.mxu0 0
      %3288 = vmatpush1.bf16.msra.mxu0 0
      %3289 = vmatprep.subr.bf16.mxu0 0
      %3290 = vmatpush1.bf16.msra.mxu0 0
      %3291 = vmatprep.subr.bf16.mxu0 0
      %3292 = vmatpush1.bf16.msra.mxu0 0
      %3293 = vmatprep.subr.bf16.mxu0 0
      %3294 = vmatpush1.bf16.msra.mxu0 0
      %3295 = vmatprep.subr.bf16.mxu0 0
      %3296 = vmatpush1.bf16.msra.mxu0 0
      %3297 = vmatprep.subr.bf16.mxu0 0
      %3298 = vmatpush1.bf16.msra.mxu0 0
      %3299 = vmatprep.subr.bf16.mxu0 0
      %3300 = vmatpush1.bf16.msra.mxu0 0
      %3301 = vmatprep.subr.bf16.mxu0 0
      %3302 = vmatpush1.bf16.msra.mxu0 0
      %3303 = vmatprep.subr.bf16.mxu0 0
      %3304 = vmatpush1.bf16.msra.mxu0 0
      %3305 = vmatprep.subr.bf16.mxu0 0
      %3306 = vmatpush1.bf16.msra.mxu0 0
      %3307 = vmatprep.subr.bf16.mxu0 0
      %3308 = vmatpush1.bf16.msra.mxu0 0
      %3309 = vmatprep.subr.bf16.mxu0 0
      %3310 = vmatpush1.bf16.msra.mxu0 0
      %3311 = vmatprep.subr.bf16.mxu0 0
      %3312 = vmatpush1.bf16.msra.mxu0 0
      %3313 = vmatprep.mubr.bf16.mxu0 0
      %3314 = vmatmul.mubr.bf16.gmra.mrb[0].mxu0 %v3073
      %v3315 = vpop.f32.mrb[0].mxu0
      %v3316 = vadd.f32 %v3155, %v3315
      %v3317 = vpop.f32.mrb[0].mxu0
      %v3318 = vpop.f32.mrb[0].mxu0
      %v3319 = vadd.f32 %v3158, %v3318
      %v3320 = vpop.f32.mrb[0].mxu0
      %3321 = vmatprep.mubr.bf16.mxu0 0
      %3322 = vmatmul.mubr.bf16.gmra.mrb[0].mxu0 %v3076
      %v3323 = vpop.f32.mrb[0].mxu0
      %v3324 = vadd.f32 %v3163, %v3323
      %v3325 = vpop.f32.mrb[0].mxu0
      %v3326 = vpop.f32.mrb[0].mxu0
      %v3327 = vadd.f32 %v3166, %v3326
      %v3328 = vpop.f32.mrb[0].mxu0
      %3329 = vmatprep.mubr.bf16.mxu0 0
      %3330 = vmatmul.mubr.bf16.gmra.mrb[0].mxu0 %v3079
      %v3331 = vpop.f32.mrb[0].mxu0
      %v3332 = vadd.f32 %v3171, %v3331
      %v3333 = vpop.f32.mrb[0].mxu0
      %v3334 = vpop.f32.mrb[0].mxu0
      %v3335 = vadd.f32 %v3174, %v3334
      %v3336 = vpop.f32.mrb[0].mxu0
      %3337 = vmatprep.mubr.bf16.mxu0 0
      %3338 = vmatmul.mubr.bf16.gmra.mrb[0].mxu0 %v3082
      %v3339 = vpop.f32.mrb[0].mxu0
      %v3340 = vadd.f32 %v3179, %v3339
      %v3341 = vpop.f32.mrb[0].mxu0
      %v3342 = vpop.f32.mrb[0].mxu0
      %v3343 = vadd.f32 %v3182, %v3342
      %v3344 = vpop.f32.mrb[0].mxu0
      %3345 = vmatprep.mubr.bf16.mxu0 0
      %3346 = vmatmul.mubr.bf16.gmra.mrb[0].mxu0 %v3085
      %v3347 = vpop.f32.mrb[0].mxu0
      %v3348 = vadd.f32 %v3187, %v3347
      %v3349 = vpop.f32.mrb[0].mxu0
      %v3350 = vpop.f32.mrb[0].mxu0
      %v3351 = vadd.f32 %v3190, %v3350
      %v3352 = vpop.f32.mrb[0].mxu0
      %3353 = vmatprep.mubr.bf16.mxu0 0
      %3354 = vmatmul.mubr.bf16.gmra.mrb[0].mxu0 %v3088
      %v3355 = vpop.f32.mrb[0].mxu0
      %v3356 = vadd.f32 %v3195, %v3355
      %v3357 = vpop.f32.mrb[0].mxu0
      %v3358 = vpop.f32.mrb[0].mxu0
      %v3359 = vadd.f32 %v3198, %v3358
      %v3360 = vpop.f32.mrb[0].mxu0
      %3361 = vmatprep.mubr.bf16.mxu0 0
      %3362 = vmatmul.mubr.bf16.gmra.mrb[0].mxu0 %v3091
      %v3363 = vpop.f32.mrb[0].mxu0
      %v3364 = vadd.f32 %v3203, %v3363
      %v3365 = vpop.f32.mrb[0].mxu0
      %v3366 = vpop.f32.mrb[0].mxu0
      %v3367 = vadd.f32 %v3206, %v3366
      %v3368 = vpop.f32.mrb[0].mxu0
      %3369 = vmatprep.mubr.bf16.mxu0 0
      %3370 = vmatmul.mubr.bf16.gmra.mrb[0].mxu0 %v3094
      %v3371 = vpop.f32.mrb[0].mxu0
      %v3372 = vadd.f32 %v3211, %v3371
      %v3373 = vpop.f32.mrb[0].mxu0
      %v3374 = vpop.f32.mrb[0].mxu0
      %v3375 = vadd.f32 %v3214, %v3374
      %v3376 = vpop.f32.mrb[0].mxu0
      %3377 = vmatprep.mubr.bf16.mxu0 0
      %3378 = vmatmul.mubr.bf16.gmra.mrb[0].mxu0 %v3097
      %v3379 = vpop.f32.mrb[0].mxu0
      %v3380 = vadd.f32 %v3219, %v3379
      %v3381 = vpop.f32.mrb[0].mxu0
      %v3382 = vpop.f32.mrb[0].mxu0
      %v3383 = vadd.f32 %v3222, %v3382
      %v3384 = vpop.f32.mrb[0].mxu0
      %3385 = vmatprep.mubr.bf16.mxu0 0
      %3386 = vmatmul.mubr.bf16.gmra.mrb[0].mxu0 %v3100
      %v3387 = vpop.f32.mrb[0].mxu0
      %v3388 = vadd.f32 %v3227, %v3387
      %v3389 = vpop.f32.mrb[0].mxu0
      %v3390 = vpop.f32.mrb[0].mxu0
      %v3391 = vadd.f32 %v3230, %v3390
      %v3392 = vpop.f32.mrb[0].mxu0
      %3393 = vmatprep.mubr.bf16.mxu0 0
      %3394 = vmatmul.mubr.bf16.gmra.mrb[0].mxu0 %v3103
      %v3395 = vpop.f32.mrb[0].mxu0
      %v3396 = vadd.f32 %v3235, %v3395
      %v3397 = vpop.f32.mrb[0].mxu0
      %v3398 = vpop.f32.mrb[0].mxu0
      %v3399 = vadd.f32 %v3238, %v3398
      %v3400 = vpop.f32.mrb[0].mxu0
      %3401 = vmatprep.mubr.bf16.mxu0 0
      %3402 = vmatmul.mubr.bf16.gmra.mrb[0].mxu0 %v3106
      %v3403 = vpop.f32.mrb[0].mxu0
      %v3404 = vadd.f32 %v3243, %v3403
      %v3405 = vpop.f32.mrb[0].mxu0
      %v3406 = vpop.f32.mrb[0].mxu0
      %v3407 = vadd.f32 %v3246, %v3406
      %v3408 = vpop.f32.mrb[0].mxu0
      %3409 = vmatprep.mubr.bf16.mxu0 0
      %3410 = vmatmul.mubr.bf16.gmra.mrb[0].mxu0 %v3109
      %v3411 = vpop.f32.mrb[0].mxu0
      %v3412 = vadd.f32 %v3251, %v3411
      %v3413 = vpop.f32.mrb[0].mxu0
      %v3414 = vpop.f32.mrb[0].mxu0
      %v3415 = vadd.f32 %v3254, %v3414
      %v3416 = vpop.f32.mrb[0].mxu0
      %3417 = vmatprep.mubr.bf16.mxu0 0
      %3418 = vmatmul.mubr.bf16.gmra.mrb[0].mxu0 %v3112
      %v3419 = vpop.f32.mrb[0].mxu0
      %v3420 = vadd.f32 %v3259, %v3419
      %v3421 = vpop.f32.mrb[0].mxu0
      %v3422 = vpop.f32.mrb[0].mxu0
      %v3423 = vadd.f32 %v3262, %v3422
      %v3424 = vpop.f32.mrb[0].mxu0
      %3425 = vmatprep.mubr.bf16.mxu0 0
      %3426 = vmatmul.mubr.bf16.gmra.mrb[0].mxu0 %v3115
      %v3427 = vpop.f32.mrb[0].mxu0
      %v3428 = vadd.f32 %v3267, %v3427
      %v3429 = vpop.f32.mrb[0].mxu0
      %v3430 = vpop.f32.mrb[0].mxu0
      %v3431 = vadd.f32 %v3270, %v3430
      %v3432 = vpop.f32.mrb[0].mxu0
      %3433 = vmatprep.mubr.bf16.mxu0 0
      %3434 = vmatmul.mubr.bf16.gmra.mrb[0].mxu0 %v3118
      %v3435 = vpop.f32.mrb[0].mxu0
      %v3436 = vadd.f32 %v3275, %v3435
      %v3437 = vpop.f32.mrb[0].mxu0
      %v3438 = vpop.f32.mrb[0].mxu0
      %v3439 = vadd.f32 %v3278, %v3438
      %v3440 = vpop.f32.mrb[0].mxu0
      %3441 = vdwg.mxu0
      %v3442 = vsub.f32 0.0, %v3316
      %v3443 = vsub.f32 0.0, %v3319
      %v3444 = vsub.f32 0.0, %v3324
      %v3445 = vsub.f32 0.0, %v3327
      %v3446 = vsub.f32 0.0, %v3332
      %v3447 = vsub.f32 0.0, %v3335
      %v3448 = vsub.f32 0.0, %v3340
      %v3449 = vsub.f32 0.0, %v3343
      %v3450 = vsub.f32 0.0, %v3348
      %v3451 = vsub.f32 0.0, %v3351
      %v3452 = vsub.f32 0.0, %v3356
      %v3453 = vsub.f32 0.0, %v3359
      %v3454 = vsub.f32 0.0, %v3364
      %v3455 = vsub.f32 0.0, %v3367
      %v3456 = vsub.f32 0.0, %v3372
      %v3457 = vsub.f32 0.0, %v3375
      %v3458 = vsub.f32 0.0, %v3380
      %v3459 = vsub.f32 0.0, %v3383
      %v3460 = vsub.f32 0.0, %v3388
      %v3461 = vsub.f32 0.0, %v3391
      %v3462 = vsub.f32 0.0, %v3396
      %v3463 = vsub.f32 0.0, %v3399
      %v3464 = vsub.f32 0.0, %v3404
      %v3465 = vsub.f32 0.0, %v3407
      %v3466 = vsub.f32 0.0, %v3412
      %v3467 = vsub.f32 0.0, %v3415
      %v3468 = vsub.f32 0.0, %v3420
      %v3469 = vsub.f32 0.0, %v3423
      %v3470 = vsub.f32 0.0, %v3428
      %v3471 = vsub.f32 0.0, %v3431
      %v3472 = vsub.f32 0.0, %v3436
      %v3473 = vsub.f32 0.0, %v3439
      %v3474 = vmul.f32 %v3442, 1.442695
      %v3475 = vpow.pop %v3474
      %v3476 = vmul.f32 %v3443, 1.442695
      %v3477 = vpow.pop %v3476
      %v3478 = vmul.f32 %v3444, 1.442695
      %v3479 = vpow.pop %v3478
      %v3480 = vmul.f32 %v3445, 1.442695
      %v3481 = vpow.pop %v3480
      %v3482 = vmul.f32 %v3446, 1.442695
      %v3483 = vpow.pop %v3482
      %v3484 = vmul.f32 %v3447, 1.442695
      %v3485 = vpow.pop %v3484
      %v3486 = vmul.f32 %v3448, 1.442695
      %v3487 = vpow.pop %v3486
      %v3488 = vmul.f32 %v3449, 1.442695
      %v3489 = vpow.pop %v3488
      %v3490 = vmul.f32 %v3450, 1.442695
      %v3491 = vpow.pop %v3490
      %v3492 = vmul.f32 %v3451, 1.442695
      %v3493 = vpow.pop %v3492
      %v3494 = vmul.f32 %v3452, 1.442695
      %v3495 = vpow.pop %v3494
      %v3496 = vmul.f32 %v3453, 1.442695
      %v3497 = vpow.pop %v3496
      %v3498 = vmul.f32 %v3454, 1.442695
      %v3499 = vpow.pop %v3498
      %v3500 = vmul.f32 %v3455, 1.442695
      %v3501 = vpow.pop %v3500
      %v3502 = vmul.f32 %v3456, 1.442695
      %v3503 = vpow.pop %v3502
      %v3504 = vmul.f32 %v3457, 1.442695
      %v3505 = vpow.pop %v3504
      %v3506 = vmul.f32 %v3458, 1.442695
      %v3507 = vpow.pop %v3506
      %v3508 = vmul.f32 %v3459, 1.442695
      %v3509 = vpow.pop %v3508
      %v3510 = vmul.f32 %v3460, 1.442695
      %v3511 = vpow.pop %v3510
      %v3512 = vmul.f32 %v3461, 1.442695
      %v3513 = vpow.pop %v3512
      %v3514 = vmul.f32 %v3462, 1.442695
      %v3515 = vpow.pop %v3514
      %v3516 = vmul.f32 %v3463, 1.442695
      %v3517 = vpow.pop %v3516
      %v3518 = vmul.f32 %v3464, 1.442695
      %v3519 = vpow.pop %v3518
      %v3520 = vmul.f32 %v3465, 1.442695
      %v3521 = vpow.pop %v3520
      %v3522 = vmul.f32 %v3466, 1.442695
      %v3523 = vpow.pop %v3522
      %v3524 = vmul.f32 %v3467, 1.442695
      %v3525 = vpow.pop %v3524
      %v3526 = vmul.f32 %v3468, 1.442695
      %v3527 = vpow.pop %v3526
      %v3528 = vmul.f32 %v3469, 1.442695
      %v3529 = vpow.pop %v3528
      %v3530 = vmul.f32 %v3470, 1.442695
      %v3531 = vpow.pop %v3530
      %v3532 = vmul.f32 %v3471, 1.442695
      %v3533 = vpow.pop %v3532
      %v3534 = vmul.f32 %v3472, 1.442695
      %v3535 = vpow.pop %v3534
      %v3536 = vmul.f32 %v3473, 1.442695
      %v3537 = vpow.pop %v3536
      %v3538 = vadd.f32 %v3475, 1.0
      %v3539 = vadd.f32 %v3477, 1.0
      %v3540 = vadd.f32 %v3479, 1.0
      %v3541 = vadd.f32 %v3481, 1.0
      %v3542 = vadd.f32 %v3483, 1.0
      %v3543 = vadd.f32 %v3485, 1.0
      %v3544 = vadd.f32 %v3487, 1.0
      %v3545 = vadd.f32 %v3489, 1.0
      %v3546 = vadd.f32 %v3491, 1.0
      %v3547 = vadd.f32 %v3493, 1.0
      %v3548 = vadd.f32 %v3495, 1.0
      %v3549 = vadd.f32 %v3497, 1.0
      %v3550 = vadd.f32 %v3499, 1.0
      %v3551 = vadd.f32 %v3501, 1.0
      %v3552 = vadd.f32 %v3503, 1.0
      %v3553 = vadd.f32 %v3505, 1.0
      %v3554 = vadd.f32 %v3507, 1.0
      %v3555 = vadd.f32 %v3509, 1.0
      %v3556 = vadd.f32 %v3511, 1.0
      %v3557 = vadd.f32 %v3513, 1.0
      %v3558 = vadd.f32 %v3515, 1.0
      %v3559 = vadd.f32 %v3517, 1.0
      %v3560 = vadd.f32 %v3519, 1.0
      %v3561 = vadd.f32 %v3521, 1.0
      %v3562 = vadd.f32 %v3523, 1.0
      %v3563 = vadd.f32 %v3525, 1.0
      %v3564 = vadd.f32 %v3527, 1.0
      %v3565 = vadd.f32 %v3529, 1.0
      %v3566 = vadd.f32 %v3531, 1.0
      %v3567 = vadd.f32 %v3533, 1.0
      %v3568 = vadd.f32 %v3535, 1.0
      %v3569 = vadd.f32 %v3537, 1.0
      %v3570 = vrcp.pop %v3538
      %v3571 = vrcp.pop %v3539
      %v3572 = vrcp.pop %v3540
      %v3573 = vrcp.pop %v3541
      %v3574 = vrcp.pop %v3542
      %v3575 = vrcp.pop %v3543
      %v3576 = vrcp.pop %v3544
      %v3577 = vrcp.pop %v3545
      %v3578 = vrcp.pop %v3546
      %v3579 = vrcp.pop %v3547
      %v3580 = vrcp.pop %v3548
      %v3581 = vrcp.pop %v3549
      %v3582 = vrcp.pop %v3550
      %v3583 = vrcp.pop %v3551
      %v3584 = vrcp.pop %v3552
      %v3585 = vrcp.pop %v3553
      %v3586 = vrcp.pop %v3554
      %v3587 = vrcp.pop %v3555
      %v3588 = vrcp.pop %v3556
      %v3589 = vrcp.pop %v3557
      %v3590 = vrcp.pop %v3558
      %v3591 = vrcp.pop %v3559
      %v3592 = vrcp.pop %v3560
      %v3593 = vrcp.pop %v3561
      %v3594 = vrcp.pop %v3562
      %v3595 = vrcp.pop %v3563
      %v3596 = vrcp.pop %v3564
      %v3597 = vrcp.pop %v3565
      %v3598 = vrcp.pop %v3566
      %v3599 = vrcp.pop %v3567
      %v3600 = vrcp.pop %v3568
      %v3601 = vrcp.pop %v3569
      %v3602 = vmul.f32 %v3316, %v3570
      %v3603 = vmul.f32 %v3319, %v3571
      %v3604 = vmul.f32 %v3324, %v3572
      %v3605 = vmul.f32 %v3327, %v3573
      %v3606 = vmul.f32 %v3332, %v3574
      %v3607 = vmul.f32 %v3335, %v3575
      %v3608 = vmul.f32 %v3340, %v3576
      %v3609 = vmul.f32 %v3343, %v3577
      %v3610 = vmul.f32 %v3348, %v3578
      %v3611 = vmul.f32 %v3351, %v3579
      %v3612 = vmul.f32 %v3356, %v3580
      %v3613 = vmul.f32 %v3359, %v3581
      %v3614 = vmul.f32 %v3364, %v3582
      %v3615 = vmul.f32 %v3367, %v3583
      %v3616 = vmul.f32 %v3372, %v3584
      %v3617 = vmul.f32 %v3375, %v3585
      %v3618 = vmul.f32 %v3380, %v3586
      %v3619 = vmul.f32 %v3383, %v3587
      %v3620 = vmul.f32 %v3388, %v3588
      %v3621 = vmul.f32 %v3391, %v3589
      %v3622 = vmul.f32 %v3396, %v3590
      %v3623 = vmul.f32 %v3399, %v3591
      %v3624 = vmul.f32 %v3404, %v3592
      %v3625 = vmul.f32 %v3407, %v3593
      %v3626 = vmul.f32 %v3412, %v3594
      %v3627 = vmul.f32 %v3415, %v3595
      %v3628 = vmul.f32 %v3420, %v3596
      %v3629 = vmul.f32 %v3423, %v3597
      %v3630 = vmul.f32 %v3428, %v3598
      %v3631 = vmul.f32 %v3431, %v3599
      %v3632 = vmul.f32 %v3436, %v3600
      %v3633 = vmul.f32 %v3439, %v3601
      %v3634 = vpack.c.bf16 %v3603, %v3602
      %v3635 = vpack.c.bf16 %v3605, %v3604
      %v3636 = vpack.c.bf16 %v3607, %v3606
      %v3637 = vpack.c.bf16 %v3609, %v3608
      %v3638 = vpack.c.bf16 %v3611, %v3610
      %v3639 = vpack.c.bf16 %v3613, %v3612
      %v3640 = vpack.c.bf16 %v3615, %v3614
      %v3641 = vpack.c.bf16 %v3617, %v3616
      %v3642 = vpack.c.bf16 %v3619, %v3618
      %v3643 = vpack.c.bf16 %v3621, %v3620
      %v3644 = vpack.c.bf16 %v3623, %v3622
      %v3645 = vpack.c.bf16 %v3625, %v3624
      %v3646 = vpack.c.bf16 %v3627, %v3626
      %v3647 = vpack.c.bf16 %v3629, %v3628
      %v3648 = vpack.c.bf16 %v3631, %v3630
      %v3649 = vpack.c.bf16 %v3633, %v3632
      %v3666 = vunpack.c.l.b16 %v3634
      %v3667 = vunpack.c.h.b16 %v3634
      %v3668 = vunpack.c.l.b16 %v3635
      %v3669 = vunpack.c.h.b16 %v3635
      %v3670 = vunpack.c.l.b16 %v3636
      %v3671 = vunpack.c.h.b16 %v3636
      %v3672 = vunpack.c.l.b16 %v3637
      %v3673 = vunpack.c.h.b16 %v3637
      %v3674 = vunpack.c.l.b16 %v3638
      %v3675 = vunpack.c.h.b16 %v3638
      %v3676 = vunpack.c.l.b16 %v3639
      %v3677 = vunpack.c.h.b16 %v3639
      %v3678 = vunpack.c.l.b16 %v3640
      %v3679 = vunpack.c.h.b16 %v3640
      %v3680 = vunpack.c.l.b16 %v3641
      %v3681 = vunpack.c.h.b16 %v3641
      %v3682 = vunpack.c.l.b16 %v3642
      %v3683 = vunpack.c.h.b16 %v3642
      %v3684 = vunpack.c.l.b16 %v3643
      %v3685 = vunpack.c.h.b16 %v3643
      %v3686 = vunpack.c.l.b16 %v3644
      %v3687 = vunpack.c.h.b16 %v3644
      %v3688 = vunpack.c.l.b16 %v3645
      %v3689 = vunpack.c.h.b16 %v3645
      %v3690 = vunpack.c.l.b16 %v3646
      %v3691 = vunpack.c.h.b16 %v3646
      %v3692 = vunpack.c.l.b16 %v3647
      %v3693 = vunpack.c.h.b16 %v3647
      %v3694 = vunpack.c.l.b16 %v3648
      %v3695 = vunpack.c.h.b16 %v3648
      %v3696 = vunpack.c.l.b16 %v3649
      %v3697 = vunpack.c.h.b16 %v3649
      %v3698 = vpack.c.b16 %v3666, %v3666
      %v3699 = vpack.c.b16 %v3667, %v3667
      %v3700 = vpack.c.b16 %v3668, %v3668
      %v3701 = vpack.c.b16 %v3669, %v3669
      %v3702 = vpack.c.b16 %v3670, %v3670
      %v3703 = vpack.c.b16 %v3671, %v3671
      %v3704 = vpack.c.b16 %v3672, %v3672
      %v3705 = vpack.c.b16 %v3673, %v3673
      %v3706 = vpack.c.b16 %v3674, %v3674
      %v3707 = vpack.c.b16 %v3675, %v3675
      %v3708 = vpack.c.b16 %v3676, %v3676
      %v3709 = vpack.c.b16 %v3677, %v3677
      %v3710 = vpack.c.b16 %v3678, %v3678
      %v3711 = vpack.c.b16 %v3679, %v3679
      %v3712 = vpack.c.b16 %v3680, %v3680
      %v3713 = vpack.c.b16 %v3681, %v3681
      %v3714 = vpack.c.b16 %v3682, %v3682
      %v3715 = vpack.c.b16 %v3683, %v3683
      %v3716 = vpack.c.b16 %v3684, %v3684
      %v3717 = vpack.c.b16 %v3685, %v3685
      %v3718 = vpack.c.b16 %v3686, %v3686
      %v3719 = vpack.c.b16 %v3687, %v3687
      %v3720 = vpack.c.b16 %v3688, %v3688
      %v3721 = vpack.c.b16 %v3689, %v3689
      %v3722 = vpack.c.b16 %v3690, %v3690
      %v3723 = vpack.c.b16 %v3691, %v3691
      %v3724 = vpack.c.b16 %v3692, %v3692
      %v3725 = vpack.c.b16 %v3693, %v3693
      %v3726 = vpack.c.b16 %v3694, %v3694
      %v3727 = vpack.c.b16 %v3695, %v3695
      %v3728 = vpack.c.b16 %v3696, %v3696
      %v3729 = vpack.c.b16 %v3697, %v3697
      %vm3762 = vcmask 519168
      %3763 = vst.msk [vmem:[%s238] sm:$0xf] %vm3762, %v3698
      %3764 = vst.msk [vmem:[%s238 + $0x4] sm:$0xf] %vm3762, %v3699
      %3765 = vst.msk [vmem:[%s238 + $0x8] sm:$0xf] %vm3762, %v3700
      %3766 = vst.msk [vmem:[%s238 + $0xc] sm:$0xf] %vm3762, %v3701
      %3767 = vst.msk [vmem:[%s238 + $0x10] sm:$0xf] %vm3762, %v3702
      %3768 = vst.msk [vmem:[%s238 + $0x14] sm:$0xf] %vm3762, %v3703
      %3769 = vst.msk [vmem:[%s238 + $0x18] sm:$0xf] %vm3762, %v3704
      %3770 = vst.msk [vmem:[%s238 + $0x1c] sm:$0xf] %vm3762, %v3705
      %3771 = vst.msk [vmem:[%s238 + $0x20] sm:$0xf] %vm3762, %v3706
      %3772 = vst.msk [vmem:[%s238 + $0x24] sm:$0xf] %vm3762, %v3707
      %3773 = vst.msk [vmem:[%s238 + $0x28] sm:$0xf] %vm3762, %v3708
      %3774 = vst.msk [vmem:[%s238 + $0x2c] sm:$0xf] %vm3762, %v3709
      %3775 = vst.msk [vmem:[%s238 + $0x30] sm:$0xf] %vm3762, %v3710
      %3776 = vst.msk [vmem:[%s238 + $0x34] sm:$0xf] %vm3762, %v3711
      %3777 = vst.msk [vmem:[%s238 + $0x38] sm:$0xf] %vm3762, %v3712
      %3778 = vst.msk [vmem:[%s238 + $0x3c] sm:$0xf] %vm3762, %v3713
      %3779 = vst.msk [vmem:[%s238 + $0x40] sm:$0xf] %vm3762, %v3714
      %3780 = vst.msk [vmem:[%s238 + $0x44] sm:$0xf] %vm3762, %v3715
      %3781 = vst.msk [vmem:[%s238 + $0x48] sm:$0xf] %vm3762, %v3716
      %3782 = vst.msk [vmem:[%s238 + $0x4c] sm:$0xf] %vm3762, %v3717
      %3783 = vst.msk [vmem:[%s238 + $0x50] sm:$0xf] %vm3762, %v3718
      %3784 = vst.msk [vmem:[%s238 + $0x54] sm:$0xf] %vm3762, %v3719
      %3785 = vst.msk [vmem:[%s238 + $0x58] sm:$0xf] %vm3762, %v3720
      %3786 = vst.msk [vmem:[%s238 + $0x5c] sm:$0xf] %vm3762, %v3721
      %3787 = vst.msk [vmem:[%s238 + $0x60] sm:$0xf] %vm3762, %v3722
      %3788 = vst.msk [vmem:[%s238 + $0x64] sm:$0xf] %vm3762, %v3723
      %3789 = vst.msk [vmem:[%s238 + $0x68] sm:$0xf] %vm3762, %v3724
      %3790 = vst.msk [vmem:[%s238 + $0x6c] sm:$0xf] %vm3762, %v3725
      %3791 = vst.msk [vmem:[%s238 + $0x70] sm:$0xf] %vm3762, %v3726
      %3792 = vst.msk [vmem:[%s238 + $0x74] sm:$0xf] %vm3762, %v3727
      %3793 = vst.msk [vmem:[%s238 + $0x78] sm:$0xf] %vm3762, %v3728
      %3794 = vst.msk [vmem:[%s238 + $0x7c] sm:$0xf] %vm3762, %v3729
      %s3795 = smul.u32 32, %s21
      %p3796 = scmp.lt.s32.totalorder %s19, 1
      %s3797 = scalar_select %p3796, %s19, 1
      %p3798 = scmp.lt.s32.totalorder %s3795, 31
      %s3799 = scalar_select %p3798, %s3795, 31
      %p3800 = scmp.lt.s32.totalorder %s20, 0
      %s3801 = scalar_select %p3800, %s20, 0
      %s3802 = sadd.s32 %s3801, %s3799
      %s3803 = smul.addr %s3797, 32
      %s3804 = sadd.s32 %s3802, %s3803
      %s3805 = smul.addr %s3804, 4
      %s3806 = scalar_lea.vmem %s3, %s3805
      // Predicated region
      $region33: #{tpu_custom_call.1} parent=31 // pred_check
        %p3807 = pneg %p133
      $region34: #{tpu_custom_call.1} parent=31 // pred_check_branch
        %3809 = sbr.rel (%p3807) target = $region36
      $region35: #{tpu_custom_call.1} parent=31 // pred_region
        %s3810 = smul.u32 32, %s21
      $region36: #{tpu_custom_call.1} parent=31 // pred_fallthru
        _
    $region32: #{tpu_custom_call.1} parent=5 // pred_fallthru
      _
    %p3811 = scmp.le.s32.totalorder 2, %s9
    // Predicated region
    $region37: #{tpu_custom_call.1} parent=5 // pred_check
      %p3812 = pneg %p3811
    $region38: #{tpu_custom_call.1} parent=5 // pred_check_branch
      %3814 = sbr.rel (%p3812) target = $region40
    $region39: #{tpu_custom_call.1} parent=5 // pred_region
      %s3815 = ssub.s32 %s9, 2
      // Predicated region
      $region41: #{tpu_custom_call.1} parent=39 // pred_check
        %p3816 = pneg %p139
      $region42: #{tpu_custom_call.1} parent=39 // pred_check_branch
        %3818 = sbr.rel (%p3816) target = $region44
      $region43: #{tpu_custom_call.1} parent=39 // pred_region
        %s3819 = smul.u32 32, %s24
        %p3820 = scmp.lt.s32.totalorder %s22, 1
        %s3821 = scalar_select %p3820, %s22, 1
        %p3822 = scmp.lt.s32.totalorder %s3819, 31
        %s3823 = scalar_select %p3822, %s3819, 31
        %p3824 = scmp.lt.s32.totalorder %s23, 0
        %s3825 = scalar_select %p3824, %s23, 0
        %s3826 = sadd.s32 %s3825, %s3823
        %s3827 = smul.addr %s3821, 32
        %s3828 = sadd.s32 %s3826, %s3827
        %s3829 = smul.addr %s3828, 4
        %s3830 = scalar_lea.vmem %s3, %s3829
      $region44: #{tpu_custom_call.1} parent=39 // pred_fallthru
        _
    $region40: #{tpu_custom_call.1} parent=5 // pred_fallthru
      _
  $region6: #{tpu_custom_call.1} parent=0 // loop_footer
    %s13 = sadd.s32 1, %s9
  $region7: #{tpu_custom_call.1} parent=0 // loop_footer_branch
    %8 = sbr.rel target = $region3
  $region8: #{tpu_custom_call.1} parent=0 // loop_exit
    _

</llo_original>
